<compile_context>
chip_gen: v7x
topology: tpu7x:2x2x1
jax: 0.10.0
libtpu: 0.0.40
codegen_flags: <defaults>
</compile_context>

<pallas_src>
import numpy as np

import jax
import jax.numpy as jnp
from jax.experimental import pallas as pl
from jax.experimental.pallas import tpu as pltpu

SLOPE = 0.2       # LeakyReLU negative slope
IN_EPS = 1e-5     # torch InstanceNorm2d default eps (biased variance)
LANES = 128


# ----------------------------------------------------------------------------
# Fused Pallas kernel: whole discriminator forward for one batch tile
# ----------------------------------------------------------------------------
def _disc_kernel(x_ref, m_ref, s1_ref, s2_ref, s3_ref, s4_ref,
                 bo2_ref, bo3_ref, p2_ref, p3_ref, vec_ref, o_ref):
    f32, bf16 = jnp.float32, jnp.bfloat16

    def conv4(x_bf, s_ref, m_base):
        # out = sum_kh (S_kh @ x) @ M_kh
        # S_kh: 0/1 row gather (exact in bf16), M_kh: per-tap weight matrix.
        acc = None
        for kh in range(4):
            rows = jnp.dot(s_ref[kh], x_bf,
                           preferred_element_type=f32).astype(bf16)
            part = jnp.dot(rows, m_ref[m_base + kh], preferred_element_type=f32)
            acc = part if acc is None else acc + part
        return acc                                        # (R_out, 128) f32

    def lrelu(y):
        return jnp.maximum(y, SLOPE * y)

    def inorm(y, bo, p, gamma, beta):
        # One-pass per-sample / per-channel statistics:
        #   bo: (R, R) block matrix = 1/(OH*OW) within a sample (row mean)
        #   p : (128, 128) channel-sum-broadcast across the ow lane groups
        mean = jnp.dot(jnp.dot(bo, y, preferred_element_type=f32), p,
                       preferred_element_type=f32)
        msq = jnp.dot(jnp.dot(bo, y * y, preferred_element_type=f32), p,
                      preferred_element_type=f32)
        var = jnp.maximum(msq - mean * mean, 0.0)
        return (y - mean) * jax.lax.rsqrt(var + IN_EPS) * gamma + beta

    x0 = x_ref[...]                                                 # (bt*32, 128) bf16

    # layer 1: Conv(C -> fd, 4, 2, 1) + bias + LeakyReLU
    y1 = lrelu(conv4(x0, s1_ref, 0) + vec_ref[0:1, :])              # (bt*16, 128)

    # block 2: Conv(fd -> 2fd, 4, 2, 1, bias=False) + InstanceNorm + LeakyReLU
    y2 = conv4(y1.astype(bf16), s2_ref, 4)                          # (bt*8, 128)
    y2 = lrelu(inorm(y2, bo2_ref[...], p2_ref[...],
                     vec_ref[1:2, :], vec_ref[2:3, :]))

    # block 3: Conv(2fd -> 4fd, 4, 2, 1, bias=False) + InstanceNorm + LeakyReLU
    y3 = conv4(y2.astype(bf16), s3_ref, 8)                          # (bt*4, 128)
    y3 = lrelu(inorm(y3, bo3_ref[...], p3_ref[...],
                     vec_ref[3:4, :], vec_ref[4:5, :]))

    # head: Conv(4fd -> 1, 4, 2, 0) + bias; logit replicated across all lanes
    hd = conv4(y3.astype(bf16), s4_ref, 12) + vec_ref[5:6, :]       # (hr, 128)
    bt = o_ref.shape[0]
    o_ref[...] = hd[:bt][:, None, :]                                # (bt, 1, 128)


# ----------------------------------------------------------------------------
# One-time parameter relayout (tap matrices, tiled bias/gamma/beta rows)
# ----------------------------------------------------------------------------
def _tap_matrices(w_oihw, w_in, pad, broadcast_out=False, l_in=LANES, l_out=LANES):
    """torch (C_out, C_in, 4, 4) -> (4, l_in, l_out) per-kh lane matrices."""
    w = np.asarray(w_oihw, np.float32)
    c_out, c_in, kh_n, kw_n = w.shape
    ow_n = (w_in + 2 * pad - kw_n) // 2 + 1
    mats = np.zeros((kh_n, l_in, l_out), np.float32)
    for kh in range(kh_n):
        for ow in range(ow_n):
            for kw in range(kw_n):
                col = 2 * ow - pad + kw
                if not (0 <= col < w_in):
                    continue                      # implicit zero column-padding
                blk = w[:, :, kh, kw].T           # (c_in, c_out)
                r0 = col * c_in
                if broadcast_out:
                    mats[kh, r0:r0 + c_in, :] = np.repeat(blk, l_out, axis=1)
                else:
                    c0 = ow * c_out
                    mats[kh, r0:r0 + c_in, c0:c0 + c_out] = blk
    return mats


def _sel_matrices(oh_n, h_in, pad, bt, out_rows=None):
    """(4, bt*oh_n, bt*h_in) 0/1 row-selection matrices (block-diag over bt)."""
    s = np.zeros((4, oh_n, h_in), np.float32)
    for kh in range(4):
        for oh in range(oh_n):
            h = 2 * oh - pad + kh
            if 0 <= h < h_in:
                s[kh, oh, h] = 1.0
    sb = np.stack([np.kron(np.eye(bt, dtype=np.float32), s[kh]) for kh in range(4)])
    if out_rows is not None and out_rows > bt * oh_n:
        sb = np.pad(sb, ((0, 0), (0, out_rows - bt * oh_n), (0, 0)))
    return sb


def _block_mean_mat(oh_n, ow_n, bt):
    return np.kron(np.eye(bt, dtype=np.float32),
                   np.full((oh_n, oh_n), 1.0 / (oh_n * ow_n), np.float32))


def _chan_bcast_mat(ow_n, c, l=LANES):
    p = np.tile(np.eye(c, dtype=np.float32), (ow_n, ow_n))
    out = np.zeros((l, l), np.float32)
    out[:ow_n * c, :ow_n * c] = p
    return out


def _tile_lane(v, reps, l=LANES):
    v = np.asarray(v, np.float32).reshape(-1)
    t = np.tile(v, reps)
    out = np.zeros((l,), np.float32)
    out[:t.size] = t
    return out


def prepare_params(params, channels_img, features_d):
    fd = features_d
    assert 32 * channels_img <= LANES, "W*C of the input must fit in 128 lanes"
    assert 16 * fd <= LANES, "16*features_d must fit in 128 lanes"
    m = np.concatenate([
        _tap_matrices(params["w1"], w_in=32, pad=1),
        _tap_matrices(params["w2"], w_in=16, pad=1),
        _tap_matrices(params["w3"], w_in=8, pad=1),
        _tap_matrices(params["w4"], w_in=4, pad=0, broadcast_out=True),
    ], axis=0)                                                  # (16, 128, 128)
    vec = np.zeros((8, LANES), np.float32)
    vec[0] = _tile_lane(params["b1"], 16)
    vec[1] = _tile_lane(params["g2"], 8)      # padded lanes get 0 (safe)
    vec[2] = _tile_lane(params["bt2"], 8)
    vec[3] = _tile_lane(params["g3"], 4)
    vec[4] = _tile_lane(params["bt3"], 4)
    vec[5] = float(np.asarray(params["b4"]).reshape(()))
    return {
        "m": jnp.asarray(m, jnp.bfloat16),
        "p2": jnp.asarray(_chan_bcast_mat(8, 2 * fd), jnp.float32),
        "p3": jnp.asarray(_chan_bcast_mat(4, 4 * fd), jnp.float32),
        "vec": jnp.asarray(vec, jnp.float32),
    }


# ----------------------------------------------------------------------------
# Forward
# ----------------------------------------------------------------------------
def _pick_bt(n, cap=8):
    """Largest divisor of n (<= cap) that still leaves >= 2 grid steps."""
    if n == 1:
        return 1
    best = 1
    for bt in range(1, min(n, cap) + 1):
        if n % bt == 0 and n // bt >= 2:
            best = bt
    return best


def discriminator_forward(prep, x_nchw):
    n, c, h, w = x_nchw.shape
    # TODO(synk): other resolutions need resolution-dependent tap/selection
    # matrices and a spatial loop in the head epilogue.
    assert h == 32 and w == 32, "fused head expects a 32x32 input (4x4 pre-head map)"

    bt = _pick_bt(n)
    steps = n // bt
    hr = bt if bt >= 8 else 8             # pad head rows to avoid degenerate matmuls

    # Trace-time constants (depend only on static shapes / bt).
    s1 = jnp.asarray(_sel_matrices(16, 32, 1, bt), jnp.bfloat16)
    s2 = jnp.asarray(_sel_matrices(8, 16, 1, bt), jnp.bfloat16)
    s3 = jnp.asarray(_sel_matrices(4, 8, 1, bt), jnp.bfloat16)
    s4 = jnp.asarray(_sel_matrices(1, 4, 0, bt, out_rows=hr), jnp.bfloat16)
    bo2 = jnp.asarray(_block_mean_mat(8, 8, bt), jnp.float32)
    bo3 = jnp.asarray(_block_mean_mat(4, 4, bt), jnp.float32)

    # Input relayout: NCHW -> (N*H, W*C) rows, zero-padded to 128 lanes, bf16.
    x_rows = jnp.transpose(x_nchw, (0, 2, 3, 1)).astype(jnp.float32)
    x_rows = x_rows.reshape(n * h, w * c)
    x_rows = jnp.pad(x_rows, ((0, 0), (0, LANES - w * c))).astype(jnp.bfloat16)

    out = pl.pallas_call(
        _disc_kernel,
        out_shape=jax.ShapeDtypeStruct((n, 1, LANES), jnp.float32),
        grid=(steps,),
        in_specs=[
            pl.BlockSpec((bt * 32, LANES), lambda i: (i, 0)),
            pl.BlockSpec((16, LANES, LANES), lambda i: (0, 0, 0)),
            pl.BlockSpec(s1.shape, lambda i: (0, 0, 0)),
            pl.BlockSpec(s2.shape, lambda i: (0, 0, 0)),
            pl.BlockSpec(s3.shape, lambda i: (0, 0, 0)),
            pl.BlockSpec(s4.shape, lambda i: (0, 0, 0)),
            pl.BlockSpec(bo2.shape, lambda i: (0, 0)),
            pl.BlockSpec(bo3.shape, lambda i: (0, 0)),
            pl.BlockSpec((LANES, LANES), lambda i: (0, 0)),
            pl.BlockSpec((LANES, LANES), lambda i: (0, 0)),
            pl.BlockSpec((8, LANES), lambda i: (0, 0)),
        ],
        out_specs=pl.BlockSpec((bt, 1, LANES), lambda i: (i, 0, 0)),
        compiler_params=pltpu.CompilerParams(dimension_semantics=("parallel",)),
    )(x_rows, prep["m"], s1, s2, s3, s4, bo2, bo3,
      prep["p2"], prep["p3"], prep["vec"])

    return out[:, 0, :1].reshape(n, 1, 1, 1)


# ----------------------------------------------------------------------------
# Parameter init (torch layout) and pure-XLA f32 reference for validation
# ----------------------------------------------------------------------------
def init_params(key, channels_img, features_d):
    ks = jax.random.split(key, 6)
    scale = 0.05
    fd = features_d
    return {
        "w1": jax.random.normal(ks[0], (fd, channels_img, 4, 4), jnp.float32) * scale,
        "b1": jax.random.normal(ks[1], (fd,), jnp.float32) * scale,
        "w2": jax.random.normal(ks[2], (fd * 2, fd, 4, 4), jnp.float32) * scale,
        "g2": jnp.ones((fd * 2,), jnp.float32),
        "bt2": jnp.zeros((fd * 2,), jnp.float32),
        "w3": jax.random.normal(ks[3], (fd * 4, fd * 2, 4, 4), jnp.float32) * scale,
        "g3": jnp.ones((fd * 4,), jnp.float32),
        "bt3": jnp.zeros((fd * 4,), jnp.float32),
        "w4": jax.random.normal(ks[4], (1, fd * 4, 4, 4), jnp.float32) * scale,
        "b4": jax.random.normal(ks[5], (1,), jnp.float32) * scale,
    }


def reference_forward(params, x_nchw):
    hp = jax.lax.Precision.HIGHEST

    def conv(v, w, stride, pad):
        return jax.lax.conv_general_dilated(
            v, w, window_strides=(stride, stride),
            padding=((pad, pad), (pad, pad)),
            dimension_numbers=("NCHW", "OIHW", "NCHW"), precision=hp)

    def lrelu(v):
        return jnp.where(v >= 0, v, SLOPE * v)

    def inorm(v, g, b):
        mean = jnp.mean(v, axis=(2, 3), keepdims=True)
        var = jnp.mean((v - mean) ** 2, axis=(2, 3), keepdims=True)
        vn = (v - mean) * jax.lax.rsqrt(var + IN_EPS)
        return vn * g[None, :, None, None] + b[None, :, None, None]

    y = lrelu(conv(x_nchw, params["w1"], 2, 1) + params["b1"][None, :, None, None])
    y = lrelu(inorm(conv(y, params["w2"], 2, 1), params["g2"], params["bt2"]))
    y = lrelu(inorm(conv(y, params["w3"], 2, 1), params["g3"], params["bt3"]))
    y = conv(y, params["w4"], 2, 0) + params["b4"][None, :, None, None]
    return y


if __name__ == "__main__":
    channels_img = 3
    features_d = 8
    N, H, W = 2, 32, 32   # 32x32 -> 16 -> 8 -> 4 -> 1x1 final output

    key = jax.random.PRNGKey(0)
    k_x, k_p = jax.random.split(key)
    x = jax.random.normal(k_x, (N, channels_img, H, W), jnp.float32)
    params = init_params(k_p, channels_img, features_d)

    prep = prepare_params(params, channels_img, features_d)
    fwd = jax.jit(discriminator_forward)
    out = fwd(prep, x)
    jax.block_until_ready(out)
    assert out.shape == (N, 1, 1, 1), out.shape

    ref = reference_forward(params, x)
    err = float(jnp.max(jnp.abs(out - ref)))
    assert err < 0.1, f"max abs err vs f32 reference too large: {err}"
    print("KERNEL_OK")
</pallas_src>

<mosaic_0001>
module attributes {stable_mosaic.version = 11 : i64} {
  func.func @_disc_kernel(%arg0: i32, %arg1: memref<32x128xbf16, #tpu.memory_space<vmem>>, %arg2: memref<16x128x128xbf16, #tpu.memory_space<vmem>>, %arg3: memref<4x16x32xbf16, #tpu.memory_space<vmem>>, %arg4: memref<4x8x16xbf16, #tpu.memory_space<vmem>>, %arg5: memref<4x4x8xbf16, #tpu.memory_space<vmem>>, %arg6: memref<4x8x4xbf16, #tpu.memory_space<vmem>>, %arg7: memref<8x8xf32, #tpu.memory_space<vmem>>, %arg8: memref<4x4xf32, #tpu.memory_space<vmem>>, %arg9: memref<128x128xf32, #tpu.memory_space<vmem>>, %arg10: memref<128x128xf32, #tpu.memory_space<vmem>>, %arg11: memref<8x128xf32, #tpu.memory_space<vmem>>, %arg12: memref<1x1x128xf32, #tpu.memory_space<vmem>>) attributes {dimension_semantics = [#tpu.dimension_semantics<parallel>], iteration_bounds = array<i64: 2>, scalar_prefetch = 0 : i64, scratch_operands = 0 : i64, tpu.core_type = #tpu.core_type<tc>, window_params = [{transform_indices = @transform_0, window_bounds = array<i64: 32, 128>}, {pipeline_mode = #tpu.pipeline_mode<synchronous>, transform_indices = @transform_1, window_bounds = array<i64: 16, 128, 128>}, {pipeline_mode = #tpu.pipeline_mode<synchronous>, transform_indices = @transform_2, window_bounds = array<i64: 4, 16, 32>}, {pipeline_mode = #tpu.pipeline_mode<synchronous>, transform_indices = @transform_3, window_bounds = array<i64: 4, 8, 16>}, {pipeline_mode = #tpu.pipeline_mode<synchronous>, transform_indices = @transform_4, window_bounds = array<i64: 4, 4, 8>}, {pipeline_mode = #tpu.pipeline_mode<synchronous>, transform_indices = @transform_5, window_bounds = array<i64: 4, 8, 4>}, {pipeline_mode = #tpu.pipeline_mode<synchronous>, transform_indices = @transform_6, window_bounds = array<i64: 8, 8>}, {pipeline_mode = #tpu.pipeline_mode<synchronous>, transform_indices = @transform_7, window_bounds = array<i64: 4, 4>}, {pipeline_mode = #tpu.pipeline_mode<synchronous>, transform_indices = @transform_8, window_bounds = array<i64: 128, 128>}, {pipeline_mode = #tpu.pipeline_mode<synchronous>, transform_indices = @transform_9, window_bounds = array<i64: 128, 128>}, {pipeline_mode = #tpu.pipeline_mode<synchronous>, transform_indices = @transform_10, window_bounds = array<i64: 8, 128>}, {transform_indices = @transform_11, window_bounds = array<i64: 1, 1, 128>}]} {
    %c0 = arith.constant 0 : index
    %c0_0 = arith.constant 0 : index
    %0 = vector.load %arg1[%c0, %c0_0] : memref<32x128xbf16, #tpu.memory_space<vmem>>, vector<32x128xbf16>
    %c0_1 = arith.constant 0 : index
    %c0_2 = arith.constant 0 : index
    %c0_3 = arith.constant 0 : index
    %1 = vector.load %arg3[%c0_1, %c0_2, %c0_3] : memref<4x16x32xbf16, #tpu.memory_space<vmem>>, vector<1x16x32xbf16>
    %2 = vector.shape_cast %1 : vector<1x16x32xbf16> to vector<16x32xbf16>
    %cst = arith.constant dense<0.000000e+00> : vector<16x128xf32>
    %3 = tpu.matmul %2, %0, %cst {dimension_numbers = #tpu.dot_dimension_numbers<[1], [0], [0], [1], [0, 0, 1, 1], [], []>} : vector<16x32xbf16>, vector<32x128xbf16>, vector<16x128xf32> -> vector<16x128xf32>
    %4 = arith.truncf %3 : vector<16x128xf32> to vector<16x128xbf16>
    %c0_4 = arith.constant 0 : index
    %c0_5 = arith.constant 0 : index
    %c0_6 = arith.constant 0 : index
    %5 = vector.load %arg2[%c0_4, %c0_5, %c0_6] : memref<16x128x128xbf16, #tpu.memory_space<vmem>>, vector<1x128x128xbf16>
    %6 = vector.shape_cast %5 : vector<1x128x128xbf16> to vector<128x128xbf16>
    %cst_7 = arith.constant dense<0.000000e+00> : vector<16x128xf32>
    %7 = tpu.matmul %4, %6, %cst_7 {dimension_numbers = #tpu.dot_dimension_numbers<[1], [0], [0], [1], [0, 0, 1, 1], [], []>} : vector<16x128xbf16>, vector<128x128xbf16>, vector<16x128xf32> -> vector<16x128xf32>
    %c1 = arith.constant 1 : index
    %c0_8 = arith.constant 0 : index
    %c0_9 = arith.constant 0 : index
    %8 = vector.load %arg3[%c1, %c0_8, %c0_9] : memref<4x16x32xbf16, #tpu.memory_space<vmem>>, vector<1x16x32xbf16>
    %9 = vector.shape_cast %8 : vector<1x16x32xbf16> to vector<16x32xbf16>
    %cst_10 = arith.constant dense<0.000000e+00> : vector<16x128xf32>
    %10 = tpu.matmul %9, %0, %cst_10 {dimension_numbers = #tpu.dot_dimension_numbers<[1], [0], [0], [1], [0, 0, 1, 1], [], []>} : vector<16x32xbf16>, vector<32x128xbf16>, vector<16x128xf32> -> vector<16x128xf32>
    %11 = arith.truncf %10 : vector<16x128xf32> to vector<16x128xbf16>
    %c1_11 = arith.constant 1 : index
    %c0_12 = arith.constant 0 : index
    %c0_13 = arith.constant 0 : index
    %12 = vector.load %arg2[%c1_11, %c0_12, %c0_13] : memref<16x128x128xbf16, #tpu.memory_space<vmem>>, vector<1x128x128xbf16>
    %13 = vector.shape_cast %12 : vector<1x128x128xbf16> to vector<128x128xbf16>
    %cst_14 = arith.constant dense<0.000000e+00> : vector<16x128xf32>
    %14 = tpu.matmul %11, %13, %cst_14 {dimension_numbers = #tpu.dot_dimension_numbers<[1], [0], [0], [1], [0, 0, 1, 1], [], []>} : vector<16x128xbf16>, vector<128x128xbf16>, vector<16x128xf32> -> vector<16x128xf32>
    %15 = arith.addf %7, %14 : vector<16x128xf32>
    %c2 = arith.constant 2 : index
    %c0_15 = arith.constant 0 : index
    %c0_16 = arith.constant 0 : index
    %16 = vector.load %arg3[%c2, %c0_15, %c0_16] : memref<4x16x32xbf16, #tpu.memory_space<vmem>>, vector<1x16x32xbf16>
    %17 = vector.shape_cast %16 : vector<1x16x32xbf16> to vector<16x32xbf16>
    %cst_17 = arith.constant dense<0.000000e+00> : vector<16x128xf32>
    %18 = tpu.matmul %17, %0, %cst_17 {dimension_numbers = #tpu.dot_dimension_numbers<[1], [0], [0], [1], [0, 0, 1, 1], [], []>} : vector<16x32xbf16>, vector<32x128xbf16>, vector<16x128xf32> -> vector<16x128xf32>
    %19 = arith.truncf %18 : vector<16x128xf32> to vector<16x128xbf16>
    %c2_18 = arith.constant 2 : index
    %c0_19 = arith.constant 0 : index
    %c0_20 = arith.constant 0 : index
    %20 = vector.load %arg2[%c2_18, %c0_19, %c0_20] : memref<16x128x128xbf16, #tpu.memory_space<vmem>>, vector<1x128x128xbf16>
    %21 = vector.shape_cast %20 : vector<1x128x128xbf16> to vector<128x128xbf16>
    %cst_21 = arith.constant dense<0.000000e+00> : vector<16x128xf32>
    %22 = tpu.matmul %19, %21, %cst_21 {dimension_numbers = #tpu.dot_dimension_numbers<[1], [0], [0], [1], [0, 0, 1, 1], [], []>} : vector<16x128xbf16>, vector<128x128xbf16>, vector<16x128xf32> -> vector<16x128xf32>
    %23 = arith.addf %15, %22 : vector<16x128xf32>
    %c3 = arith.constant 3 : index
    %c0_22 = arith.constant 0 : index
    %c0_23 = arith.constant 0 : index
    %24 = vector.load %arg3[%c3, %c0_22, %c0_23] : memref<4x16x32xbf16, #tpu.memory_space<vmem>>, vector<1x16x32xbf16>
    %25 = vector.shape_cast %24 : vector<1x16x32xbf16> to vector<16x32xbf16>
    %cst_24 = arith.constant dense<0.000000e+00> : vector<16x128xf32>
    %26 = tpu.matmul %25, %0, %cst_24 {dimension_numbers = #tpu.dot_dimension_numbers<[1], [0], [0], [1], [0, 0, 1, 1], [], []>} : vector<16x32xbf16>, vector<32x128xbf16>, vector<16x128xf32> -> vector<16x128xf32>
    %27 = arith.truncf %26 : vector<16x128xf32> to vector<16x128xbf16>
    %c3_25 = arith.constant 3 : index
    %c0_26 = arith.constant 0 : index
    %c0_27 = arith.constant 0 : index
    %28 = vector.load %arg2[%c3_25, %c0_26, %c0_27] : memref<16x128x128xbf16, #tpu.memory_space<vmem>>, vector<1x128x128xbf16>
    %29 = vector.shape_cast %28 : vector<1x128x128xbf16> to vector<128x128xbf16>
    %cst_28 = arith.constant dense<0.000000e+00> : vector<16x128xf32>
    %30 = tpu.matmul %27, %29, %cst_28 {dimension_numbers = #tpu.dot_dimension_numbers<[1], [0], [0], [1], [0, 0, 1, 1], [], []>} : vector<16x128xbf16>, vector<128x128xbf16>, vector<16x128xf32> -> vector<16x128xf32>
    %31 = arith.addf %23, %30 : vector<16x128xf32>
    %c0_29 = arith.constant 0 : index
    %c0_30 = arith.constant 0 : index
    %32 = vector.load %arg11[%c0_29, %c0_30] : memref<8x128xf32, #tpu.memory_space<vmem>>, vector<1x128xf32>
    %33 = vector.broadcast %32 : vector<1x128xf32> to vector<16x128xf32>
    %34 = arith.addf %31, %33 : vector<16x128xf32>
    %cst_31 = arith.constant 2.000000e-01 : f32
    %35 = vector.broadcast %cst_31 : f32 to vector<16x128xf32>
    %36 = arith.mulf %35, %34 : vector<16x128xf32>
    %37 = arith.maximumf %34, %36 : vector<16x128xf32>
    %38 = arith.truncf %37 : vector<16x128xf32> to vector<16x128xbf16>
    %c0_32 = arith.constant 0 : index
    %c0_33 = arith.constant 0 : index
    %c0_34 = arith.constant 0 : index
    %39 = vector.load %arg4[%c0_32, %c0_33, %c0_34] : memref<4x8x16xbf16, #tpu.memory_space<vmem>>, vector<1x8x16xbf16>
    %40 = vector.shape_cast %39 : vector<1x8x16xbf16> to vector<8x16xbf16>
    %cst_35 = arith.constant dense<0.000000e+00> : vector<8x128xf32>
    %41 = tpu.matmul %40, %38, %cst_35 {dimension_numbers = #tpu.dot_dimension_numbers<[1], [0], [0], [1], [0, 0, 1, 1], [], []>} : vector<8x16xbf16>, vector<16x128xbf16>, vector<8x128xf32> -> vector<8x128xf32>
    %42 = arith.truncf %41 : vector<8x128xf32> to vector<8x128xbf16>
    %c4 = arith.constant 4 : index
    %c0_36 = arith.constant 0 : index
    %c0_37 = arith.constant 0 : index
    %43 = vector.load %arg2[%c4, %c0_36, %c0_37] : memref<16x128x128xbf16, #tpu.memory_space<vmem>>, vector<1x128x128xbf16>
    %44 = vector.shape_cast %43 : vector<1x128x128xbf16> to vector<128x128xbf16>
    %cst_38 = arith.constant dense<0.000000e+00> : vector<8x128xf32>
    %45 = tpu.matmul %42, %44, %cst_38 {dimension_numbers = #tpu.dot_dimension_numbers<[1], [0], [0], [1], [0, 0, 1, 1], [], []>} : vector<8x128xbf16>, vector<128x128xbf16>, vector<8x128xf32> -> vector<8x128xf32>
    %c1_39 = arith.constant 1 : index
    %c0_40 = arith.constant 0 : index
    %c0_41 = arith.constant 0 : index
    %46 = vector.load %arg4[%c1_39, %c0_40, %c0_41] : memref<4x8x16xbf16, #tpu.memory_space<vmem>>, vector<1x8x16xbf16>
    %47 = vector.shape_cast %46 : vector<1x8x16xbf16> to vector<8x16xbf16>
    %cst_42 = arith.constant dense<0.000000e+00> : vector<8x128xf32>
    %48 = tpu.matmul %47, %38, %cst_42 {dimension_numbers = #tpu.dot_dimension_numbers<[1], [0], [0], [1], [0, 0, 1, 1], [], []>} : vector<8x16xbf16>, vector<16x128xbf16>, vector<8x128xf32> -> vector<8x128xf32>
    %49 = arith.truncf %48 : vector<8x128xf32> to vector<8x128xbf16>
    %c5 = arith.constant 5 : index
    %c0_43 = arith.constant 0 : index
    %c0_44 = arith.constant 0 : index
    %50 = vector.load %arg2[%c5, %c0_43, %c0_44] : memref<16x128x128xbf16, #tpu.memory_space<vmem>>, vector<1x128x128xbf16>
    %51 = vector.shape_cast %50 : vector<1x128x128xbf16> to vector<128x128xbf16>
    %cst_45 = arith.constant dense<0.000000e+00> : vector<8x128xf32>
    %52 = tpu.matmul %49, %51, %cst_45 {dimension_numbers = #tpu.dot_dimension_numbers<[1], [0], [0], [1], [0, 0, 1, 1], [], []>} : vector<8x128xbf16>, vector<128x128xbf16>, vector<8x128xf32> -> vector<8x128xf32>
    %53 = arith.addf %45, %52 : vector<8x128xf32>
    %c2_46 = arith.constant 2 : index
    %c0_47 = arith.constant 0 : index
    %c0_48 = arith.constant 0 : index
    %54 = vector.load %arg4[%c2_46, %c0_47, %c0_48] : memref<4x8x16xbf16, #tpu.memory_space<vmem>>, vector<1x8x16xbf16>
    %55 = vector.shape_cast %54 : vector<1x8x16xbf16> to vector<8x16xbf16>
    %cst_49 = arith.constant dense<0.000000e+00> : vector<8x128xf32>
    %56 = tpu.matmul %55, %38, %cst_49 {dimension_numbers = #tpu.dot_dimension_numbers<[1], [0], [0], [1], [0, 0, 1, 1], [], []>} : vector<8x16xbf16>, vector<16x128xbf16>, vector<8x128xf32> -> vector<8x128xf32>
    %57 = arith.truncf %56 : vector<8x128xf32> to vector<8x128xbf16>
    %c6 = arith.constant 6 : index
    %c0_50 = arith.constant 0 : index
    %c0_51 = arith.constant 0 : index
    %58 = vector.load %arg2[%c6, %c0_50, %c0_51] : memref<16x128x128xbf16, #tpu.memory_space<vmem>>, vector<1x128x128xbf16>
    %59 = vector.shape_cast %58 : vector<1x128x128xbf16> to vector<128x128xbf16>
    %cst_52 = arith.constant dense<0.000000e+00> : vector<8x128xf32>
    %60 = tpu.matmul %57, %59, %cst_52 {dimension_numbers = #tpu.dot_dimension_numbers<[1], [0], [0], [1], [0, 0, 1, 1], [], []>} : vector<8x128xbf16>, vector<128x128xbf16>, vector<8x128xf32> -> vector<8x128xf32>
    %61 = arith.addf %53, %60 : vector<8x128xf32>
    %c3_53 = arith.constant 3 : index
    %c0_54 = arith.constant 0 : index
    %c0_55 = arith.constant 0 : index
    %62 = vector.load %arg4[%c3_53, %c0_54, %c0_55] : memref<4x8x16xbf16, #tpu.memory_space<vmem>>, vector<1x8x16xbf16>
    %63 = vector.shape_cast %62 : vector<1x8x16xbf16> to vector<8x16xbf16>
    %cst_56 = arith.constant dense<0.000000e+00> : vector<8x128xf32>
    %64 = tpu.matmul %63, %38, %cst_56 {dimension_numbers = #tpu.dot_dimension_numbers<[1], [0], [0], [1], [0, 0, 1, 1], [], []>} : vector<8x16xbf16>, vector<16x128xbf16>, vector<8x128xf32> -> vector<8x128xf32>
    %65 = arith.truncf %64 : vector<8x128xf32> to vector<8x128xbf16>
    %c7 = arith.constant 7 : index
    %c0_57 = arith.constant 0 : index
    %c0_58 = arith.constant 0 : index
    %66 = vector.load %arg2[%c7, %c0_57, %c0_58] : memref<16x128x128xbf16, #tpu.memory_space<vmem>>, vector<1x128x128xbf16>
    %67 = vector.shape_cast %66 : vector<1x128x128xbf16> to vector<128x128xbf16>
    %cst_59 = arith.constant dense<0.000000e+00> : vector<8x128xf32>
    %68 = tpu.matmul %65, %67, %cst_59 {dimension_numbers = #tpu.dot_dimension_numbers<[1], [0], [0], [1], [0, 0, 1, 1], [], []>} : vector<8x128xbf16>, vector<128x128xbf16>, vector<8x128xf32> -> vector<8x128xf32>
    %69 = arith.addf %61, %68 : vector<8x128xf32>
    %c0_60 = arith.constant 0 : index
    %c0_61 = arith.constant 0 : index
    %70 = vector.load %arg7[%c0_60, %c0_61] : memref<8x8xf32, #tpu.memory_space<vmem>>, vector<8x8xf32>
    %c0_62 = arith.constant 0 : index
    %c0_63 = arith.constant 0 : index
    %71 = vector.load %arg9[%c0_62, %c0_63] : memref<128x128xf32, #tpu.memory_space<vmem>>, vector<128x128xf32>
    %c1_64 = arith.constant 1 : index
    %c0_65 = arith.constant 0 : index
    %72 = vector.load %arg11[%c1_64, %c0_65] : memref<8x128xf32, #tpu.memory_space<vmem>>, vector<1x128xf32>
    %c2_66 = arith.constant 2 : index
    %c0_67 = arith.constant 0 : index
    %73 = vector.load %arg11[%c2_66, %c0_67] : memref<8x128xf32, #tpu.memory_space<vmem>>, vector<1x128xf32>
    %cst_68 = arith.constant dense<0.000000e+00> : vector<8x128xf32>
    %74 = tpu.matmul %70, %69, %cst_68 {dimension_numbers = #tpu.dot_dimension_numbers<[1], [0], [0], [1], [0, 0, 1, 1], [], []>} : vector<8x8xf32>, vector<8x128xf32>, vector<8x128xf32> -> vector<8x128xf32>
    %cst_69 = arith.constant dense<0.000000e+00> : vector<8x128xf32>
    %75 = tpu.matmul %74, %71, %cst_69 {dimension_numbers = #tpu.dot_dimension_numbers<[1], [0], [0], [1], [0, 0, 1, 1], [], []>} : vector<8x128xf32>, vector<128x128xf32>, vector<8x128xf32> -> vector<8x128xf32>
    %76 = arith.mulf %69, %69 : vector<8x128xf32>
    %cst_70 = arith.constant dense<0.000000e+00> : vector<8x128xf32>
    %77 = tpu.matmul %70, %76, %cst_70 {dimension_numbers = #tpu.dot_dimension_numbers<[1], [0], [0], [1], [0, 0, 1, 1], [], []>} : vector<8x8xf32>, vector<8x128xf32>, vector<8x128xf32> -> vector<8x128xf32>
    %cst_71 = arith.constant dense<0.000000e+00> : vector<8x128xf32>
    %78 = tpu.matmul %77, %71, %cst_71 {dimension_numbers = #tpu.dot_dimension_numbers<[1], [0], [0], [1], [0, 0, 1, 1], [], []>} : vector<8x128xf32>, vector<128x128xf32>, vector<8x128xf32> -> vector<8x128xf32>
    %79 = arith.mulf %75, %75 : vector<8x128xf32>
    %80 = arith.subf %78, %79 : vector<8x128xf32>
    %cst_72 = arith.constant 0.000000e+00 : f32
    %81 = vector.broadcast %cst_72 : f32 to vector<8x128xf32>
    %82 = arith.maximumf %80, %81 : vector<8x128xf32>
    %83 = arith.subf %69, %75 : vector<8x128xf32>
    %cst_73 = arith.constant 9.99999974E-6 : f32
    %84 = vector.broadcast %cst_73 : f32 to vector<8x128xf32>
    %85 = arith.addf %82, %84 : vector<8x128xf32>
    %86 = math.rsqrt %85 : vector<8x128xf32>
    %87 = arith.mulf %83, %86 : vector<8x128xf32>
    %88 = vector.broadcast %72 : vector<1x128xf32> to vector<8x128xf32>
    %89 = arith.mulf %87, %88 : vector<8x128xf32>
    %90 = vector.broadcast %73 : vector<1x128xf32> to vector<8x128xf32>
    %91 = arith.addf %89, %90 : vector<8x128xf32>
    %cst_74 = arith.constant 2.000000e-01 : f32
    %92 = vector.broadcast %cst_74 : f32 to vector<8x128xf32>
    %93 = arith.mulf %92, %91 : vector<8x128xf32>
    %94 = arith.maximumf %91, %93 : vector<8x128xf32>
    %95 = arith.truncf %94 : vector<8x128xf32> to vector<8x128xbf16>
    %c0_75 = arith.constant 0 : index
    %c0_76 = arith.constant 0 : index
    %c0_77 = arith.constant 0 : index
    %96 = vector.load %arg5[%c0_75, %c0_76, %c0_77] : memref<4x4x8xbf16, #tpu.memory_space<vmem>>, vector<1x4x8xbf16>
    %97 = vector.shape_cast %96 : vector<1x4x8xbf16> to vector<4x8xbf16>
    %cst_78 = arith.constant dense<0.000000e+00> : vector<4x128xf32>
    %98 = tpu.matmul %97, %95, %cst_78 {dimension_numbers = #tpu.dot_dimension_numbers<[1], [0], [0], [1], [0, 0, 1, 1], [], []>} : vector<4x8xbf16>, vector<8x128xbf16>, vector<4x128xf32> -> vector<4x128xf32>
    %99 = arith.truncf %98 : vector<4x128xf32> to vector<4x128xbf16>
    %c8 = arith.constant 8 : index
    %c0_79 = arith.constant 0 : index
    %c0_80 = arith.constant 0 : index
    %100 = vector.load %arg2[%c8, %c0_79, %c0_80] : memref<16x128x128xbf16, #tpu.memory_space<vmem>>, vector<1x128x128xbf16>
    %101 = vector.shape_cast %100 : vector<1x128x128xbf16> to vector<128x128xbf16>
    %cst_81 = arith.constant dense<0.000000e+00> : vector<4x128xf32>
    %102 = tpu.matmul %99, %101, %cst_81 {dimension_numbers = #tpu.dot_dimension_numbers<[1], [0], [0], [1], [0, 0, 1, 1], [], []>} : vector<4x128xbf16>, vector<128x128xbf16>, vector<4x128xf32> -> vector<4x128xf32>
    %c1_82 = arith.constant 1 : index
    %c0_83 = arith.constant 0 : index
    %c0_84 = arith.constant 0 : index
    %103 = vector.load %arg5[%c1_82, %c0_83, %c0_84] : memref<4x4x8xbf16, #tpu.memory_space<vmem>>, vector<1x4x8xbf16>
    %104 = vector.shape_cast %103 : vector<1x4x8xbf16> to vector<4x8xbf16>
    %cst_85 = arith.constant dense<0.000000e+00> : vector<4x128xf32>
    %105 = tpu.matmul %104, %95, %cst_85 {dimension_numbers = #tpu.dot_dimension_numbers<[1], [0], [0], [1], [0, 0, 1, 1], [], []>} : vector<4x8xbf16>, vector<8x128xbf16>, vector<4x128xf32> -> vector<4x128xf32>
    %106 = arith.truncf %105 : vector<4x128xf32> to vector<4x128xbf16>
    %c9 = arith.constant 9 : index
    %c0_86 = arith.constant 0 : index
    %c0_87 = arith.constant 0 : index
    %107 = vector.load %arg2[%c9, %c0_86, %c0_87] : memref<16x128x128xbf16, #tpu.memory_space<vmem>>, vector<1x128x128xbf16>
    %108 = vector.shape_cast %107 : vector<1x128x128xbf16> to vector<128x128xbf16>
    %cst_88 = arith.constant dense<0.000000e+00> : vector<4x128xf32>
    %109 = tpu.matmul %106, %108, %cst_88 {dimension_numbers = #tpu.dot_dimension_numbers<[1], [0], [0], [1], [0, 0, 1, 1], [], []>} : vector<4x128xbf16>, vector<128x128xbf16>, vector<4x128xf32> -> vector<4x128xf32>
    %110 = arith.addf %102, %109 : vector<4x128xf32>
    %c2_89 = arith.constant 2 : index
    %c0_90 = arith.constant 0 : index
    %c0_91 = arith.constant 0 : index
    %111 = vector.load %arg5[%c2_89, %c0_90, %c0_91] : memref<4x4x8xbf16, #tpu.memory_space<vmem>>, vector<1x4x8xbf16>
    %112 = vector.shape_cast %111 : vector<1x4x8xbf16> to vector<4x8xbf16>
    %cst_92 = arith.constant dense<0.000000e+00> : vector<4x128xf32>
    %113 = tpu.matmul %112, %95, %cst_92 {dimension_numbers = #tpu.dot_dimension_numbers<[1], [0], [0], [1], [0, 0, 1, 1], [], []>} : vector<4x8xbf16>, vector<8x128xbf16>, vector<4x128xf32> -> vector<4x128xf32>
    %114 = arith.truncf %113 : vector<4x128xf32> to vector<4x128xbf16>
    %c10 = arith.constant 10 : index
    %c0_93 = arith.constant 0 : index
    %c0_94 = arith.constant 0 : index
    %115 = vector.load %arg2[%c10, %c0_93, %c0_94] : memref<16x128x128xbf16, #tpu.memory_space<vmem>>, vector<1x128x128xbf16>
    %116 = vector.shape_cast %115 : vector<1x128x128xbf16> to vector<128x128xbf16>
    %cst_95 = arith.constant dense<0.000000e+00> : vector<4x128xf32>
    %117 = tpu.matmul %114, %116, %cst_95 {dimension_numbers = #tpu.dot_dimension_numbers<[1], [0], [0], [1], [0, 0, 1, 1], [], []>} : vector<4x128xbf16>, vector<128x128xbf16>, vector<4x128xf32> -> vector<4x128xf32>
    %118 = arith.addf %110, %117 : vector<4x128xf32>
    %c3_96 = arith.constant 3 : index
    %c0_97 = arith.constant 0 : index
    %c0_98 = arith.constant 0 : index
    %119 = vector.load %arg5[%c3_96, %c0_97, %c0_98] : memref<4x4x8xbf16, #tpu.memory_space<vmem>>, vector<1x4x8xbf16>
    %120 = vector.shape_cast %119 : vector<1x4x8xbf16> to vector<4x8xbf16>
    %cst_99 = arith.constant dense<0.000000e+00> : vector<4x128xf32>
    %121 = tpu.matmul %120, %95, %cst_99 {dimension_numbers = #tpu.dot_dimension_numbers<[1], [0], [0], [1], [0, 0, 1, 1], [], []>} : vector<4x8xbf16>, vector<8x128xbf16>, vector<4x128xf32> -> vector<4x128xf32>
    %122 = arith.truncf %121 : vector<4x128xf32> to vector<4x128xbf16>
    %c11 = arith.constant 11 : index
    %c0_100 = arith.constant 0 : index
    %c0_101 = arith.constant 0 : index
    %123 = vector.load %arg2[%c11, %c0_100, %c0_101] : memref<16x128x128xbf16, #tpu.memory_space<vmem>>, vector<1x128x128xbf16>
    %124 = vector.shape_cast %123 : vector<1x128x128xbf16> to vector<128x128xbf16>
    %cst_102 = arith.constant dense<0.000000e+00> : vector<4x128xf32>
    %125 = tpu.matmul %122, %124, %cst_102 {dimension_numbers = #tpu.dot_dimension_numbers<[1], [0], [0], [1], [0, 0, 1, 1], [], []>} : vector<4x128xbf16>, vector<128x128xbf16>, vector<4x128xf32> -> vector<4x128xf32>
    %126 = arith.addf %118, %125 : vector<4x128xf32>
    %c0_103 = arith.constant 0 : index
    %c0_104 = arith.constant 0 : index
    %127 = vector.load %arg8[%c0_103, %c0_104] : memref<4x4xf32, #tpu.memory_space<vmem>>, vector<4x4xf32>
    %c0_105 = arith.constant 0 : index
    %c0_106 = arith.constant 0 : index
    %128 = vector.load %arg10[%c0_105, %c0_106] : memref<128x128xf32, #tpu.memory_space<vmem>>, vector<128x128xf32>
    %c3_107 = arith.constant 3 : index
    %c0_108 = arith.constant 0 : index
    %129 = vector.load %arg11[%c3_107, %c0_108] : memref<8x128xf32, #tpu.memory_space<vmem>>, vector<1x128xf32>
    %c4_109 = arith.constant 4 : index
    %c0_110 = arith.constant 0 : index
    %130 = vector.load %arg11[%c4_109, %c0_110] : memref<8x128xf32, #tpu.memory_space<vmem>>, vector<1x128xf32>
    %cst_111 = arith.constant dense<0.000000e+00> : vector<4x128xf32>
    %131 = tpu.matmul %127, %126, %cst_111 {dimension_numbers = #tpu.dot_dimension_numbers<[1], [0], [0], [1], [0, 0, 1, 1], [], []>} : vector<4x4xf32>, vector<4x128xf32>, vector<4x128xf32> -> vector<4x128xf32>
    %cst_112 = arith.constant dense<0.000000e+00> : vector<4x128xf32>
    %132 = tpu.matmul %131, %128, %cst_112 {dimension_numbers = #tpu.dot_dimension_numbers<[1], [0], [0], [1], [0, 0, 1, 1], [], []>} : vector<4x128xf32>, vector<128x128xf32>, vector<4x128xf32> -> vector<4x128xf32>
    %133 = arith.mulf %126, %126 : vector<4x128xf32>
    %cst_113 = arith.constant dense<0.000000e+00> : vector<4x128xf32>
    %134 = tpu.matmul %127, %133, %cst_113 {dimension_numbers = #tpu.dot_dimension_numbers<[1], [0], [0], [1], [0, 0, 1, 1], [], []>} : vector<4x4xf32>, vector<4x128xf32>, vector<4x128xf32> -> vector<4x128xf32>
    %cst_114 = arith.constant dense<0.000000e+00> : vector<4x128xf32>
    %135 = tpu.matmul %134, %128, %cst_114 {dimension_numbers = #tpu.dot_dimension_numbers<[1], [0], [0], [1], [0, 0, 1, 1], [], []>} : vector<4x128xf32>, vector<128x128xf32>, vector<4x128xf32> -> vector<4x128xf32>
    %136 = arith.mulf %132, %132 : vector<4x128xf32>
    %137 = arith.subf %135, %136 : vector<4x128xf32>
    %cst_115 = arith.constant 0.000000e+00 : f32
    %138 = vector.broadcast %cst_115 : f32 to vector<4x128xf32>
    %139 = arith.maximumf %137, %138 : vector<4x128xf32>
    %140 = arith.subf %126, %132 : vector<4x128xf32>
    %cst_116 = arith.constant 9.99999974E-6 : f32
    %141 = vector.broadcast %cst_116 : f32 to vector<4x128xf32>
    %142 = arith.addf %139, %141 : vector<4x128xf32>
    %143 = math.rsqrt %142 : vector<4x128xf32>
    %144 = arith.mulf %140, %143 : vector<4x128xf32>
    %145 = vector.broadcast %129 : vector<1x128xf32> to vector<4x128xf32>
    %146 = arith.mulf %144, %145 : vector<4x128xf32>
    %147 = vector.broadcast %130 : vector<1x128xf32> to vector<4x128xf32>
    %148 = arith.addf %146, %147 : vector<4x128xf32>
    %cst_117 = arith.constant 2.000000e-01 : f32
    %149 = vector.broadcast %cst_117 : f32 to vector<4x128xf32>
    %150 = arith.mulf %149, %148 : vector<4x128xf32>
    %151 = arith.maximumf %148, %150 : vector<4x128xf32>
    %152 = arith.truncf %151 : vector<4x128xf32> to vector<4x128xbf16>
    %c0_118 = arith.constant 0 : index
    %c0_119 = arith.constant 0 : index
    %c0_120 = arith.constant 0 : index
    %153 = vector.load %arg6[%c0_118, %c0_119, %c0_120] : memref<4x8x4xbf16, #tpu.memory_space<vmem>>, vector<1x8x4xbf16>
    %154 = vector.shape_cast %153 : vector<1x8x4xbf16> to vector<8x4xbf16>
    %cst_121 = arith.constant dense<0.000000e+00> : vector<8x128xf32>
    %155 = tpu.matmul %154, %152, %cst_121 {dimension_numbers = #tpu.dot_dimension_numbers<[1], [0], [0], [1], [0, 0, 1, 1], [], []>} : vector<8x4xbf16>, vector<4x128xbf16>, vector<8x128xf32> -> vector<8x128xf32>
    %156 = arith.truncf %155 : vector<8x128xf32> to vector<8x128xbf16>
    %c12 = arith.constant 12 : index
    %c0_122 = arith.constant 0 : index
    %c0_123 = arith.constant 0 : index
    %157 = vector.load %arg2[%c12, %c0_122, %c0_123] : memref<16x128x128xbf16, #tpu.memory_space<vmem>>, vector<1x128x128xbf16>
    %158 = vector.shape_cast %157 : vector<1x128x128xbf16> to vector<128x128xbf16>
    %cst_124 = arith.constant dense<0.000000e+00> : vector<8x128xf32>
    %159 = tpu.matmul %156, %158, %cst_124 {dimension_numbers = #tpu.dot_dimension_numbers<[1], [0], [0], [1], [0, 0, 1, 1], [], []>} : vector<8x128xbf16>, vector<128x128xbf16>, vector<8x128xf32> -> vector<8x128xf32>
    %c1_125 = arith.constant 1 : index
    %c0_126 = arith.constant 0 : index
    %c0_127 = arith.constant 0 : index
    %160 = vector.load %arg6[%c1_125, %c0_126, %c0_127] : memref<4x8x4xbf16, #tpu.memory_space<vmem>>, vector<1x8x4xbf16>
    %161 = vector.shape_cast %160 : vector<1x8x4xbf16> to vector<8x4xbf16>
    %cst_128 = arith.constant dense<0.000000e+00> : vector<8x128xf32>
    %162 = tpu.matmul %161, %152, %cst_128 {dimension_numbers = #tpu.dot_dimension_numbers<[1], [0], [0], [1], [0, 0, 1, 1], [], []>} : vector<8x4xbf16>, vector<4x128xbf16>, vector<8x128xf32> -> vector<8x128xf32>
    %163 = arith.truncf %162 : vector<8x128xf32> to vector<8x128xbf16>
    %c13 = arith.constant 13 : index
    %c0_129 = arith.constant 0 : index
    %c0_130 = arith.constant 0 : index
    %164 = vector.load %arg2[%c13, %c0_129, %c0_130] : memref<16x128x128xbf16, #tpu.memory_space<vmem>>, vector<1x128x128xbf16>
    %165 = vector.shape_cast %164 : vector<1x128x128xbf16> to vector<128x128xbf16>
    %cst_131 = arith.constant dense<0.000000e+00> : vector<8x128xf32>
    %166 = tpu.matmul %163, %165, %cst_131 {dimension_numbers = #tpu.dot_dimension_numbers<[1], [0], [0], [1], [0, 0, 1, 1], [], []>} : vector<8x128xbf16>, vector<128x128xbf16>, vector<8x128xf32> -> vector<8x128xf32>
    %167 = arith.addf %159, %166 : vector<8x128xf32>
    %c2_132 = arith.constant 2 : index
    %c0_133 = arith.constant 0 : index
    %c0_134 = arith.constant 0 : index
    %168 = vector.load %arg6[%c2_132, %c0_133, %c0_134] : memref<4x8x4xbf16, #tpu.memory_space<vmem>>, vector<1x8x4xbf16>
    %169 = vector.shape_cast %168 : vector<1x8x4xbf16> to vector<8x4xbf16>
    %cst_135 = arith.constant dense<0.000000e+00> : vector<8x128xf32>
    %170 = tpu.matmul %169, %152, %cst_135 {dimension_numbers = #tpu.dot_dimension_numbers<[1], [0], [0], [1], [0, 0, 1, 1], [], []>} : vector<8x4xbf16>, vector<4x128xbf16>, vector<8x128xf32> -> vector<8x128xf32>
    %171 = arith.truncf %170 : vector<8x128xf32> to vector<8x128xbf16>
    %c14 = arith.constant 14 : index
    %c0_136 = arith.constant 0 : index
    %c0_137 = arith.constant 0 : index
    %172 = vector.load %arg2[%c14, %c0_136, %c0_137] : memref<16x128x128xbf16, #tpu.memory_space<vmem>>, vector<1x128x128xbf16>
    %173 = vector.shape_cast %172 : vector<1x128x128xbf16> to vector<128x128xbf16>
    %cst_138 = arith.constant dense<0.000000e+00> : vector<8x128xf32>
    %174 = tpu.matmul %171, %173, %cst_138 {dimension_numbers = #tpu.dot_dimension_numbers<[1], [0], [0], [1], [0, 0, 1, 1], [], []>} : vector<8x128xbf16>, vector<128x128xbf16>, vector<8x128xf32> -> vector<8x128xf32>
    %175 = arith.addf %167, %174 : vector<8x128xf32>
    %c3_139 = arith.constant 3 : index
    %c0_140 = arith.constant 0 : index
    %c0_141 = arith.constant 0 : index
    %176 = vector.load %arg6[%c3_139, %c0_140, %c0_141] : memref<4x8x4xbf16, #tpu.memory_space<vmem>>, vector<1x8x4xbf16>
    %177 = vector.shape_cast %176 : vector<1x8x4xbf16> to vector<8x4xbf16>
    %cst_142 = arith.constant dense<0.000000e+00> : vector<8x128xf32>
    %178 = tpu.matmul %177, %152, %cst_142 {dimension_numbers = #tpu.dot_dimension_numbers<[1], [0], [0], [1], [0, 0, 1, 1], [], []>} : vector<8x4xbf16>, vector<4x128xbf16>, vector<8x128xf32> -> vector<8x128xf32>
    %179 = arith.truncf %178 : vector<8x128xf32> to vector<8x128xbf16>
    %c15 = arith.constant 15 : index
    %c0_143 = arith.constant 0 : index
    %c0_144 = arith.constant 0 : index
    %180 = vector.load %arg2[%c15, %c0_143, %c0_144] : memref<16x128x128xbf16, #tpu.memory_space<vmem>>, vector<1x128x128xbf16>
    %181 = vector.shape_cast %180 : vector<1x128x128xbf16> to vector<128x128xbf16>
    %cst_145 = arith.constant dense<0.000000e+00> : vector<8x128xf32>
    %182 = tpu.matmul %179, %181, %cst_145 {dimension_numbers = #tpu.dot_dimension_numbers<[1], [0], [0], [1], [0, 0, 1, 1], [], []>} : vector<8x128xbf16>, vector<128x128xbf16>, vector<8x128xf32> -> vector<8x128xf32>
    %183 = arith.addf %175, %182 : vector<8x128xf32>
    %c5_146 = arith.constant 5 : index
    %c0_147 = arith.constant 0 : index
    %184 = vector.load %arg11[%c5_146, %c0_147] : memref<8x128xf32, #tpu.memory_space<vmem>>, vector<1x128xf32>
    %185 = vector.broadcast %184 : vector<1x128xf32> to vector<8x128xf32>
    %186 = arith.addf %183, %185 : vector<8x128xf32>
    %187 = vector.extract_strided_slice %186 {offsets = [0, 0], sizes = [1, 128], strides = [1, 1]} : vector<8x128xf32> to vector<1x128xf32>
    %188 = vector.shape_cast %187 : vector<1x128xf32> to vector<1x1x128xf32>
    %c0_148 = arith.constant 0 : index
    %c0_149 = arith.constant 0 : index
    %c0_150 = arith.constant 0 : index
    %189 = vector.load %arg12[%c0_148, %c0_149, %c0_150] : memref<1x1x128xf32, #tpu.memory_space<vmem>>, vector<1x1x128xf32>
    tpu.vector_store %arg12[%c0_148, %c0_149, %c0_150], %188 {strides = array<i32>} : memref<1x1x128xf32, #tpu.memory_space<vmem>>, vector<1x1x128xf32>,
    return
  }
  func.func @transform_0(%arg0: i32) -> (i32, i32) {
    %c0_i32 = arith.constant 0 : i32
    %c0_i32_0 = arith.constant 0 : i32
    return %arg0, %c0_i32 : i32, i32
  }
  func.func @transform_1(%arg0: i32) -> (i32, i32, i32) {
    %c0_i32 = arith.constant 0 : i32
    %c0_i32_0 = arith.constant 0 : i32
    %c0_i32_1 = arith.constant 0 : i32
    %c0_i32_2 = arith.constant 0 : i32
    return %c0_i32, %c0_i32_0, %c0_i32_1 : i32, i32, i32
  }
  func.func @transform_2(%arg0: i32) -> (i32, i32, i32) {
    %c0_i32 = arith.constant 0 : i32
    %c0_i32_0 = arith.constant 0 : i32
    %c0_i32_1 = arith.constant 0 : i32
    %c0_i32_2 = arith.constant 0 : i32
    return %c0_i32, %c0_i32_0, %c0_i32_1 : i32, i32, i32
  }
  func.func @transform_3(%arg0: i32) -> (i32, i32, i32) {
    %c0_i32 = arith.constant 0 : i32
    %c0_i32_0 = arith.constant 0 : i32
    %c0_i32_1 = arith.constant 0 : i32
    %c0_i32_2 = arith.constant 0 : i32
    return %c0_i32, %c0_i32_0, %c0_i32_1 : i32, i32, i32
  }
  func.func @transform_4(%arg0: i32) -> (i32, i32, i32) {
    %c0_i32 = arith.constant 0 : i32
    %c0_i32_0 = arith.constant 0 : i32
    %c0_i32_1 = arith.constant 0 : i32
    %c0_i32_2 = arith.constant 0 : i32
    return %c0_i32, %c0_i32_0, %c0_i32_1 : i32, i32, i32
  }
  func.func @transform_5(%arg0: i32) -> (i32, i32, i32) {
    %c0_i32 = arith.constant 0 : i32
    %c0_i32_0 = arith.constant 0 : i32
    %c0_i32_1 = arith.constant 0 : i32
    %c0_i32_2 = arith.constant 0 : i32
    return %c0_i32, %c0_i32_0, %c0_i32_1 : i32, i32, i32
  }
  func.func @transform_6(%arg0: i32) -> (i32, i32) {
    %c0_i32 = arith.constant 0 : i32
    %c0_i32_0 = arith.constant 0 : i32
    %c0_i32_1 = arith.constant 0 : i32
    return %c0_i32, %c0_i32_0 : i32, i32
  }
  func.func @transform_7(%arg0: i32) -> (i32, i32) {
    %c0_i32 = arith.constant 0 : i32
    %c0_i32_0 = arith.constant 0 : i32
    %c0_i32_1 = arith.constant 0 : i32
    return %c0_i32, %c0_i32_0 : i32, i32
  }
  func.func @transform_8(%arg0: i32) -> (i32, i32) {
    %c0_i32 = arith.constant 0 : i32
    %c0_i32_0 = arith.constant 0 : i32
    %c0_i32_1 = arith.constant 0 : i32
    return %c0_i32, %c0_i32_0 : i32, i32
  }
  func.func @transform_9(%arg0: i32) -> (i32, i32) {
    %c0_i32 = arith.constant 0 : i32
    %c0_i32_0 = arith.constant 0 : i32
    %c0_i32_1 = arith.constant 0 : i32
    return %c0_i32, %c0_i32_0 : i32, i32
  }
  func.func @transform_10(%arg0: i32) -> (i32, i32) {
    %c0_i32 = arith.constant 0 : i32
    %c0_i32_0 = arith.constant 0 : i32
    %c0_i32_1 = arith.constant 0 : i32
    return %c0_i32, %c0_i32_0 : i32, i32
  }
  func.func @transform_11(%arg0: i32) -> (i32, i32, i32) {
    %c0_i32 = arith.constant 0 : i32
    %c0_i32_0 = arith.constant 0 : i32
    %c0_i32_1 = arith.constant 0 : i32
    return %arg0, %c0_i32, %c0_i32_0 : i32, i32, i32
  }
}

</mosaic_0001>

<llo_original>
// kernel: discriminator_forward.1
$region0: #{discriminator_forward.1}
  #allocation0 [shape = 'u32[]', space=smem, size = 0x4, offset = 0x4, fixed_abs, tag = 'smem constant byte address 0x4 - core index']
  #allocation1 [shape = 'u32[144,128]{1,0:T(1,128)}', space=vmem, size = 0x12000, scoped, tag = 'internal scratch']
  %s0 = inlined_call_operand.vmem [shape: bf16[64,128], index: 0, kind: input, shape index: {}]
  %s1 = inlined_call_operand.hbm [shape: bf16[16,128,128], index: 1, kind: input, shape index: {}]
  %s2 = inlined_call_operand.vmem [shape: bf16[4,16,32], index: 2, kind: input, shape index: {}]
  %s3 = inlined_call_operand.vmem [shape: bf16[4,8,16], index: 3, kind: input, shape index: {}]
  %s4 = inlined_call_operand.vmem [shape: bf16[4,4,8], index: 4, kind: input, shape index: {}]
  %s5 = inlined_call_operand.vmem [shape: bf16[4,8,4], index: 5, kind: input, shape index: {}]
  %s6 = inlined_call_operand.vmem [shape: f32[8,8], index: 6, kind: input, shape index: {}]
  %s7 = inlined_call_operand.vmem [shape: f32[4,4], index: 7, kind: input, shape index: {}]
  %s8 = inlined_call_operand.vmem [shape: f32[128,128], index: 8, kind: input, shape index: {}]
  %s9 = inlined_call_operand.vmem [shape: f32[128,128], index: 9, kind: input, shape index: {}]
  %s10 = inlined_call_operand.vmem [shape: f32[8,128], index: 10, kind: input, shape index: {}]
  %s11 = inlined_call_operand.vmem [shape: f32[2,1,128], index: 11, kind: output, shape index: {}]
  %s12 = sld [smem:[#allocation0]]
  $region81: #{discriminator_forward.1} parent=0
    _
  %s14 = ssub.s32 1, %s12
  %s15 = scalar_select 0, %s14, %s12
  $region1: #{discriminator_forward.1} parent=0
    #allocation2 [shape = 'u8[524288]{0}', space=vmem, size = 0x80000, scoped, tag = 'input window, operand 1, single buffered']
    #allocation3 [shape = 's32[2]{0}', space=sflag, size = 0x8, scoped, tag = 'scoped memory for discriminator_forward.1']
    %16 = vsyncpa [#allocation3], 0
    loop: start=0, step=1, limit=4
    $region2: #{discriminator_forward.1} parent=1 // loop_pre_header
      _
    $region3: #{discriminator_forward.1} parent=1 // loop_header
      %s18 = sphi 0, %s22
      %p19 = scmp.ge.s32.totalorder %s18, 4
      %s28 = sphi 0, %s30
      %s31 = sphi 0, %s28
      %s32 = sphi 0, %s31
      %s48 = sphi 0, %s32
      %s52 = sphi 0, %s52
      %s54 = sphi 0, %s52
      %s55 = sphi 0, %s54
      %s69 = sphi 0, %s55
      %s73 = sphi 0, %s73
      %s75 = sphi 0, %s73
      %s76 = sphi 0, %s75
      %s90 = sphi 0, %s76
      %s94 = sphi 0, %s94
      %s96 = sphi 0, %s94
      %s97 = sphi 0, %s96
      %s111 = sphi 0, %s97
      %s115 = sphi 0, %s115
      %s117 = sphi 0, %s115
      %s118 = sphi 0, %s117
      %s132 = sphi 0, %s118
      %s136 = sphi 0, %s136
      %s138 = sphi 0, %s136
      %s139 = sphi 0, %s138
      %s153 = sphi 0, %s139
      %s157 = sphi 0, %s157
      %s159 = sphi 0, %s157
      %s160 = sphi 0, %s159
      %s174 = sphi 0, %s160
      %s178 = sphi 0, %s178
      %s180 = sphi 0, %s178
      %s181 = sphi 0, %s180
      %s195 = sphi 0, %s181
      %s199 = sphi 0, %s199
      %s201 = sphi 0, %s199
      %s202 = sphi 0, %s201
      %s216 = sphi 0, %s202
      %s220 = sphi 0, %s220
      %s222 = sphi 0, %s220
      %s223 = sphi 0, %s222
      %s237 = sphi 0, %s223
      %s241 = sphi 0, %s241
      %s243 = sphi 0, %s241
      %s244 = sphi 0, %s243
      %s258 = sphi 0, %s244
      %s264 = sphi 0, %s266
      %s267 = sphi 0, %s264
      %s268 = sphi 0, %s267
      %s284 = sphi 0, %s268
    $region4: #{discriminator_forward.1} parent=1 // loop_header_branch
      %21 = sbr.rel (%p19) target = $region8
    $region5: #{discriminator_forward.1} parent=1 // loop_body
      %s23 = ssub.s32 %s18, 1
      %s24 = ssub.s32 %s18, 2
      %s25 = sadd.s32 %s18, 1
      %s26 = ssub.s32 %s18, %s25
      %p27 = scmp.eq.s32.totalorder %s26, 0
      %s29 = sadd.s32 %s28, 1
      %s30 = scalar_select %p27, %s28, %s29
      %p33 = pneg %p27
      %p34 = scmp.eq.s32.totalorder %s18, 1
      %p35 = por %p33, %p34
      %p36 = scmp.ne.s32.totalorder %s28, %s31
      %p37 = scmp.eq.s32.totalorder %s18, 0
      %p38 = por %p36, %p37
      %p39 = scmp.ne.s32.totalorder %s28, %s31
      %p40 = scmp.eq.s32.totalorder %s23, 1
      %p41 = por %p39, %p40
      %p42 = scmp.ne.s32.totalorder %s31, %s32
      %p43 = scmp.eq.s32.totalorder %s23, 0
      %p44 = por %p42, %p43
      %p45 = scmp.ne.s32.totalorder %s31, %s32
      %p46 = scmp.eq.s32.totalorder %s24, 1
      %p47 = por %p45, %p46
      %p49 = scmp.ne.s32.totalorder %s32, %s48
      %p50 = scmp.eq.s32.totalorder %s24, 0
      %p51 = por %p49, %p50
      %s53 = sadd.s32 %s52, 1
      %p56 = scmp.eq.s32.totalorder %s18, 1
      %p57 = scmp.ne.s32.totalorder %s52, %s54
      %p58 = scmp.eq.s32.totalorder %s18, 0
      %p59 = por %p57, %p58
      %p60 = scmp.ne.s32.totalorder %s52, %s54
      %p61 = scmp.eq.s32.totalorder %s23, 1
      %p62 = por %p60, %p61
      %p63 = scmp.ne.s32.totalorder %s54, %s55
      %p64 = scmp.eq.s32.totalorder %s23, 0
      %p65 = por %p63, %p64
      %p66 = scmp.ne.s32.totalorder %s54, %s55
      %p67 = scmp.eq.s32.totalorder %s24, 1
      %p68 = por %p66, %p67
      %p70 = scmp.ne.s32.totalorder %s55, %s69
      %p71 = scmp.eq.s32.totalorder %s24, 0
      %p72 = por %p70, %p71
      %s74 = sadd.s32 %s73, 1
      %p77 = scmp.eq.s32.totalorder %s18, 1
      %p78 = scmp.ne.s32.totalorder %s73, %s75
      %p79 = scmp.eq.s32.totalorder %s18, 0
      %p80 = por %p78, %p79
      %p81 = scmp.ne.s32.totalorder %s73, %s75
      %p82 = scmp.eq.s32.totalorder %s23, 1
      %p83 = por %p81, %p82
      %p84 = scmp.ne.s32.totalorder %s75, %s76
      %p85 = scmp.eq.s32.totalorder %s23, 0
      %p86 = por %p84, %p85
      %p87 = scmp.ne.s32.totalorder %s75, %s76
      %p88 = scmp.eq.s32.totalorder %s24, 1
      %p89 = por %p87, %p88
      %p91 = scmp.ne.s32.totalorder %s76, %s90
      %p92 = scmp.eq.s32.totalorder %s24, 0
      %p93 = por %p91, %p92
      %s95 = sadd.s32 %s94, 1
      %p98 = scmp.eq.s32.totalorder %s18, 1
      %p99 = scmp.ne.s32.totalorder %s94, %s96
      %p100 = scmp.eq.s32.totalorder %s18, 0
      %p101 = por %p99, %p100
      %p102 = scmp.ne.s32.totalorder %s94, %s96
      %p103 = scmp.eq.s32.totalorder %s23, 1
      %p104 = por %p102, %p103
      %p105 = scmp.ne.s32.totalorder %s96, %s97
      %p106 = scmp.eq.s32.totalorder %s23, 0
      %p107 = por %p105, %p106
      %p108 = scmp.ne.s32.totalorder %s96, %s97
      %p109 = scmp.eq.s32.totalorder %s24, 1
      %p110 = por %p108, %p109
      %p112 = scmp.ne.s32.totalorder %s97, %s111
      %p113 = scmp.eq.s32.totalorder %s24, 0
      %p114 = por %p112, %p113
      %s116 = sadd.s32 %s115, 1
      %p119 = scmp.eq.s32.totalorder %s18, 1
      %p120 = scmp.ne.s32.totalorder %s115, %s117
      %p121 = scmp.eq.s32.totalorder %s18, 0
      %p122 = por %p120, %p121
      %p123 = scmp.ne.s32.totalorder %s115, %s117
      %p124 = scmp.eq.s32.totalorder %s23, 1
      %p125 = por %p123, %p124
      %p126 = scmp.ne.s32.totalorder %s117, %s118
      %p127 = scmp.eq.s32.totalorder %s23, 0
      %p128 = por %p126, %p127
      %p129 = scmp.ne.s32.totalorder %s117, %s118
      %p130 = scmp.eq.s32.totalorder %s24, 1
      %p131 = por %p129, %p130
      %p133 = scmp.ne.s32.totalorder %s118, %s132
      %p134 = scmp.eq.s32.totalorder %s24, 0
      %p135 = por %p133, %p134
      %s137 = sadd.s32 %s136, 1
      %p140 = scmp.eq.s32.totalorder %s18, 1
      %p141 = scmp.ne.s32.totalorder %s136, %s138
      %p142 = scmp.eq.s32.totalorder %s18, 0
      %p143 = por %p141, %p142
      %p144 = scmp.ne.s32.totalorder %s136, %s138
      %p145 = scmp.eq.s32.totalorder %s23, 1
      %p146 = por %p144, %p145
      %p147 = scmp.ne.s32.totalorder %s138, %s139
      %p148 = scmp.eq.s32.totalorder %s23, 0
      %p149 = por %p147, %p148
      %p150 = scmp.ne.s32.totalorder %s138, %s139
      %p151 = scmp.eq.s32.totalorder %s24, 1
      %p152 = por %p150, %p151
      %p154 = scmp.ne.s32.totalorder %s139, %s153
      %p155 = scmp.eq.s32.totalorder %s24, 0
      %p156 = por %p154, %p155
      %s158 = sadd.s32 %s157, 1
      %p161 = scmp.eq.s32.totalorder %s18, 1
      %p162 = scmp.ne.s32.totalorder %s157, %s159
      %p163 = scmp.eq.s32.totalorder %s18, 0
      %p164 = por %p162, %p163
      %p165 = scmp.ne.s32.totalorder %s157, %s159
      %p166 = scmp.eq.s32.totalorder %s23, 1
      %p167 = por %p165, %p166
      %p168 = scmp.ne.s32.totalorder %s159, %s160
      %p169 = scmp.eq.s32.totalorder %s23, 0
      %p170 = por %p168, %p169
      %p171 = scmp.ne.s32.totalorder %s159, %s160
      %p172 = scmp.eq.s32.totalorder %s24, 1
      %p173 = por %p171, %p172
      %p175 = scmp.ne.s32.totalorder %s160, %s174
      %p176 = scmp.eq.s32.totalorder %s24, 0
      %p177 = por %p175, %p176
      %s179 = sadd.s32 %s178, 1
      %p182 = scmp.eq.s32.totalorder %s18, 1
      %p183 = scmp.ne.s32.totalorder %s178, %s180
      %p184 = scmp.eq.s32.totalorder %s18, 0
      %p185 = por %p183, %p184
      %p186 = scmp.ne.s32.totalorder %s178, %s180
      %p187 = scmp.eq.s32.totalorder %s23, 1
      %p188 = por %p186, %p187
      %p189 = scmp.ne.s32.totalorder %s180, %s181
      %p190 = scmp.eq.s32.totalorder %s23, 0
      %p191 = por %p189, %p190
      %p192 = scmp.ne.s32.totalorder %s180, %s181
      %p193 = scmp.eq.s32.totalorder %s24, 1
      %p194 = por %p192, %p193
      %p196 = scmp.ne.s32.totalorder %s181, %s195
      %p197 = scmp.eq.s32.totalorder %s24, 0
      %p198 = por %p196, %p197
      %s200 = sadd.s32 %s199, 1
      %p203 = scmp.eq.s32.totalorder %s18, 1
      %p204 = scmp.ne.s32.totalorder %s199, %s201
      %p205 = scmp.eq.s32.totalorder %s18, 0
      %p206 = por %p204, %p205
      %p207 = scmp.ne.s32.totalorder %s199, %s201
      %p208 = scmp.eq.s32.totalorder %s23, 1
      %p209 = por %p207, %p208
      %p210 = scmp.ne.s32.totalorder %s201, %s202
      %p211 = scmp.eq.s32.totalorder %s23, 0
      %p212 = por %p210, %p211
      %p213 = scmp.ne.s32.totalorder %s201, %s202
      %p214 = scmp.eq.s32.totalorder %s24, 1
      %p215 = por %p213, %p214
      %p217 = scmp.ne.s32.totalorder %s202, %s216
      %p218 = scmp.eq.s32.totalorder %s24, 0
      %p219 = por %p217, %p218
      %s221 = sadd.s32 %s220, 1
      %p224 = scmp.eq.s32.totalorder %s18, 1
      %p225 = scmp.ne.s32.totalorder %s220, %s222
      %p226 = scmp.eq.s32.totalorder %s18, 0
      %p227 = por %p225, %p226
      %p228 = scmp.ne.s32.totalorder %s220, %s222
      %p229 = scmp.eq.s32.totalorder %s23, 1
      %p230 = por %p228, %p229
      %p231 = scmp.ne.s32.totalorder %s222, %s223
      %p232 = scmp.eq.s32.totalorder %s23, 0
      %p233 = por %p231, %p232
      %p234 = scmp.ne.s32.totalorder %s222, %s223
      %p235 = scmp.eq.s32.totalorder %s24, 1
      %p236 = por %p234, %p235
      %p238 = scmp.ne.s32.totalorder %s223, %s237
      %p239 = scmp.eq.s32.totalorder %s24, 0
      %p240 = por %p238, %p239
      %s242 = sadd.s32 %s241, 1
      %p245 = scmp.eq.s32.totalorder %s18, 1
      %p246 = scmp.ne.s32.totalorder %s241, %s243
      %p247 = scmp.eq.s32.totalorder %s18, 0
      %p248 = por %p246, %p247
      %p249 = scmp.ne.s32.totalorder %s241, %s243
      %p250 = scmp.eq.s32.totalorder %s23, 1
      %p251 = por %p249, %p250
      %p252 = scmp.ne.s32.totalorder %s243, %s244
      %p253 = scmp.eq.s32.totalorder %s23, 0
      %p254 = por %p252, %p253
      %p255 = scmp.ne.s32.totalorder %s243, %s244
      %p256 = scmp.eq.s32.totalorder %s24, 1
      %p257 = por %p255, %p256
      %p259 = scmp.ne.s32.totalorder %s244, %s258
      %p260 = scmp.eq.s32.totalorder %s24, 0
      %p261 = por %p259, %p260
      %s262 = ssub.s32 %s18, %s25
      %p263 = scmp.eq.s32.totalorder %s262, 0
      %s265 = sadd.s32 %s264, 1
      %s266 = scalar_select %p263, %s264, %s265
      %p269 = pneg %p263
      %p270 = scmp.eq.s32.totalorder %s18, 1
      %p271 = por %p269, %p270
      %p272 = scmp.ne.s32.totalorder %s264, %s267
      %p273 = scmp.eq.s32.totalorder %s18, 0
      %p274 = por %p272, %p273
      %p275 = scmp.ne.s32.totalorder %s264, %s267
      %p276 = scmp.eq.s32.totalorder %s23, 1
      %p277 = por %p275, %p276
      %p278 = scmp.ne.s32.totalorder %s267, %s268
      %p279 = scmp.eq.s32.totalorder %s23, 0
      %p280 = por %p278, %p279
      %p281 = scmp.ne.s32.totalorder %s267, %s268
      %p282 = scmp.eq.s32.totalorder %s24, 1
      %p283 = por %p281, %p282
      %p285 = scmp.ne.s32.totalorder %s268, %s284
      %p286 = scmp.eq.s32.totalorder %s24, 0
      %p287 = por %p285, %p286
      %p288 = scmp.le.s32.totalorder 1, %s18
      %p289 = scmp.lt.s32.totalorder %s18, 3
      %p290 = pnand %p288, %p289
      %p291 = pneg %p290
      // Predicated region
      $region9: #{discriminator_forward.1} parent=5 // pred_check
        _
      $region10: #{discriminator_forward.1} parent=5 // pred_check_branch
        %293 = sbr.rel (%p290) target = $region12
      $region11: #{discriminator_forward.1} parent=5 // pred_region
        %s294 = ssub.s32 %s18, 1
        // Predicated region
        $region13: #{discriminator_forward.1} parent=11 // pred_check
          %p295 = pneg %p65
        $region14: #{discriminator_forward.1} parent=11 // pred_check_branch
          %297 = sbr.rel (%p295) target = $region16
        $region15: #{discriminator_forward.1} parent=11 // pred_region
          %s299 = ssub.s32 16384, 16384
          %300 = vsyncadd [#allocation3], %s299
          %s301 = sshll.u32 [#allocation2], 4
          %s302 = int_to_ptr.vmem [resolvable:$true] %s301
          %307 = dma.hbm_to_vmem [thread:$0]  %s1, 16384, %s302, [#allocation3], 64, 64, 4
        $region16: #{discriminator_forward.1} parent=11 // pred_fallthru
          _
        // Predicated region
        $region17: #{discriminator_forward.1} parent=11 // pred_check
          %p308 = pneg %p86
        $region18: #{discriminator_forward.1} parent=11 // pred_check_branch
          %310 = sbr.rel (%p308) target = $region20
        $region19: #{discriminator_forward.1} parent=11 // pred_region
          _
        $region20: #{discriminator_forward.1} parent=11 // pred_fallthru
          _
        // Predicated region
        $region21: #{discriminator_forward.1} parent=11 // pred_check
          %p311 = pneg %p107
        $region22: #{discriminator_forward.1} parent=11 // pred_check_branch
          %313 = sbr.rel (%p311) target = $region24
        $region23: #{discriminator_forward.1} parent=11 // pred_region
          _
        $region24: #{discriminator_forward.1} parent=11 // pred_fallthru
          _
        // Predicated region
        $region25: #{discriminator_forward.1} parent=11 // pred_check
          %p314 = pneg %p128
        $region26: #{discriminator_forward.1} parent=11 // pred_check_branch
          %316 = sbr.rel (%p314) target = $region28
        $region27: #{discriminator_forward.1} parent=11 // pred_region
          _
        $region28: #{discriminator_forward.1} parent=11 // pred_fallthru
          _
        // Predicated region
        $region29: #{discriminator_forward.1} parent=11 // pred_check
          %p317 = pneg %p149
        $region30: #{discriminator_forward.1} parent=11 // pred_check_branch
          %319 = sbr.rel (%p317) target = $region32
        $region31: #{discriminator_forward.1} parent=11 // pred_region
          _
        $region32: #{discriminator_forward.1} parent=11 // pred_fallthru
          _
        // Predicated region
        $region33: #{discriminator_forward.1} parent=11 // pred_check
          %p320 = pneg %p170
        $region34: #{discriminator_forward.1} parent=11 // pred_check_branch
          %322 = sbr.rel (%p320) target = $region36
        $region35: #{discriminator_forward.1} parent=11 // pred_region
          _
        $region36: #{discriminator_forward.1} parent=11 // pred_fallthru
          _
        // Predicated region
        $region37: #{discriminator_forward.1} parent=11 // pred_check
          %p323 = pneg %p191
        $region38: #{discriminator_forward.1} parent=11 // pred_check_branch
          %325 = sbr.rel (%p323) target = $region40
        $region39: #{discriminator_forward.1} parent=11 // pred_region
          _
        $region40: #{discriminator_forward.1} parent=11 // pred_fallthru
          _
        // Predicated region
        $region41: #{discriminator_forward.1} parent=11 // pred_check
          %p326 = pneg %p212
        $region42: #{discriminator_forward.1} parent=11 // pred_check_branch
          %328 = sbr.rel (%p326) target = $region44
        $region43: #{discriminator_forward.1} parent=11 // pred_region
          _
        $region44: #{discriminator_forward.1} parent=11 // pred_fallthru
          _
        // Predicated region
        $region45: #{discriminator_forward.1} parent=11 // pred_check
          %p329 = pneg %p233
        $region46: #{discriminator_forward.1} parent=11 // pred_check_branch
          %331 = sbr.rel (%p329) target = $region48
        $region47: #{discriminator_forward.1} parent=11 // pred_region
          _
        $region48: #{discriminator_forward.1} parent=11 // pred_fallthru
          _
        // Predicated region
        $region49: #{discriminator_forward.1} parent=11 // pred_check
          %p332 = pneg %p254
        $region50: #{discriminator_forward.1} parent=11 // pred_check_branch
          %334 = sbr.rel (%p332) target = $region52
        $region51: #{discriminator_forward.1} parent=11 // pred_region
          _
        $region52: #{discriminator_forward.1} parent=11 // pred_fallthru
          _
      $region12: #{discriminator_forward.1} parent=5 // pred_fallthru
        _
      %p335 = scmp.lt.s32.totalorder %s18, 2
      // Predicated region
      $region53: #{discriminator_forward.1} parent=5 // pred_check
        %p336 = pneg %p335
      $region54: #{discriminator_forward.1} parent=5 // pred_check_branch
        %338 = sbr.rel (%p336) target = $region56
      $region55: #{discriminator_forward.1} parent=5 // pred_region
        // Predicated region
        $region57: #{discriminator_forward.1} parent=55 // pred_check
          %p339 = pneg %p38
        $region58: #{discriminator_forward.1} parent=55 // pred_check_branch
          %341 = sbr.rel (%p339) target = $region60
        $region59: #{discriminator_forward.1} parent=55 // pred_region
          %s342 = smul.u32 4, %s18
          %p343 = scmp.lt.s32.totalorder %s342, 7
          %s344 = scalar_select %p343, %s342, 7
          %s345 = smul.addr %s344, 4
          %s346 = scalar_lea.vmem %s0, %s345
          %s347 = smul.u32 4, %s18
        $region60: #{discriminator_forward.1} parent=55 // pred_fallthru
          _
      $region56: #{discriminator_forward.1} parent=5 // pred_fallthru
        _
      %p348 = scmp.le.s32.totalorder 1, %s18
      %p349 = scmp.lt.s32.totalorder %s18, 3
      %p350 = pnand %p348, %p349
      %p351 = pneg %p350
      // Predicated region
      $region61: #{discriminator_forward.1} parent=5 // pred_check
        _
      $region62: #{discriminator_forward.1} parent=5 // pred_check_branch
        %353 = sbr.rel (%p350) target = $region64
      $region63: #{discriminator_forward.1} parent=5 // pred_region
        %s354 = ssub.s32 %s18, 1
        // Predicated region
        $region65: #{discriminator_forward.1} parent=63 // pred_check
          %p355 = pneg %p65
        $region66: #{discriminator_forward.1} parent=63 // pred_check_branch
          %357 = sbr.rel (%p355) target = $region68
        $region67: #{discriminator_forward.1} parent=63 // pred_region
          %358 = dma.done [#allocation3], 16384
        $region68: #{discriminator_forward.1} parent=63 // pred_fallthru
          _
        %s359 = smul.u32 4, %s23
        %p360 = scmp.lt.s32.totalorder %s359, 7
        %s361 = scalar_select %p360, %s359, 7
        %s362 = smul.addr %s361, 4
        %s363 = scalar_lea.vmem %s0, %s362
        %p364 = pneg %p44
        %p365 = pneg %p41
        %p366 = pneg %p65
        %p367 = pneg %p62
        %p368 = pneg %p86
        %p369 = pneg %p83
        %p370 = pneg %p107
        %p371 = pneg %p104
        %p372 = pneg %p128
        %p373 = pneg %p125
        %p374 = pneg %p149
        %p375 = pneg %p146
        %p376 = pneg %p170
        %p377 = pneg %p167
        %p378 = pneg %p191
        %p379 = pneg %p188
        %p380 = pneg %p212
        %p381 = pneg %p209
        %p382 = pneg %p233
        %p383 = pneg %p230
        %p384 = pneg %p254
        %p385 = pneg %p251
        %p386 = pneg %p280
        %p387 = pneg %p277
        %p388 = scmp.lt.s32.totalorder %s23, 1
        %s389 = scalar_select %p388, %s23, 1
        %s390 = scalar_lea.vmem %s11, %s389
        %s391 = smul.u32 4, %s23
        %p392 = scmp.lt.s32.totalorder %s391, 7
        %s393 = scalar_select %p392, %s391, 7
        %s394 = smul.addr %s393, 4
        %s395 = scalar_lea.vmem %s0, %s394
        %s396 = smul.u32 4, %s23
        %p397 = scmp.lt.s32.totalorder %s23, 1
        %s398 = scalar_select %p397, %s23, 1
        %s399 = scalar_lea.vmem %s11, %s398
        %v401 = vld [vmem:[%s395] sm:$0xf]
        %v402 = vld [vmem:[%s395 + $0x4] sm:$0xf]
        %v403 = vld [vmem:[%s395 + $0x8] sm:$0xf]
        %v404 = vld [vmem:[%s395 + $0xc] sm:$0xf]
        %v405 = vld [vmem:[%s2] sm:$0xf]
        %v406 = vld [vmem:[%s2 + $0x4] sm:$0xf]
        %v409 = vunpack.c.l.b16 %v405
        %v410 = vunpack.c.l.b16 %v406
        %v411 = vpack.c.b16 %v410, %v409
        %v416 = vunpack.c.l.b16 %v401
        %v417 = vunpack.c.l.b16 %v402
        %v418 = vunpack.c.l.b16 %v403
        %v419 = vunpack.c.l.b16 %v404
        %v420 = vpack.c.b16 %v417, %v416
        %v421 = vpack.c.b16 %v419, %v418
        %vm424 = vcmask 261120
        %v426 = vsel %vm424, %v411, 0
        %428 = vmatprep.subr.bf16.mxu0 0
        %429 = vmatpush1.bf16.msra.mxu0 %v420
        %430 = vmatprep.subr.bf16.mxu0 0
        %431 = vmatpush1.bf16.msra.mxu0 %v421
        %432 = vmatprep.subr.bf16.mxu0 0
        %433 = vmatpush1.bf16.msra.mxu0 0
        %434 = vmatprep.subr.bf16.mxu0 0
        %435 = vmatpush1.bf16.msra.mxu0 0
        %436 = vmatprep.subr.bf16.mxu0 0
        %437 = vmatpush1.bf16.msra.mxu0 0
        %438 = vmatprep.subr.bf16.mxu0 0
        %439 = vmatpush1.bf16.msra.mxu0 0
        %440 = vmatprep.subr.bf16.mxu0 0
        %441 = vmatpush1.bf16.msra.mxu0 0
        %442 = vmatprep.subr.bf16.mxu0 0
        %443 = vmatpush1.bf16.msra.mxu0 0
        %444 = vmatprep.subr.bf16.mxu0 0
        %445 = vmatpush1.bf16.msra.mxu0 0
        %446 = vmatprep.subr.bf16.mxu0 0
        %447 = vmatpush1.bf16.msra.mxu0 0
        %448 = vmatprep.subr.bf16.mxu0 0
        %449 = vmatpush1.bf16.msra.mxu0 0
        %450 = vmatprep.subr.bf16.mxu0 0
        %451 = vmatpush1.bf16.msra.mxu0 0
        %452 = vmatprep.subr.bf16.mxu0 0
        %453 = vmatpush1.bf16.msra.mxu0 0
        %454 = vmatprep.subr.bf16.mxu0 0
        %455 = vmatpush1.bf16.msra.mxu0 0
        %456 = vmatprep.subr.bf16.mxu0 0
        %457 = vmatpush1.bf16.msra.mxu0 0
        %458 = vmatprep.subr.bf16.mxu0 0
        %459 = vmatpush1.bf16.msra.mxu0 0
        %460 = vmatprep.mubr.bf16.mxu0 0
        %461 = vmatmul.mubr.bf16.gmra.mrb[0].mxu0 %v426
        %v462 = vpop.f32.mrb[0].mxu0
        %v463 = vadd.f32 0.0, %v462
        %v464 = vpop.f32.mrb[0].mxu0
        %v465 = vpop.f32.mrb[0].mxu0
        %v466 = vadd.f32 0.0, %v465
        %v467 = vpop.f32.mrb[0].mxu0
        %468 = vdwg.mxu0
        %v469 = vpack.c.bf16 %v466, %v463
        %v470 = vld [vmem:[#allocation2] sm:$0xf]
        %v471 = vld [vmem:[#allocation2 + $0x4] sm:$0xf]
        %v472 = vld [vmem:[#allocation2 + $0x8] sm:$0xf]
        %v473 = vld [vmem:[#allocation2 + $0xc] sm:$0xf]
        %v474 = vld [vmem:[#allocation2 + $0x10] sm:$0xf]
        %v475 = vld [vmem:[#allocation2 + $0x14] sm:$0xf]
        %v476 = vld [vmem:[#allocation2 + $0x18] sm:$0xf]
        %v477 = vld [vmem:[#allocation2 + $0x1c] sm:$0xf]
        %v478 = vld [vmem:[#allocation2 + $0x20] sm:$0xf]
        %v479 = vld [vmem:[#allocation2 + $0x24] sm:$0xf]
        %v480 = vld [vmem:[#allocation2 + $0x28] sm:$0xf]
        %v481 = vld [vmem:[#allocation2 + $0x2c] sm:$0xf]
        %v482 = vld [vmem:[#allocation2 + $0x30] sm:$0xf]
        %v483 = vld [vmem:[#allocation2 + $0x34] sm:$0xf]
        %v484 = vld [vmem:[#allocation2 + $0x38] sm:$0xf]
        %v485 = vld [vmem:[#allocation2 + $0x3c] sm:$0xf]
        %s486 = scalar_lea.vmem %s2, 8
        %v487 = vld [vmem:[%s486] sm:$0xf]
        %v488 = vld [vmem:[%s486 + $0x4] sm:$0xf]
        %v491 = vunpack.c.l.b16 %v487
        %v492 = vunpack.c.l.b16 %v488
        %v493 = vpack.c.b16 %v492, %v491
        %v495 = vsel %vm424, %v493, 0
        %497 = vmatprep.subr.bf16.mxu0 0
        %498 = vmatpush1.bf16.msra.mxu0 %v420
        %499 = vmatprep.subr.bf16.mxu0 0
        %500 = vmatpush1.bf16.msra.mxu0 %v421
        %501 = vmatprep.subr.bf16.mxu0 0
        %502 = vmatpush1.bf16.msra.mxu0 0
        %503 = vmatprep.subr.bf16.mxu0 0
        %504 = vmatpush1.bf16.msra.mxu0 0
        %505 = vmatprep.subr.bf16.mxu0 0
        %506 = vmatpush1.bf16.msra.mxu0 0
        %507 = vmatprep.subr.bf16.mxu0 0
        %508 = vmatpush1.bf16.msra.mxu0 0
        %509 = vmatprep.subr.bf16.mxu0 0
        %510 = vmatpush1.bf16.msra.mxu0 0
        %511 = vmatprep.subr.bf16.mxu0 0
        %512 = vmatpush1.bf16.msra.mxu0 0
        %513 = vmatprep.subr.bf16.mxu0 0
        %514 = vmatpush1.bf16.msra.mxu0 0
        %515 = vmatprep.subr.bf16.mxu0 0
        %516 = vmatpush1.bf16.msra.mxu0 0
        %517 = vmatprep.subr.bf16.mxu0 0
        %518 = vmatpush1.bf16.msra.mxu0 0
        %519 = vmatprep.subr.bf16.mxu0 0
        %520 = vmatpush1.bf16.msra.mxu0 0
        %521 = vmatprep.subr.bf16.mxu0 0
        %522 = vmatpush1.bf16.msra.mxu0 0
        %523 = vmatprep.subr.bf16.mxu0 0
        %524 = vmatpush1.bf16.msra.mxu0 0
        %525 = vmatprep.subr.bf16.mxu0 0
        %526 = vmatpush1.bf16.msra.mxu0 0
        %527 = vmatprep.subr.bf16.mxu0 0
        %528 = vmatpush1.bf16.msra.mxu0 0
        %529 = vmatprep.mubr.bf16.mxu0 0
        %530 = vmatmul.mubr.bf16.gmra.mrb[0].mxu0 %v495
        %v531 = vpop.f32.mrb[0].mxu0
        %v532 = vadd.f32 0.0, %v531
        %v533 = vpop.f32.mrb[0].mxu0
        %v534 = vpop.f32.mrb[0].mxu0
        %v535 = vadd.f32 0.0, %v534
        %v536 = vpop.f32.mrb[0].mxu0
        %537 = vdwg.mxu0
        %v538 = vpack.c.bf16 %v535, %v532
        %s539 = scalar_lea.vmem [#allocation2], 64
        %v540 = vld [vmem:[%s539] sm:$0xf]
        %v541 = vld [vmem:[%s539 + $0x4] sm:$0xf]
        %v542 = vld [vmem:[%s539 + $0x8] sm:$0xf]
        %v543 = vld [vmem:[%s539 + $0xc] sm:$0xf]
        %v544 = vld [vmem:[%s539 + $0x10] sm:$0xf]
        %v545 = vld [vmem:[%s539 + $0x14] sm:$0xf]
        %v546 = vld [vmem:[%s539 + $0x18] sm:$0xf]
        %v547 = vld [vmem:[%s539 + $0x1c] sm:$0xf]
        %v548 = vld [vmem:[%s539 + $0x20] sm:$0xf]
        %v549 = vld [vmem:[%s539 + $0x24] sm:$0xf]
        %v550 = vld [vmem:[%s539 + $0x28] sm:$0xf]
        %v551 = vld [vmem:[%s539 + $0x2c] sm:$0xf]
        %v552 = vld [vmem:[%s539 + $0x30] sm:$0xf]
        %v553 = vld [vmem:[%s539 + $0x34] sm:$0xf]
        %v554 = vld [vmem:[%s539 + $0x38] sm:$0xf]
        %v555 = vld [vmem:[%s539 + $0x3c] sm:$0xf]
        %v572 = vunpack.c.l.b16 %v540
        %v573 = vunpack.c.l.b16 %v541
        %v574 = vunpack.c.l.b16 %v542
        %v575 = vunpack.c.l.b16 %v543
        %v576 = vunpack.c.l.b16 %v544
        %v577 = vunpack.c.l.b16 %v545
        %v578 = vunpack.c.l.b16 %v546
        %v579 = vunpack.c.l.b16 %v547
        %v580 = vunpack.c.l.b16 %v548
        %v581 = vunpack.c.l.b16 %v549
        %v582 = vunpack.c.l.b16 %v550
        %v583 = vunpack.c.l.b16 %v551
        %v584 = vunpack.c.l.b16 %v552
        %v585 = vunpack.c.l.b16 %v553
        %v586 = vunpack.c.l.b16 %v554
        %v587 = vunpack.c.l.b16 %v555
        %v588 = vpack.c.b16 %v573, %v572
        %v589 = vpack.c.b16 %v575, %v574
        %v590 = vpack.c.b16 %v577, %v576
        %v591 = vpack.c.b16 %v579, %v578
        %v592 = vpack.c.b16 %v581, %v580
        %v593 = vpack.c.b16 %v583, %v582
        %v594 = vpack.c.b16 %v585, %v584
        %v595 = vpack.c.b16 %v587, %v586
        %604 = vmatprep.subr.bf16.mxu0 0
        %605 = vmatpush1.bf16.msra.mxu0 %v588
        %606 = vmatprep.subr.bf16.mxu0 0
        %607 = vmatpush1.bf16.msra.mxu0 %v589
        %608 = vmatprep.subr.bf16.mxu0 0
        %609 = vmatpush1.bf16.msra.mxu0 %v590
        %610 = vmatprep.subr.bf16.mxu0 0
        %611 = vmatpush1.bf16.msra.mxu0 %v591
        %612 = vmatprep.subr.bf16.mxu0 0
        %613 = vmatpush1.bf16.msra.mxu0 %v592
        %614 = vmatprep.subr.bf16.mxu0 0
        %615 = vmatpush1.bf16.msra.mxu0 %v593
        %616 = vmatprep.subr.bf16.mxu0 0
        %617 = vmatpush1.bf16.msra.mxu0 %v594
        %618 = vmatprep.subr.bf16.mxu0 0
        %619 = vmatpush1.bf16.msra.mxu0 %v595
        %620 = vmatprep.subr.bf16.mxu0 0
        %621 = vmatpush1.bf16.msra.mxu0 0
        %622 = vmatprep.subr.bf16.mxu0 0
        %623 = vmatpush1.bf16.msra.mxu0 0
        %624 = vmatprep.subr.bf16.mxu0 0
        %625 = vmatpush1.bf16.msra.mxu0 0
        %626 = vmatprep.subr.bf16.mxu0 0
        %627 = vmatpush1.bf16.msra.mxu0 0
        %628 = vmatprep.subr.bf16.mxu0 0
        %629 = vmatpush1.bf16.msra.mxu0 0
        %630 = vmatprep.subr.bf16.mxu0 0
        %631 = vmatpush1.bf16.msra.mxu0 0
        %632 = vmatprep.subr.bf16.mxu0 0
        %633 = vmatpush1.bf16.msra.mxu0 0
        %634 = vmatprep.subr.bf16.mxu0 0
        %635 = vmatpush1.bf16.msra.mxu0 0
        %636 = vmatprep.mubr.bf16.mxu0 0
        %637 = vmatmul.mubr.bf16.gmra.mrb[0].mxu0 %v538
        %v638 = vpop.f32.mrb[0].mxu0
        %v639 = vadd.f32 0.0, %v638
        %v640 = vpop.f32.mrb[0].mxu0
        %v641 = vpop.f32.mrb[0].mxu0
        %v642 = vadd.f32 0.0, %v641
        %v643 = vpop.f32.mrb[0].mxu0
        %644 = vdwg.mxu0
        %v661 = vunpack.c.l.b16 %v470
        %v662 = vunpack.c.l.b16 %v471
        %v663 = vunpack.c.l.b16 %v472
        %v664 = vunpack.c.l.b16 %v473
        %v665 = vunpack.c.l.b16 %v474
        %v666 = vunpack.c.l.b16 %v475
        %v667 = vunpack.c.l.b16 %v476
        %v668 = vunpack.c.l.b16 %v477
        %v669 = vunpack.c.l.b16 %v478
        %v670 = vunpack.c.l.b16 %v479
        %v671 = vunpack.c.l.b16 %v480
        %v672 = vunpack.c.l.b16 %v481
        %v673 = vunpack.c.l.b16 %v482
        %v674 = vunpack.c.l.b16 %v483
        %v675 = vunpack.c.l.b16 %v484
        %v676 = vunpack.c.l.b16 %v485
        %v677 = vpack.c.b16 %v662, %v661
        %v678 = vpack.c.b16 %v664, %v663
        %v679 = vpack.c.b16 %v666, %v665
        %v680 = vpack.c.b16 %v668, %v667
        %v681 = vpack.c.b16 %v670, %v669
        %v682 = vpack.c.b16 %v672, %v671
        %v683 = vpack.c.b16 %v674, %v673
        %v684 = vpack.c.b16 %v676, %v675
        %693 = vmatprep.subr.bf16.mxu0 0
        %694 = vmatpush1.bf16.msra.mxu0 %v677
        %695 = vmatprep.subr.bf16.mxu0 0
        %696 = vmatpush1.bf16.msra.mxu0 %v678
        %697 = vmatprep.subr.bf16.mxu0 0
        %698 = vmatpush1.bf16.msra.mxu0 %v679
        %699 = vmatprep.subr.bf16.mxu0 0
        %700 = vmatpush1.bf16.msra.mxu0 %v680
        %701 = vmatprep.subr.bf16.mxu0 0
        %702 = vmatpush1.bf16.msra.mxu0 %v681
        %703 = vmatprep.subr.bf16.mxu0 0
        %704 = vmatpush1.bf16.msra.mxu0 %v682
        %705 = vmatprep.subr.bf16.mxu0 0
        %706 = vmatpush1.bf16.msra.mxu0 %v683
        %707 = vmatprep.subr.bf16.mxu0 0
        %708 = vmatpush1.bf16.msra.mxu0 %v684
        %709 = vmatprep.subr.bf16.mxu0 0
        %710 = vmatpush1.bf16.msra.mxu0 0
        %711 = vmatprep.subr.bf16.mxu0 0
        %712 = vmatpush1.bf16.msra.mxu0 0
        %713 = vmatprep.subr.bf16.mxu0 0
        %714 = vmatpush1.bf16.msra.mxu0 0
        %715 = vmatprep.subr.bf16.mxu0 0
        %716 = vmatpush1.bf16.msra.mxu0 0
        %717 = vmatprep.subr.bf16.mxu0 0
        %718 = vmatpush1.bf16.msra.mxu0 0
        %719 = vmatprep.subr.bf16.mxu0 0
        %720 = vmatpush1.bf16.msra.mxu0 0
        %721 = vmatprep.subr.bf16.mxu0 0
        %722 = vmatpush1.bf16.msra.mxu0 0
        %723 = vmatprep.subr.bf16.mxu0 0
        %724 = vmatpush1.bf16.msra.mxu0 0
        %725 = vmatprep.mubr.bf16.mxu0 0
        %726 = vmatmul.mubr.bf16.gmra.mrb[0].mxu0 %v469
        %v727 = vpop.f32.mrb[0].mxu0
        %v728 = vadd.f32 %v639, %v727
        %v729 = vpop.f32.mrb[0].mxu0
        %v730 = vpop.f32.mrb[0].mxu0
        %v731 = vadd.f32 %v642, %v730
        %v732 = vpop.f32.mrb[0].mxu0
        %733 = vdwg.mxu0
        %s734 = scalar_lea.vmem %s2, 16
        %v735 = vld [vmem:[%s734] sm:$0xf]
        %v736 = vld [vmem:[%s734 + $0x4] sm:$0xf]
        %v739 = vunpack.c.l.b16 %v735
        %v740 = vunpack.c.l.b16 %v736
        %v741 = vpack.c.b16 %v740, %v739
        %v743 = vsel %vm424, %v741, 0
        %745 = vmatprep.subr.bf16.mxu0 0
        %746 = vmatpush1.bf16.msra.mxu0 %v420
        %747 = vmatprep.subr.bf16.mxu0 0
        %748 = vmatpush1.bf16.msra.mxu0 %v421
        %749 = vmatprep.subr.bf16.mxu0 0
        %750 = vmatpush1.bf16.msra.mxu0 0
        %751 = vmatprep.subr.bf16.mxu0 0
        %752 = vmatpush1.bf16.msra.mxu0 0
        %753 = vmatprep.subr.bf16.mxu0 0
        %754 = vmatpush1.bf16.msra.mxu0 0
        %755 = vmatprep.subr.bf16.mxu0 0
        %756 = vmatpush1.bf16.msra.mxu0 0
        %757 = vmatprep.subr.bf16.mxu0 0
        %758 = vmatpush1.bf16.msra.mxu0 0
        %759 = vmatprep.subr.bf16.mxu0 0
        %760 = vmatpush1.bf16.msra.mxu0 0
        %761 = vmatprep.subr.bf16.mxu0 0
        %762 = vmatpush1.bf16.msra.mxu0 0
        %763 = vmatprep.subr.bf16.mxu0 0
        %764 = vmatpush1.bf16.msra.mxu0 0
        %765 = vmatprep.subr.bf16.mxu0 0
        %766 = vmatpush1.bf16.msra.mxu0 0
        %767 = vmatprep.subr.bf16.mxu0 0
        %768 = vmatpush1.bf16.msra.mxu0 0
        %769 = vmatprep.subr.bf16.mxu0 0
        %770 = vmatpush1.bf16.msra.mxu0 0
        %771 = vmatprep.subr.bf16.mxu0 0
        %772 = vmatpush1.bf16.msra.mxu0 0
        %773 = vmatprep.subr.bf16.mxu0 0
        %774 = vmatpush1.bf16.msra.mxu0 0
        %775 = vmatprep.subr.bf16.mxu0 0
        %776 = vmatpush1.bf16.msra.mxu0 0
        %777 = vmatprep.mubr.bf16.mxu0 0
        %778 = vmatmul.mubr.bf16.gmra.mrb[0].mxu0 %v743
        %v779 = vpop.f32.mrb[0].mxu0
        %v780 = vadd.f32 0.0, %v779
        %v781 = vpop.f32.mrb[0].mxu0
        %v782 = vpop.f32.mrb[0].mxu0
        %v783 = vadd.f32 0.0, %v782
        %v784 = vpop.f32.mrb[0].mxu0
        %785 = vdwg.mxu0
        %v786 = vpack.c.bf16 %v783, %v780
        %s787 = scalar_lea.vmem [#allocation2], 128
        %v788 = vld [vmem:[%s787] sm:$0xf]
        %v789 = vld [vmem:[%s787 + $0x4] sm:$0xf]
        %v790 = vld [vmem:[%s787 + $0x8] sm:$0xf]
        %v791 = vld [vmem:[%s787 + $0xc] sm:$0xf]
        %v792 = vld [vmem:[%s787 + $0x10] sm:$0xf]
        %v793 = vld [vmem:[%s787 + $0x14] sm:$0xf]
        %v794 = vld [vmem:[%s787 + $0x18] sm:$0xf]
        %v795 = vld [vmem:[%s787 + $0x1c] sm:$0xf]
        %v796 = vld [vmem:[%s787 + $0x20] sm:$0xf]
        %v797 = vld [vmem:[%s787 + $0x24] sm:$0xf]
        %v798 = vld [vmem:[%s787 + $0x28] sm:$0xf]
        %v799 = vld [vmem:[%s787 + $0x2c] sm:$0xf]
        %v800 = vld [vmem:[%s787 + $0x30] sm:$0xf]
        %v801 = vld [vmem:[%s787 + $0x34] sm:$0xf]
        %v802 = vld [vmem:[%s787 + $0x38] sm:$0xf]
        %v803 = vld [vmem:[%s787 + $0x3c] sm:$0xf]
        %v820 = vunpack.c.l.b16 %v788
        %v821 = vunpack.c.l.b16 %v789
        %v822 = vunpack.c.l.b16 %v790
        %v823 = vunpack.c.l.b16 %v791
        %v824 = vunpack.c.l.b16 %v792
        %v825 = vunpack.c.l.b16 %v793
        %v826 = vunpack.c.l.b16 %v794
        %v827 = vunpack.c.l.b16 %v795
        %v828 = vunpack.c.l.b16 %v796
        %v829 = vunpack.c.l.b16 %v797
        %v830 = vunpack.c.l.b16 %v798
        %v831 = vunpack.c.l.b16 %v799
        %v832 = vunpack.c.l.b16 %v800
        %v833 = vunpack.c.l.b16 %v801
        %v834 = vunpack.c.l.b16 %v802
        %v835 = vunpack.c.l.b16 %v803
        %v836 = vpack.c.b16 %v821, %v820
        %v837 = vpack.c.b16 %v823, %v822
        %v838 = vpack.c.b16 %v825, %v824
        %v839 = vpack.c.b16 %v827, %v826
        %v840 = vpack.c.b16 %v829, %v828
        %v841 = vpack.c.b16 %v831, %v830
        %v842 = vpack.c.b16 %v833, %v832
        %v843 = vpack.c.b16 %v835, %v834
        %852 = vmatprep.subr.bf16.mxu0 0
        %853 = vmatpush1.bf16.msra.mxu0 %v836
        %854 = vmatprep.subr.bf16.mxu0 0
        %855 = vmatpush1.bf16.msra.mxu0 %v837
        %856 = vmatprep.subr.bf16.mxu0 0
        %857 = vmatpush1.bf16.msra.mxu0 %v838
        %858 = vmatprep.subr.bf16.mxu0 0
        %859 = vmatpush1.bf16.msra.mxu0 %v839
        %860 = vmatprep.subr.bf16.mxu0 0
        %861 = vmatpush1.bf16.msra.mxu0 %v840
        %862 = vmatprep.subr.bf16.mxu0 0
        %863 = vmatpush1.bf16.msra.mxu0 %v841
        %864 = vmatprep.subr.bf16.mxu0 0
        %865 = vmatpush1.bf16.msra.mxu0 %v842
        %866 = vmatprep.subr.bf16.mxu0 0
        %867 = vmatpush1.bf16.msra.mxu0 %v843
        %868 = vmatprep.subr.bf16.mxu0 0
        %869 = vmatpush1.bf16.msra.mxu0 0
        %870 = vmatprep.subr.bf16.mxu0 0
        %871 = vmatpush1.bf16.msra.mxu0 0
        %872 = vmatprep.subr.bf16.mxu0 0
        %873 = vmatpush1.bf16.msra.mxu0 0
        %874 = vmatprep.subr.bf16.mxu0 0
        %875 = vmatpush1.bf16.msra.mxu0 0
        %876 = vmatprep.subr.bf16.mxu0 0
        %877 = vmatpush1.bf16.msra.mxu0 0
        %878 = vmatprep.subr.bf16.mxu0 0
        %879 = vmatpush1.bf16.msra.mxu0 0
        %880 = vmatprep.subr.bf16.mxu0 0
        %881 = vmatpush1.bf16.msra.mxu0 0
        %882 = vmatprep.subr.bf16.mxu0 0
        %883 = vmatpush1.bf16.msra.mxu0 0
        %884 = vmatprep.mubr.bf16.mxu0 0
        %885 = vmatmul.mubr.bf16.gmra.mrb[0].mxu0 %v786
        %v886 = vpop.f32.mrb[0].mxu0
        %v887 = vadd.f32 0.0, %v886
        %v888 = vpop.f32.mrb[0].mxu0
        %v889 = vpop.f32.mrb[0].mxu0
        %v890 = vadd.f32 0.0, %v889
        %v891 = vpop.f32.mrb[0].mxu0
        %892 = vdwg.mxu0
        %v893 = vadd.f32 %v728, %v887
        %v894 = vadd.f32 %v731, %v890
        %s895 = scalar_lea.vmem %s2, 24
        %v896 = vld [vmem:[%s895] sm:$0xf]
        %v897 = vld [vmem:[%s895 + $0x4] sm:$0xf]
        %v900 = vunpack.c.l.b16 %v896
        %v901 = vunpack.c.l.b16 %v897
        %v902 = vpack.c.b16 %v901, %v900
        %v904 = vsel %vm424, %v902, 0
        %906 = vmatprep.subr.bf16.mxu0 0
        %907 = vmatpush1.bf16.msra.mxu0 %v420
        %908 = vmatprep.subr.bf16.mxu0 0
        %909 = vmatpush1.bf16.msra.mxu0 %v421
        %910 = vmatprep.subr.bf16.mxu0 0
        %911 = vmatpush1.bf16.msra.mxu0 0
        %912 = vmatprep.subr.bf16.mxu0 0
        %913 = vmatpush1.bf16.msra.mxu0 0
        %914 = vmatprep.subr.bf16.mxu0 0
        %915 = vmatpush1.bf16.msra.mxu0 0
        %916 = vmatprep.subr.bf16.mxu0 0
        %917 = vmatpush1.bf16.msra.mxu0 0
        %918 = vmatprep.subr.bf16.mxu0 0
        %919 = vmatpush1.bf16.msra.mxu0 0
        %920 = vmatprep.subr.bf16.mxu0 0
        %921 = vmatpush1.bf16.msra.mxu0 0
        %922 = vmatprep.subr.bf16.mxu0 0
        %923 = vmatpush1.bf16.msra.mxu0 0
        %924 = vmatprep.subr.bf16.mxu0 0
        %925 = vmatpush1.bf16.msra.mxu0 0
        %926 = vmatprep.subr.bf16.mxu0 0
        %927 = vmatpush1.bf16.msra.mxu0 0
        %928 = vmatprep.subr.bf16.mxu0 0
        %929 = vmatpush1.bf16.msra.mxu0 0
        %930 = vmatprep.subr.bf16.mxu0 0
        %931 = vmatpush1.bf16.msra.mxu0 0
        %932 = vmatprep.subr.bf16.mxu0 0
        %933 = vmatpush1.bf16.msra.mxu0 0
        %934 = vmatprep.subr.bf16.mxu0 0
        %935 = vmatpush1.bf16.msra.mxu0 0
        %936 = vmatprep.subr.bf16.mxu0 0
        %937 = vmatpush1.bf16.msra.mxu0 0
        %938 = vmatprep.mubr.bf16.mxu0 0
        %939 = vmatmul.mubr.bf16.gmra.mrb[0].mxu0 %v904
        %v940 = vpop.f32.mrb[0].mxu0
        %v941 = vadd.f32 0.0, %v940
        %v942 = vpop.f32.mrb[0].mxu0
        %v943 = vpop.f32.mrb[0].mxu0
        %v944 = vadd.f32 0.0, %v943
        %v945 = vpop.f32.mrb[0].mxu0
        %946 = vdwg.mxu0
        %v947 = vpack.c.bf16 %v944, %v941
        %s948 = scalar_lea.vmem [#allocation2], 192
        %v949 = vld [vmem:[%s948] sm:$0xf]
        %v950 = vld [vmem:[%s948 + $0x4] sm:$0xf]
        %v951 = vld [vmem:[%s948 + $0x8] sm:$0xf]
        %v952 = vld [vmem:[%s948 + $0xc] sm:$0xf]
        %v953 = vld [vmem:[%s948 + $0x10] sm:$0xf]
        %v954 = vld [vmem:[%s948 + $0x14] sm:$0xf]
        %v955 = vld [vmem:[%s948 + $0x18] sm:$0xf]
        %v956 = vld [vmem:[%s948 + $0x1c] sm:$0xf]
        %v957 = vld [vmem:[%s948 + $0x20] sm:$0xf]
        %v958 = vld [vmem:[%s948 + $0x24] sm:$0xf]
        %v959 = vld [vmem:[%s948 + $0x28] sm:$0xf]
        %v960 = vld [vmem:[%s948 + $0x2c] sm:$0xf]
        %v961 = vld [vmem:[%s948 + $0x30] sm:$0xf]
        %v962 = vld [vmem:[%s948 + $0x34] sm:$0xf]
        %v963 = vld [vmem:[%s948 + $0x38] sm:$0xf]
        %v964 = vld [vmem:[%s948 + $0x3c] sm:$0xf]
        %v981 = vunpack.c.l.b16 %v949
        %v982 = vunpack.c.l.b16 %v950
        %v983 = vunpack.c.l.b16 %v951
        %v984 = vunpack.c.l.b16 %v952
        %v985 = vunpack.c.l.b16 %v953
        %v986 = vunpack.c.l.b16 %v954
        %v987 = vunpack.c.l.b16 %v955
        %v988 = vunpack.c.l.b16 %v956
        %v989 = vunpack.c.l.b16 %v957
        %v990 = vunpack.c.l.b16 %v958
        %v991 = vunpack.c.l.b16 %v959
        %v992 = vunpack.c.l.b16 %v960
        %v993 = vunpack.c.l.b16 %v961
        %v994 = vunpack.c.l.b16 %v962
        %v995 = vunpack.c.l.b16 %v963
        %v996 = vunpack.c.l.b16 %v964
        %v997 = vpack.c.b16 %v982, %v981
        %v998 = vpack.c.b16 %v984, %v983
        %v999 = vpack.c.b16 %v986, %v985
        %v1000 = vpack.c.b16 %v988, %v987
        %v1001 = vpack.c.b16 %v990, %v989
        %v1002 = vpack.c.b16 %v992, %v991
        %v1003 = vpack.c.b16 %v994, %v993
        %v1004 = vpack.c.b16 %v996, %v995
        %1013 = vmatprep.subr.bf16.mxu0 0
        %1014 = vmatpush1.bf16.msra.mxu0 %v997
        %1015 = vmatprep.subr.bf16.mxu0 0
        %1016 = vmatpush1.bf16.msra.mxu0 %v998
        %1017 = vmatprep.subr.bf16.mxu0 0
        %1018 = vmatpush1.bf16.msra.mxu0 %v999
        %1019 = vmatprep.subr.bf16.mxu0 0
        %1020 = vmatpush1.bf16.msra.mxu0 %v1000
        %1021 = vmatprep.subr.bf16.mxu0 0
        %1022 = vmatpush1.bf16.msra.mxu0 %v1001
        %1023 = vmatprep.subr.bf16.mxu0 0
        %1024 = vmatpush1.bf16.msra.mxu0 %v1002
        %1025 = vmatprep.subr.bf16.mxu0 0
        %1026 = vmatpush1.bf16.msra.mxu0 %v1003
        %1027 = vmatprep.subr.bf16.mxu0 0
        %1028 = vmatpush1.bf16.msra.mxu0 %v1004
        %1029 = vmatprep.subr.bf16.mxu0 0
        %1030 = vmatpush1.bf16.msra.mxu0 0
        %1031 = vmatprep.subr.bf16.mxu0 0
        %1032 = vmatpush1.bf16.msra.mxu0 0
        %1033 = vmatprep.subr.bf16.mxu0 0
        %1034 = vmatpush1.bf16.msra.mxu0 0
        %1035 = vmatprep.subr.bf16.mxu0 0
        %1036 = vmatpush1.bf16.msra.mxu0 0
        %1037 = vmatprep.subr.bf16.mxu0 0
        %1038 = vmatpush1.bf16.msra.mxu0 0
        %1039 = vmatprep.subr.bf16.mxu0 0
        %1040 = vmatpush1.bf16.msra.mxu0 0
        %1041 = vmatprep.subr.bf16.mxu0 0
        %1042 = vmatpush1.bf16.msra.mxu0 0
        %1043 = vmatprep.subr.bf16.mxu0 0
        %1044 = vmatpush1.bf16.msra.mxu0 0
        %1045 = vmatprep.mubr.bf16.mxu0 0
        %1046 = vmatmul.mubr.bf16.gmra.mrb[0].mxu0 %v947
        %v1047 = vpop.f32.mrb[0].mxu0
        %v1048 = vadd.f32 0.0, %v1047
        %v1049 = vpop.f32.mrb[0].mxu0
        %v1050 = vpop.f32.mrb[0].mxu0
        %v1051 = vadd.f32 0.0, %v1050
        %v1052 = vpop.f32.mrb[0].mxu0
        %1053 = vdwg.mxu0
        %v1054 = vadd.f32 %v893, %v1048
        %v1055 = vadd.f32 %v894, %v1051
        %v1056 = vld [vmem:[%s10] sm:$0x1]
        %v1057 = vlaneseq
        %v1058 = vshrl.u32 %v1057, 7
        %v1059 = vsub.s32 0, %v1058
        %v1060 = vrot.slane %v1056, %v1059
        %v1061 = vadd.f32 %v1054, %v1060
        %v1062 = vadd.f32 %v1055, %v1060
        %v1063 = vmul.f32 %v1061, 0.2
        %v1064 = vmul.f32 %v1062, 0.2
        %v1065 = vmax.f32 %v1061, %v1063
        %v1066 = vmax.f32 %v1062, %v1064
        %v1067 = vpack.c.bf16 %v1066, %v1065
        %v1068 = vld [vmem:[%s3] sm:$0xf]
        %vm1069 = vcmask 130048
        %v1071 = vsel %vm1069, %v1068, 0
        %1073 = vmatprep.subr.bf16.mxu0 0
        %1074 = vmatpush1.bf16.msra.mxu0 %v1067
        %1075 = vmatprep.subr.bf16.mxu0 0
        %1076 = vmatpush1.bf16.msra.mxu0 0
        %1077 = vmatprep.subr.bf16.mxu0 0
        %1078 = vmatpush1.bf16.msra.mxu0 0
        %1079 = vmatprep.subr.bf16.mxu0 0
        %1080 = vmatpush1.bf16.msra.mxu0 0
        %1081 = vmatprep.subr.bf16.mxu0 0
        %1082 = vmatpush1.bf16.msra.mxu0 0
        %1083 = vmatprep.subr.bf16.mxu0 0
        %1084 = vmatpush1.bf16.msra.mxu0 0
        %1085 = vmatprep.subr.bf16.mxu0 0
        %1086 = vmatpush1.bf16.msra.mxu0 0
        %1087 = vmatprep.subr.bf16.mxu0 0
        %1088 = vmatpush1.bf16.msra.mxu0 0
        %1089 = vmatprep.subr.bf16.mxu0 0
        %1090 = vmatpush1.bf16.msra.mxu0 0
        %1091 = vmatprep.subr.bf16.mxu0 0
        %1092 = vmatpush1.bf16.msra.mxu0 0
        %1093 = vmatprep.subr.bf16.mxu0 0
        %1094 = vmatpush1.bf16.msra.mxu0 0
        %1095 = vmatprep.subr.bf16.mxu0 0
        %1096 = vmatpush1.bf16.msra.mxu0 0
        %1097 = vmatprep.subr.bf16.mxu0 0
        %1098 = vmatpush1.bf16.msra.mxu0 0
        %1099 = vmatprep.subr.bf16.mxu0 0
        %1100 = vmatpush1.bf16.msra.mxu0 0
        %1101 = vmatprep.subr.bf16.mxu0 0
        %1102 = vmatpush1.bf16.msra.mxu0 0
        %1103 = vmatprep.subr.bf16.mxu0 0
        %1104 = vmatpush1.bf16.msra.mxu0 0
        %1105 = vmatprep.mubr.bf16.mxu0 0
        %1106 = vmatmul.mubr.bf16.gmra.mrb[0].mxu0 %v1071
        %v1107 = vpop.f32.mrb[0].mxu0
        %v1108 = vadd.f32 0.0, %v1107
        %v1109 = vpop.f32.mrb[0].mxu0
        %v1110 = vpop.f32.mrb[0].mxu0
        %v1111 = vpop.f32.mrb[0].mxu0
        %1112 = vdwg.mxu0
        %v1113 = vpack.c.bf16 %v1108, %v1108
        %s1114 = scalar_lea.vmem [#allocation2], 256
        %v1115 = vld [vmem:[%s1114] sm:$0xf]
        %v1116 = vld [vmem:[%s1114 + $0x4] sm:$0xf]
        %v1117 = vld [vmem:[%s1114 + $0x8] sm:$0xf]
        %v1118 = vld [vmem:[%s1114 + $0xc] sm:$0xf]
        %v1119 = vld [vmem:[%s1114 + $0x10] sm:$0xf]
        %v1120 = vld [vmem:[%s1114 + $0x14] sm:$0xf]
        %v1121 = vld [vmem:[%s1114 + $0x18] sm:$0xf]
        %v1122 = vld [vmem:[%s1114 + $0x1c] sm:$0xf]
        %v1123 = vld [vmem:[%s1114 + $0x20] sm:$0xf]
        %v1124 = vld [vmem:[%s1114 + $0x24] sm:$0xf]
        %v1125 = vld [vmem:[%s1114 + $0x28] sm:$0xf]
        %v1126 = vld [vmem:[%s1114 + $0x2c] sm:$0xf]
        %v1127 = vld [vmem:[%s1114 + $0x30] sm:$0xf]
        %v1128 = vld [vmem:[%s1114 + $0x34] sm:$0xf]
        %v1129 = vld [vmem:[%s1114 + $0x38] sm:$0xf]
        %v1130 = vld [vmem:[%s1114 + $0x3c] sm:$0xf]
        %s1131 = scalar_lea.vmem %s3, 4
        %v1132 = vld [vmem:[%s1131] sm:$0xf]
        %v1134 = vsel %vm1069, %v1132, 0
        %1136 = vmatprep.subr.bf16.mxu0 0
        %1137 = vmatpush1.bf16.msra.mxu0 %v1067
        %1138 = vmatprep.subr.bf16.mxu0 0
        %1139 = vmatpush1.bf16.msra.mxu0 0
        %1140 = vmatprep.subr.bf16.mxu0 0
        %1141 = vmatpush1.bf16.msra.mxu0 0
        %1142 = vmatprep.subr.bf16.mxu0 0
        %1143 = vmatpush1.bf16.msra.mxu0 0
        %1144 = vmatprep.subr.bf16.mxu0 0
        %1145 = vmatpush1.bf16.msra.mxu0 0
        %1146 = vmatprep.subr.bf16.mxu0 0
        %1147 = vmatpush1.bf16.msra.mxu0 0
        %1148 = vmatprep.subr.bf16.mxu0 0
        %1149 = vmatpush1.bf16.msra.mxu0 0
        %1150 = vmatprep.subr.bf16.mxu0 0
        %1151 = vmatpush1.bf16.msra.mxu0 0
        %1152 = vmatprep.subr.bf16.mxu0 0
        %1153 = vmatpush1.bf16.msra.mxu0 0
        %1154 = vmatprep.subr.bf16.mxu0 0
        %1155 = vmatpush1.bf16.msra.mxu0 0
        %1156 = vmatprep.subr.bf16.mxu0 0
        %1157 = vmatpush1.bf16.msra.mxu0 0
        %1158 = vmatprep.subr.bf16.mxu0 0
        %1159 = vmatpush1.bf16.msra.mxu0 0
        %1160 = vmatprep.subr.bf16.mxu0 0
        %1161 = vmatpush1.bf16.msra.mxu0 0
        %1162 = vmatprep.subr.bf16.mxu0 0
        %1163 = vmatpush1.bf16.msra.mxu0 0
        %1164 = vmatprep.subr.bf16.mxu0 0
        %1165 = vmatpush1.bf16.msra.mxu0 0
        %1166 = vmatprep.subr.bf16.mxu0 0
        %1167 = vmatpush1.bf16.msra.mxu0 0
        %1168 = vmatprep.mubr.bf16.mxu0 0
        %1169 = vmatmul.mubr.bf16.gmra.mrb[0].mxu0 %v1134
        %v1170 = vpop.f32.mrb[0].mxu0
        %v1171 = vadd.f32 0.0, %v1170
        %v1172 = vpop.f32.mrb[0].mxu0
        %v1173 = vpop.f32.mrb[0].mxu0
        %v1174 = vpop.f32.mrb[0].mxu0
        %1175 = vdwg.mxu0
        %v1176 = vpack.c.bf16 %v1171, %v1171
        %s1177 = scalar_lea.vmem [#allocation2], 320
        %v1178 = vld [vmem:[%s1177] sm:$0xf]
        %v1179 = vld [vmem:[%s1177 + $0x4] sm:$0xf]
        %v1180 = vld [vmem:[%s1177 + $0x8] sm:$0xf]
        %v1181 = vld [vmem:[%s1177 + $0xc] sm:$0xf]
        %v1182 = vld [vmem:[%s1177 + $0x10] sm:$0xf]
        %v1183 = vld [vmem:[%s1177 + $0x14] sm:$0xf]
        %v1184 = vld [vmem:[%s1177 + $0x18] sm:$0xf]
        %v1185 = vld [vmem:[%s1177 + $0x1c] sm:$0xf]
        %v1186 = vld [vmem:[%s1177 + $0x20] sm:$0xf]
        %v1187 = vld [vmem:[%s1177 + $0x24] sm:$0xf]
        %v1188 = vld [vmem:[%s1177 + $0x28] sm:$0xf]
        %v1189 = vld [vmem:[%s1177 + $0x2c] sm:$0xf]
        %v1190 = vld [vmem:[%s1177 + $0x30] sm:$0xf]
        %v1191 = vld [vmem:[%s1177 + $0x34] sm:$0xf]
        %v1192 = vld [vmem:[%s1177 + $0x38] sm:$0xf]
        %v1193 = vld [vmem:[%s1177 + $0x3c] sm:$0xf]
        %v1210 = vunpack.c.l.b16 %v1178
        %v1211 = vunpack.c.l.b16 %v1179
        %v1212 = vunpack.c.l.b16 %v1180
        %v1213 = vunpack.c.l.b16 %v1181
        %v1214 = vunpack.c.l.b16 %v1182
        %v1215 = vunpack.c.l.b16 %v1183
        %v1216 = vunpack.c.l.b16 %v1184
        %v1217 = vunpack.c.l.b16 %v1185
        %v1218 = vunpack.c.l.b16 %v1186
        %v1219 = vunpack.c.l.b16 %v1187
        %v1220 = vunpack.c.l.b16 %v1188
        %v1221 = vunpack.c.l.b16 %v1189
        %v1222 = vunpack.c.l.b16 %v1190
        %v1223 = vunpack.c.l.b16 %v1191
        %v1224 = vunpack.c.l.b16 %v1192
        %v1225 = vunpack.c.l.b16 %v1193
        %v1226 = vpack.c.b16 %v1211, %v1210
        %v1227 = vpack.c.b16 %v1213, %v1212
        %v1228 = vpack.c.b16 %v1215, %v1214
        %v1229 = vpack.c.b16 %v1217, %v1216
        %v1230 = vpack.c.b16 %v1219, %v1218
        %v1231 = vpack.c.b16 %v1221, %v1220
        %v1232 = vpack.c.b16 %v1223, %v1222
        %v1233 = vpack.c.b16 %v1225, %v1224
        %1242 = vmatprep.subr.bf16.mxu0 0
        %1243 = vmatpush1.bf16.msra.mxu0 %v1226
        %1244 = vmatprep.subr.bf16.mxu0 0
        %1245 = vmatpush1.bf16.msra.mxu0 %v1227
        %1246 = vmatprep.subr.bf16.mxu0 0
        %1247 = vmatpush1.bf16.msra.mxu0 %v1228
        %1248 = vmatprep.subr.bf16.mxu0 0
        %1249 = vmatpush1.bf16.msra.mxu0 %v1229
        %1250 = vmatprep.subr.bf16.mxu0 0
        %1251 = vmatpush1.bf16.msra.mxu0 %v1230
        %1252 = vmatprep.subr.bf16.mxu0 0
        %1253 = vmatpush1.bf16.msra.mxu0 %v1231
        %1254 = vmatprep.subr.bf16.mxu0 0
        %1255 = vmatpush1.bf16.msra.mxu0 %v1232
        %1256 = vmatprep.subr.bf16.mxu0 0
        %1257 = vmatpush1.bf16.msra.mxu0 %v1233
        %1258 = vmatprep.subr.bf16.mxu0 0
        %1259 = vmatpush1.bf16.msra.mxu0 0
        %1260 = vmatprep.subr.bf16.mxu0 0
        %1261 = vmatpush1.bf16.msra.mxu0 0
        %1262 = vmatprep.subr.bf16.mxu0 0
        %1263 = vmatpush1.bf16.msra.mxu0 0
        %1264 = vmatprep.subr.bf16.mxu0 0
        %1265 = vmatpush1.bf16.msra.mxu0 0
        %1266 = vmatprep.subr.bf16.mxu0 0
        %1267 = vmatpush1.bf16.msra.mxu0 0
        %1268 = vmatprep.subr.bf16.mxu0 0
        %1269 = vmatpush1.bf16.msra.mxu0 0
        %1270 = vmatprep.subr.bf16.mxu0 0
        %1271 = vmatpush1.bf16.msra.mxu0 0
        %1272 = vmatprep.subr.bf16.mxu0 0
        %1273 = vmatpush1.bf16.msra.mxu0 0
        %1274 = vmatprep.mubr.bf16.mxu0 0
        %1275 = vmatmul.mubr.bf16.gmra.mrb[0].mxu0 %v1176
        %v1276 = vpop.f32.mrb[0].mxu0
        %v1277 = vadd.f32 0.0, %v1276
        %v1278 = vpop.f32.mrb[0].mxu0
        %v1279 = vpop.f32.mrb[0].mxu0
        %v1280 = vpop.f32.mrb[0].mxu0
        %1281 = vdwg.mxu0
        %v1298 = vunpack.c.l.b16 %v1115
        %v1299 = vunpack.c.l.b16 %v1116
        %v1300 = vunpack.c.l.b16 %v1117
        %v1301 = vunpack.c.l.b16 %v1118
        %v1302 = vunpack.c.l.b16 %v1119
        %v1303 = vunpack.c.l.b16 %v1120
        %v1304 = vunpack.c.l.b16 %v1121
        %v1305 = vunpack.c.l.b16 %v1122
        %v1306 = vunpack.c.l.b16 %v1123
        %v1307 = vunpack.c.l.b16 %v1124
        %v1308 = vunpack.c.l.b16 %v1125
        %v1309 = vunpack.c.l.b16 %v1126
        %v1310 = vunpack.c.l.b16 %v1127
        %v1311 = vunpack.c.l.b16 %v1128
        %v1312 = vunpack.c.l.b16 %v1129
        %v1313 = vunpack.c.l.b16 %v1130
        %v1314 = vpack.c.b16 %v1299, %v1298
        %v1315 = vpack.c.b16 %v1301, %v1300
        %v1316 = vpack.c.b16 %v1303, %v1302
        %v1317 = vpack.c.b16 %v1305, %v1304
        %v1318 = vpack.c.b16 %v1307, %v1306
        %v1319 = vpack.c.b16 %v1309, %v1308
        %v1320 = vpack.c.b16 %v1311, %v1310
        %v1321 = vpack.c.b16 %v1313, %v1312
        %1330 = vmatprep.subr.bf16.mxu0 0
        %1331 = vmatpush1.bf16.msra.mxu0 %v1314
        %1332 = vmatprep.subr.bf16.mxu0 0
        %1333 = vmatpush1.bf16.msra.mxu0 %v1315
        %1334 = vmatprep.subr.bf16.mxu0 0
        %1335 = vmatpush1.bf16.msra.mxu0 %v1316
        %1336 = vmatprep.subr.bf16.mxu0 0
        %1337 = vmatpush1.bf16.msra.mxu0 %v1317
        %1338 = vmatprep.subr.bf16.mxu0 0
        %1339 = vmatpush1.bf16.msra.mxu0 %v1318
        %1340 = vmatprep.subr.bf16.mxu0 0
        %1341 = vmatpush1.bf16.msra.mxu0 %v1319
        %1342 = vmatprep.subr.bf16.mxu0 0
        %1343 = vmatpush1.bf16.msra.mxu0 %v1320
        %1344 = vmatprep.subr.bf16.mxu0 0
        %1345 = vmatpush1.bf16.msra.mxu0 %v1321
        %1346 = vmatprep.subr.bf16.mxu0 0
        %1347 = vmatpush1.bf16.msra.mxu0 0
        %1348 = vmatprep.subr.bf16.mxu0 0
        %1349 = vmatpush1.bf16.msra.mxu0 0
        %1350 = vmatprep.subr.bf16.mxu0 0
        %1351 = vmatpush1.bf16.msra.mxu0 0
        %1352 = vmatprep.subr.bf16.mxu0 0
        %1353 = vmatpush1.bf16.msra.mxu0 0
        %1354 = vmatprep.subr.bf16.mxu0 0
        %1355 = vmatpush1.bf16.msra.mxu0 0
        %1356 = vmatprep.subr.bf16.mxu0 0
        %1357 = vmatpush1.bf16.msra.mxu0 0
        %1358 = vmatprep.subr.bf16.mxu0 0
        %1359 = vmatpush1.bf16.msra.mxu0 0
        %1360 = vmatprep.subr.bf16.mxu0 0
        %1361 = vmatpush1.bf16.msra.mxu0 0
        %1362 = vmatprep.mubr.bf16.mxu0 0
        %1363 = vmatmul.mubr.bf16.gmra.mrb[0].mxu0 %v1113
        %v1364 = vpop.f32.mrb[0].mxu0
        %v1365 = vadd.f32 %v1277, %v1364
        %v1366 = vpop.f32.mrb[0].mxu0
        %v1367 = vpop.f32.mrb[0].mxu0
        %v1368 = vpop.f32.mrb[0].mxu0
        %1369 = vdwg.mxu0
        %s1370 = scalar_lea.vmem %s3, 8
        %v1371 = vld [vmem:[%s1370] sm:$0xf]
        %v1373 = vsel %vm1069, %v1371, 0
        %1375 = vmatprep.subr.bf16.mxu0 0
        %1376 = vmatpush1.bf16.msra.mxu0 %v1067
        %1377 = vmatprep.subr.bf16.mxu0 0
        %1378 = vmatpush1.bf16.msra.mxu0 0
        %1379 = vmatprep.subr.bf16.mxu0 0
        %1380 = vmatpush1.bf16.msra.mxu0 0
        %1381 = vmatprep.subr.bf16.mxu0 0
        %1382 = vmatpush1.bf16.msra.mxu0 0
        %1383 = vmatprep.subr.bf16.mxu0 0
        %1384 = vmatpush1.bf16.msra.mxu0 0
        %1385 = vmatprep.subr.bf16.mxu0 0
        %1386 = vmatpush1.bf16.msra.mxu0 0
        %1387 = vmatprep.subr.bf16.mxu0 0
        %1388 = vmatpush1.bf16.msra.mxu0 0
        %1389 = vmatprep.subr.bf16.mxu0 0
        %1390 = vmatpush1.bf16.msra.mxu0 0
        %1391 = vmatprep.subr.bf16.mxu0 0
        %1392 = vmatpush1.bf16.msra.mxu0 0
        %1393 = vmatprep.subr.bf16.mxu0 0
        %1394 = vmatpush1.bf16.msra.mxu0 0
        %1395 = vmatprep.subr.bf16.mxu0 0
        %1396 = vmatpush1.bf16.msra.mxu0 0
        %1397 = vmatprep.subr.bf16.mxu0 0
        %1398 = vmatpush1.bf16.msra.mxu0 0
        %1399 = vmatprep.subr.bf16.mxu0 0
        %1400 = vmatpush1.bf16.msra.mxu0 0
        %1401 = vmatprep.subr.bf16.mxu0 0
        %1402 = vmatpush1.bf16.msra.mxu0 0
        %1403 = vmatprep.subr.bf16.mxu0 0
        %1404 = vmatpush1.bf16.msra.mxu0 0
        %1405 = vmatprep.subr.bf16.mxu0 0
        %1406 = vmatpush1.bf16.msra.mxu0 0
        %1407 = vmatprep.mubr.bf16.mxu0 0
        %1408 = vmatmul.mubr.bf16.gmra.mrb[0].mxu0 %v1373
        %v1409 = vpop.f32.mrb[0].mxu0
        %v1410 = vadd.f32 0.0, %v1409
        %v1411 = vpop.f32.mrb[0].mxu0
        %v1412 = vpop.f32.mrb[0].mxu0
        %v1413 = vpop.f32.mrb[0].mxu0
        %1414 = vdwg.mxu0
        %v1415 = vpack.c.bf16 %v1410, %v1410
        %s1416 = scalar_lea.vmem [#allocation2], 384
        %v1417 = vld [vmem:[%s1416] sm:$0xf]
        %v1418 = vld [vmem:[%s1416 + $0x4] sm:$0xf]
        %v1419 = vld [vmem:[%s1416 + $0x8] sm:$0xf]
        %v1420 = vld [vmem:[%s1416 + $0xc] sm:$0xf]
        %v1421 = vld [vmem:[%s1416 + $0x10] sm:$0xf]
        %v1422 = vld [vmem:[%s1416 + $0x14] sm:$0xf]
        %v1423 = vld [vmem:[%s1416 + $0x18] sm:$0xf]
        %v1424 = vld [vmem:[%s1416 + $0x1c] sm:$0xf]
        %v1425 = vld [vmem:[%s1416 + $0x20] sm:$0xf]
        %v1426 = vld [vmem:[%s1416 + $0x24] sm:$0xf]
        %v1427 = vld [vmem:[%s1416 + $0x28] sm:$0xf]
        %v1428 = vld [vmem:[%s1416 + $0x2c] sm:$0xf]
        %v1429 = vld [vmem:[%s1416 + $0x30] sm:$0xf]
        %v1430 = vld [vmem:[%s1416 + $0x34] sm:$0xf]
        %v1431 = vld [vmem:[%s1416 + $0x38] sm:$0xf]
        %v1432 = vld [vmem:[%s1416 + $0x3c] sm:$0xf]
        %v1449 = vunpack.c.l.b16 %v1417
        %v1450 = vunpack.c.l.b16 %v1418
        %v1451 = vunpack.c.l.b16 %v1419
        %v1452 = vunpack.c.l.b16 %v1420
        %v1453 = vunpack.c.l.b16 %v1421
        %v1454 = vunpack.c.l.b16 %v1422
        %v1455 = vunpack.c.l.b16 %v1423
        %v1456 = vunpack.c.l.b16 %v1424
        %v1457 = vunpack.c.l.b16 %v1425
        %v1458 = vunpack.c.l.b16 %v1426
        %v1459 = vunpack.c.l.b16 %v1427
        %v1460 = vunpack.c.l.b16 %v1428
        %v1461 = vunpack.c.l.b16 %v1429
        %v1462 = vunpack.c.l.b16 %v1430
        %v1463 = vunpack.c.l.b16 %v1431
        %v1464 = vunpack.c.l.b16 %v1432
        %v1465 = vpack.c.b16 %v1450, %v1449
        %v1466 = vpack.c.b16 %v1452, %v1451
        %v1467 = vpack.c.b16 %v1454, %v1453
        %v1468 = vpack.c.b16 %v1456, %v1455
        %v1469 = vpack.c.b16 %v1458, %v1457
        %v1470 = vpack.c.b16 %v1460, %v1459
        %v1471 = vpack.c.b16 %v1462, %v1461
        %v1472 = vpack.c.b16 %v1464, %v1463
        %1481 = vmatprep.subr.bf16.mxu0 0
        %1482 = vmatpush1.bf16.msra.mxu0 %v1465
        %1483 = vmatprep.subr.bf16.mxu0 0
        %1484 = vmatpush1.bf16.msra.mxu0 %v1466
        %1485 = vmatprep.subr.bf16.mxu0 0
        %1486 = vmatpush1.bf16.msra.mxu0 %v1467
        %1487 = vmatprep.subr.bf16.mxu0 0
        %1488 = vmatpush1.bf16.msra.mxu0 %v1468
        %1489 = vmatprep.subr.bf16.mxu0 0
        %1490 = vmatpush1.bf16.msra.mxu0 %v1469
        %1491 = vmatprep.subr.bf16.mxu0 0
        %1492 = vmatpush1.bf16.msra.mxu0 %v1470
        %1493 = vmatprep.subr.bf16.mxu0 0
        %1494 = vmatpush1.bf16.msra.mxu0 %v1471
        %1495 = vmatprep.subr.bf16.mxu0 0
        %1496 = vmatpush1.bf16.msra.mxu0 %v1472
        %1497 = vmatprep.subr.bf16.mxu0 0
        %1498 = vmatpush1.bf16.msra.mxu0 0
        %1499 = vmatprep.subr.bf16.mxu0 0
        %1500 = vmatpush1.bf16.msra.mxu0 0
        %1501 = vmatprep.subr.bf16.mxu0 0
        %1502 = vmatpush1.bf16.msra.mxu0 0
        %1503 = vmatprep.subr.bf16.mxu0 0
        %1504 = vmatpush1.bf16.msra.mxu0 0
        %1505 = vmatprep.subr.bf16.mxu0 0
        %1506 = vmatpush1.bf16.msra.mxu0 0
        %1507 = vmatprep.subr.bf16.mxu0 0
        %1508 = vmatpush1.bf16.msra.mxu0 0
        %1509 = vmatprep.subr.bf16.mxu0 0
        %1510 = vmatpush1.bf16.msra.mxu0 0
        %1511 = vmatprep.subr.bf16.mxu0 0
        %1512 = vmatpush1.bf16.msra.mxu0 0
        %1513 = vmatprep.mubr.bf16.mxu0 0
        %1514 = vmatmul.mubr.bf16.gmra.mrb[0].mxu0 %v1415
        %v1515 = vpop.f32.mrb[0].mxu0
        %v1516 = vadd.f32 0.0, %v1515
        %v1517 = vpop.f32.mrb[0].mxu0
        %v1518 = vpop.f32.mrb[0].mxu0
        %v1519 = vpop.f32.mrb[0].mxu0
        %1520 = vdwg.mxu0
        %v1521 = vadd.f32 %v1365, %v1516
        %s1522 = scalar_lea.vmem %s3, 12
        %v1523 = vld [vmem:[%s1522] sm:$0xf]
        %v1525 = vsel %vm1069, %v1523, 0
        %1527 = vmatprep.subr.bf16.mxu0 0
        %1528 = vmatpush1.bf16.msra.mxu0 %v1067
        %1529 = vmatprep.subr.bf16.mxu0 0
        %1530 = vmatpush1.bf16.msra.mxu0 0
        %1531 = vmatprep.subr.bf16.mxu0 0
        %1532 = vmatpush1.bf16.msra.mxu0 0
        %1533 = vmatprep.subr.bf16.mxu0 0
        %1534 = vmatpush1.bf16.msra.mxu0 0
        %1535 = vmatprep.subr.bf16.mxu0 0
        %1536 = vmatpush1.bf16.msra.mxu0 0
        %1537 = vmatprep.subr.bf16.mxu0 0
        %1538 = vmatpush1.bf16.msra.mxu0 0
        %1539 = vmatprep.subr.bf16.mxu0 0
        %1540 = vmatpush1.bf16.msra.mxu0 0
        %1541 = vmatprep.subr.bf16.mxu0 0
        %1542 = vmatpush1.bf16.msra.mxu0 0
        %1543 = vmatprep.subr.bf16.mxu0 0
        %1544 = vmatpush1.bf16.msra.mxu0 0
        %1545 = vmatprep.subr.bf16.mxu0 0
        %1546 = vmatpush1.bf16.msra.mxu0 0
        %1547 = vmatprep.subr.bf16.mxu0 0
        %1548 = vmatpush1.bf16.msra.mxu0 0
        %1549 = vmatprep.subr.bf16.mxu0 0
        %1550 = vmatpush1.bf16.msra.mxu0 0
        %1551 = vmatprep.subr.bf16.mxu0 0
        %1552 = vmatpush1.bf16.msra.mxu0 0
        %1553 = vmatprep.subr.bf16.mxu0 0
        %1554 = vmatpush1.bf16.msra.mxu0 0
        %1555 = vmatprep.subr.bf16.mxu0 0
        %1556 = vmatpush1.bf16.msra.mxu0 0
        %1557 = vmatprep.subr.bf16.mxu0 0
        %1558 = vmatpush1.bf16.msra.mxu0 0
        %1559 = vmatprep.mubr.bf16.mxu0 0
        %1560 = vmatmul.mubr.bf16.gmra.mrb[0].mxu0 %v1525
        %v1561 = vpop.f32.mrb[0].mxu0
        %v1562 = vadd.f32 0.0, %v1561
        %v1563 = vpop.f32.mrb[0].mxu0
        %v1564 = vpop.f32.mrb[0].mxu0
        %v1565 = vpop.f32.mrb[0].mxu0
        %1566 = vdwg.mxu0
        %v1567 = vpack.c.bf16 %v1562, %v1562
        %s1568 = scalar_lea.vmem [#allocation2], 448
        %v1569 = vld [vmem:[%s1568] sm:$0xf]
        %v1570 = vld [vmem:[%s1568 + $0x4] sm:$0xf]
        %v1571 = vld [vmem:[%s1568 + $0x8] sm:$0xf]
        %v1572 = vld [vmem:[%s1568 + $0xc] sm:$0xf]
        %v1573 = vld [vmem:[%s1568 + $0x10] sm:$0xf]
        %v1574 = vld [vmem:[%s1568 + $0x14] sm:$0xf]
        %v1575 = vld [vmem:[%s1568 + $0x18] sm:$0xf]
        %v1576 = vld [vmem:[%s1568 + $0x1c] sm:$0xf]
        %v1577 = vld [vmem:[%s1568 + $0x20] sm:$0xf]
        %v1578 = vld [vmem:[%s1568 + $0x24] sm:$0xf]
        %v1579 = vld [vmem:[%s1568 + $0x28] sm:$0xf]
        %v1580 = vld [vmem:[%s1568 + $0x2c] sm:$0xf]
        %v1581 = vld [vmem:[%s1568 + $0x30] sm:$0xf]
        %v1582 = vld [vmem:[%s1568 + $0x34] sm:$0xf]
        %v1583 = vld [vmem:[%s1568 + $0x38] sm:$0xf]
        %v1584 = vld [vmem:[%s1568 + $0x3c] sm:$0xf]
        %v1601 = vunpack.c.l.b16 %v1569
        %v1602 = vunpack.c.l.b16 %v1570
        %v1603 = vunpack.c.l.b16 %v1571
        %v1604 = vunpack.c.l.b16 %v1572
        %v1605 = vunpack.c.l.b16 %v1573
        %v1606 = vunpack.c.l.b16 %v1574
        %v1607 = vunpack.c.l.b16 %v1575
        %v1608 = vunpack.c.l.b16 %v1576
        %v1609 = vunpack.c.l.b16 %v1577
        %v1610 = vunpack.c.l.b16 %v1578
        %v1611 = vunpack.c.l.b16 %v1579
        %v1612 = vunpack.c.l.b16 %v1580
        %v1613 = vunpack.c.l.b16 %v1581
        %v1614 = vunpack.c.l.b16 %v1582
        %v1615 = vunpack.c.l.b16 %v1583
        %v1616 = vunpack.c.l.b16 %v1584
        %v1617 = vpack.c.b16 %v1602, %v1601
        %v1618 = vpack.c.b16 %v1604, %v1603
        %v1619 = vpack.c.b16 %v1606, %v1605
        %v1620 = vpack.c.b16 %v1608, %v1607
        %v1621 = vpack.c.b16 %v1610, %v1609
        %v1622 = vpack.c.b16 %v1612, %v1611
        %v1623 = vpack.c.b16 %v1614, %v1613
        %v1624 = vpack.c.b16 %v1616, %v1615
        %1633 = vmatprep.subr.bf16.mxu0 0
        %1634 = vmatpush1.bf16.msra.mxu0 %v1617
        %1635 = vmatprep.subr.bf16.mxu0 0
        %1636 = vmatpush1.bf16.msra.mxu0 %v1618
        %1637 = vmatprep.subr.bf16.mxu0 0
        %1638 = vmatpush1.bf16.msra.mxu0 %v1619
        %1639 = vmatprep.subr.bf16.mxu0 0
        %1640 = vmatpush1.bf16.msra.mxu0 %v1620
        %1641 = vmatprep.subr.bf16.mxu0 0
        %1642 = vmatpush1.bf16.msra.mxu0 %v1621
        %1643 = vmatprep.subr.bf16.mxu0 0
        %1644 = vmatpush1.bf16.msra.mxu0 %v1622
        %1645 = vmatprep.subr.bf16.mxu0 0
        %1646 = vmatpush1.bf16.msra.mxu0 %v1623
        %1647 = vmatprep.subr.bf16.mxu0 0
        %1648 = vmatpush1.bf16.msra.mxu0 %v1624
        %1649 = vmatprep.subr.bf16.mxu0 0
        %1650 = vmatpush1.bf16.msra.mxu0 0
        %1651 = vmatprep.subr.bf16.mxu0 0
        %1652 = vmatpush1.bf16.msra.mxu0 0
        %1653 = vmatprep.subr.bf16.mxu0 0
        %1654 = vmatpush1.bf16.msra.mxu0 0
        %1655 = vmatprep.subr.bf16.mxu0 0
        %1656 = vmatpush1.bf16.msra.mxu0 0
        %1657 = vmatprep.subr.bf16.mxu0 0
        %1658 = vmatpush1.bf16.msra.mxu0 0
        %1659 = vmatprep.subr.bf16.mxu0 0
        %1660 = vmatpush1.bf16.msra.mxu0 0
        %1661 = vmatprep.subr.bf16.mxu0 0
        %1662 = vmatpush1.bf16.msra.mxu0 0
        %1663 = vmatprep.subr.bf16.mxu0 0
        %1664 = vmatpush1.bf16.msra.mxu0 0
        %1665 = vmatprep.mubr.bf16.mxu0 0
        %1666 = vmatmul.mubr.bf16.gmra.mrb[0].mxu0 %v1567
        %v1667 = vpop.f32.mrb[0].mxu0
        %v1668 = vadd.f32 0.0, %v1667
        %v1669 = vpop.f32.mrb[0].mxu0
        %v1670 = vpop.f32.mrb[0].mxu0
        %v1671 = vpop.f32.mrb[0].mxu0
        %1672 = vdwg.mxu0
        %v1673 = vadd.f32 %v1521, %v1668
        %v1674 = vld [vmem:[%s6] sm:$0xff]
        %v1675 = vld [vmem:[%s8] sm:$0xff]
        %v1676 = vld [vmem:[%s8 + $0x8] sm:$0xff]
        %v1677 = vld [vmem:[%s8 + $0x10] sm:$0xff]
        %v1678 = vld [vmem:[%s8 + $0x18] sm:$0xff]
        %v1679 = vld [vmem:[%s8 + $0x20] sm:$0xff]
        %v1680 = vld [vmem:[%s8 + $0x28] sm:$0xff]
        %v1681 = vld [vmem:[%s8 + $0x30] sm:$0xff]
        %v1682 = vld [vmem:[%s8 + $0x38] sm:$0xff]
        %v1683 = vld [vmem:[%s8 + $0x40] sm:$0xff]
        %v1684 = vld [vmem:[%s8 + $0x48] sm:$0xff]
        %v1685 = vld [vmem:[%s8 + $0x50] sm:$0xff]
        %v1686 = vld [vmem:[%s8 + $0x58] sm:$0xff]
        %v1687 = vld [vmem:[%s8 + $0x60] sm:$0xff]
        %v1688 = vld [vmem:[%s8 + $0x68] sm:$0xff]
        %v1689 = vld [vmem:[%s8 + $0x70] sm:$0xff]
        %v1690 = vld [vmem:[%s8 + $0x78] sm:$0xff]
        %v1691 = vld [vmem:[%s10 + $0x1] sm:$0x1]
        %v1692 = vld [vmem:[%s10 + $0x2] sm:$0x1]
        %vm1693 = vcmask 64512
        %v1695 = vsel %vm1693, %v1674, 0
        %1697 = vmatprep.subr.mxu0 0.0
        %1698 = vmatpush1.msra.mxu0 %v1673
        %1699 = vmatprep.subr.mxu0 0.0
        %1700 = vmatpush1.msra.mxu0 0.0
        %1701 = vmatprep.subr.mxu0 0.0
        %1702 = vmatpush1.msra.mxu0 0.0
        %1703 = vmatprep.subr.mxu0 0.0
        %1704 = vmatpush1.msra.mxu0 0.0
        %1705 = vmatprep.subr.mxu0 0.0
        %1706 = vmatpush1.msra.mxu0 0.0
        %1707 = vmatprep.subr.mxu0 0.0
        %1708 = vmatpush1.msra.mxu0 0.0
        %1709 = vmatprep.subr.mxu0 0.0
        %1710 = vmatpush1.msra.mxu0 0.0
        %1711 = vmatprep.subr.mxu0 0.0
        %1712 = vmatpush1.msra.mxu0 0.0
        %1713 = vmatprep.subr.mxu0 0.0
        %1714 = vmatpush1.msra.mxu0 0.0
        %1715 = vmatprep.subr.mxu0 0.0
        %1716 = vmatpush1.msra.mxu0 0.0
        %1717 = vmatprep.subr.mxu0 0.0
        %1718 = vmatpush1.msra.mxu0 0.0
        %1719 = vmatprep.subr.mxu0 0.0
        %1720 = vmatpush1.msra.mxu0 0.0
        %1721 = vmatprep.subr.mxu0 0.0
        %1722 = vmatpush1.msra.mxu0 0.0
        %1723 = vmatprep.subr.mxu0 0.0
        %1724 = vmatpush1.msra.mxu0 0.0
        %1725 = vmatprep.subr.mxu0 0.0
        %1726 = vmatpush1.msra.mxu0 0.0
        %1727 = vmatprep.subr.mxu0 0.0
        %1728 = vmatpush1.msra.mxu0 0.0
        %1729 = vmatprep.subr.mxu0 0.0
        %1730 = vmatpush1.msra.mxu0 0.0
        %1731 = vmatprep.subr.mxu0 0.0
        %1732 = vmatpush1.msra.mxu0 0.0
        %1733 = vmatprep.subr.mxu0 0.0
        %1734 = vmatpush1.msra.mxu0 0.0
        %1735 = vmatprep.subr.mxu0 0.0
        %1736 = vmatpush1.msra.mxu0 0.0
        %1737 = vmatprep.subr.mxu0 0.0
        %1738 = vmatpush1.msra.mxu0 0.0
        %1739 = vmatprep.subr.mxu0 0.0
        %1740 = vmatpush1.msra.mxu0 0.0
        %1741 = vmatprep.subr.mxu0 0.0
        %1742 = vmatpush1.msra.mxu0 0.0
        %1743 = vmatprep.subr.mxu0 0.0
        %1744 = vmatpush1.msra.mxu0 0.0
        %1745 = vmatprep.subr.mxu0 0.0
        %1746 = vmatpush1.msra.mxu0 0.0
        %1747 = vmatprep.subr.mxu0 0.0
        %1748 = vmatpush1.msra.mxu0 0.0
        %1749 = vmatprep.subr.mxu0 0.0
        %1750 = vmatpush1.msra.mxu0 0.0
        %1751 = vmatprep.subr.mxu0 0.0
        %1752 = vmatpush1.msra.mxu0 0.0
        %1753 = vmatprep.subr.mxu0 0.0
        %1754 = vmatpush1.msra.mxu0 0.0
        %1755 = vmatprep.subr.mxu0 0.0
        %1756 = vmatpush1.msra.mxu0 0.0
        %1757 = vmatprep.subr.mxu0 0.0
        %1758 = vmatpush1.msra.mxu0 0.0
        %1759 = vmatprep.subr.mxu0 0.0
        %1760 = vmatpush1.msra.mxu0 0.0
        %1761 = vmatprep.mubr.f32.mxu0 0.0
        %1762 = vmatmul.mubr.f32.gmra.mrb[0].mxu0 %v1695
        %v1763 = vpop.f32.mrb[0].mxu0
        %v1764 = vadd.f32 0.0, %v1763
        %v1765 = vpop.f32.mrb[0].mxu0
        %1766 = vdwg.mxu0
        %1767 = vmatprep.subr.mxu0 0.0
        %1768 = vmatpush1.msra.mxu0 %v1675
        %1769 = vmatprep.subr.mxu0 0.0
        %1770 = vmatpush1.msra.mxu0 %v1676
        %1771 = vmatprep.subr.mxu0 0.0
        %1772 = vmatpush1.msra.mxu0 %v1677
        %1773 = vmatprep.subr.mxu0 0.0
        %1774 = vmatpush1.msra.mxu0 %v1678
        %1775 = vmatprep.subr.mxu0 0.0
        %1776 = vmatpush1.msra.mxu0 %v1679
        %1777 = vmatprep.subr.mxu0 0.0
        %1778 = vmatpush1.msra.mxu0 %v1680
        %1779 = vmatprep.subr.mxu0 0.0
        %1780 = vmatpush1.msra.mxu0 %v1681
        %1781 = vmatprep.subr.mxu0 0.0
        %1782 = vmatpush1.msra.mxu0 %v1682
        %1783 = vmatprep.subr.mxu0 0.0
        %1784 = vmatpush1.msra.mxu0 %v1683
        %1785 = vmatprep.subr.mxu0 0.0
        %1786 = vmatpush1.msra.mxu0 %v1684
        %1787 = vmatprep.subr.mxu0 0.0
        %1788 = vmatpush1.msra.mxu0 %v1685
        %1789 = vmatprep.subr.mxu0 0.0
        %1790 = vmatpush1.msra.mxu0 %v1686
        %1791 = vmatprep.subr.mxu0 0.0
        %1792 = vmatpush1.msra.mxu0 %v1687
        %1793 = vmatprep.subr.mxu0 0.0
        %1794 = vmatpush1.msra.mxu0 %v1688
        %1795 = vmatprep.subr.mxu0 0.0
        %1796 = vmatpush1.msra.mxu0 %v1689
        %1797 = vmatprep.subr.mxu0 0.0
        %1798 = vmatpush1.msra.mxu0 %v1690
        %1799 = vmatprep.subr.mxu0 0.0
        %1800 = vmatpush1.msra.mxu0 0.0
        %1801 = vmatprep.subr.mxu0 0.0
        %1802 = vmatpush1.msra.mxu0 0.0
        %1803 = vmatprep.subr.mxu0 0.0
        %1804 = vmatpush1.msra.mxu0 0.0
        %1805 = vmatprep.subr.mxu0 0.0
        %1806 = vmatpush1.msra.mxu0 0.0
        %1807 = vmatprep.subr.mxu0 0.0
        %1808 = vmatpush1.msra.mxu0 0.0
        %1809 = vmatprep.subr.mxu0 0.0
        %1810 = vmatpush1.msra.mxu0 0.0
        %1811 = vmatprep.subr.mxu0 0.0
        %1812 = vmatpush1.msra.mxu0 0.0
        %1813 = vmatprep.subr.mxu0 0.0
        %1814 = vmatpush1.msra.mxu0 0.0
        %1815 = vmatprep.subr.mxu0 0.0
        %1816 = vmatpush1.msra.mxu0 0.0
        %1817 = vmatprep.subr.mxu0 0.0
        %1818 = vmatpush1.msra.mxu0 0.0
        %1819 = vmatprep.subr.mxu0 0.0
        %1820 = vmatpush1.msra.mxu0 0.0
        %1821 = vmatprep.subr.mxu0 0.0
        %1822 = vmatpush1.msra.mxu0 0.0
        %1823 = vmatprep.subr.mxu0 0.0
        %1824 = vmatpush1.msra.mxu0 0.0
        %1825 = vmatprep.subr.mxu0 0.0
        %1826 = vmatpush1.msra.mxu0 0.0
        %1827 = vmatprep.subr.mxu0 0.0
        %1828 = vmatpush1.msra.mxu0 0.0
        %1829 = vmatprep.subr.mxu0 0.0
        %1830 = vmatpush1.msra.mxu0 0.0
        %1831 = vmatprep.mubr.f32.mxu0 0.0
        %1832 = vmatmul.mubr.f32.gmra.mrb[0].mxu0 %v1764
        %v1833 = vpop.f32.mrb[0].mxu0
        %v1834 = vadd.f32 0.0, %v1833
        %v1835 = vpop.f32.mrb[0].mxu0
        %1836 = vdwg.mxu0
        %v1837 = vmul.f32 %v1673, %v1673
        %1838 = vmatprep.subr.mxu0 0.0
        %1839 = vmatpush1.msra.mxu0 %v1837
        %1840 = vmatprep.subr.mxu0 0.0
        %1841 = vmatpush1.msra.mxu0 0.0
        %1842 = vmatprep.subr.mxu0 0.0
        %1843 = vmatpush1.msra.mxu0 0.0
        %1844 = vmatprep.subr.mxu0 0.0
        %1845 = vmatpush1.msra.mxu0 0.0
        %1846 = vmatprep.subr.mxu0 0.0
        %1847 = vmatpush1.msra.mxu0 0.0
        %1848 = vmatprep.subr.mxu0 0.0
        %1849 = vmatpush1.msra.mxu0 0.0
        %1850 = vmatprep.subr.mxu0 0.0
        %1851 = vmatpush1.msra.mxu0 0.0
        %1852 = vmatprep.subr.mxu0 0.0
        %1853 = vmatpush1.msra.mxu0 0.0
        %1854 = vmatprep.subr.mxu0 0.0
        %1855 = vmatpush1.msra.mxu0 0.0
        %1856 = vmatprep.subr.mxu0 0.0
        %1857 = vmatpush1.msra.mxu0 0.0
        %1858 = vmatprep.subr.mxu0 0.0
        %1859 = vmatpush1.msra.mxu0 0.0
        %1860 = vmatprep.subr.mxu0 0.0
        %1861 = vmatpush1.msra.mxu0 0.0
        %1862 = vmatprep.subr.mxu0 0.0
        %1863 = vmatpush1.msra.mxu0 0.0
        %1864 = vmatprep.subr.mxu0 0.0
        %1865 = vmatpush1.msra.mxu0 0.0
        %1866 = vmatprep.subr.mxu0 0.0
        %1867 = vmatpush1.msra.mxu0 0.0
        %1868 = vmatprep.subr.mxu0 0.0
        %1869 = vmatpush1.msra.mxu0 0.0
        %1870 = vmatprep.subr.mxu0 0.0
        %1871 = vmatpush1.msra.mxu0 0.0
        %1872 = vmatprep.subr.mxu0 0.0
        %1873 = vmatpush1.msra.mxu0 0.0
        %1874 = vmatprep.subr.mxu0 0.0
        %1875 = vmatpush1.msra.mxu0 0.0
        %1876 = vmatprep.subr.mxu0 0.0
        %1877 = vmatpush1.msra.mxu0 0.0
        %1878 = vmatprep.subr.mxu0 0.0
        %1879 = vmatpush1.msra.mxu0 0.0
        %1880 = vmatprep.subr.mxu0 0.0
        %1881 = vmatpush1.msra.mxu0 0.0
        %1882 = vmatprep.subr.mxu0 0.0
        %1883 = vmatpush1.msra.mxu0 0.0
        %1884 = vmatprep.subr.mxu0 0.0
        %1885 = vmatpush1.msra.mxu0 0.0
        %1886 = vmatprep.subr.mxu0 0.0
        %1887 = vmatpush1.msra.mxu0 0.0
        %1888 = vmatprep.subr.mxu0 0.0
        %1889 = vmatpush1.msra.mxu0 0.0
        %1890 = vmatprep.subr.mxu0 0.0
        %1891 = vmatpush1.msra.mxu0 0.0
        %1892 = vmatprep.subr.mxu0 0.0
        %1893 = vmatpush1.msra.mxu0 0.0
        %1894 = vmatprep.subr.mxu0 0.0
        %1895 = vmatpush1.msra.mxu0 0.0
        %1896 = vmatprep.subr.mxu0 0.0
        %1897 = vmatpush1.msra.mxu0 0.0
        %1898 = vmatprep.subr.mxu0 0.0
        %1899 = vmatpush1.msra.mxu0 0.0
        %1900 = vmatprep.subr.mxu0 0.0
        %1901 = vmatpush1.msra.mxu0 0.0
        %1902 = vmatprep.mubr.f32.mxu0 0.0
        %1903 = vmatmul.mubr.f32.gmra.mrb[0].mxu0 %v1695
        %v1904 = vpop.f32.mrb[0].mxu0
        %v1905 = vadd.f32 0.0, %v1904
        %v1906 = vpop.f32.mrb[0].mxu0
        %1907 = vdwg.mxu0
        %1908 = vmatprep.subr.mxu0 0.0
        %1909 = vmatpush1.msra.mxu0 %v1675
        %1910 = vmatprep.subr.mxu0 0.0
        %1911 = vmatpush1.msra.mxu0 %v1676
        %1912 = vmatprep.subr.mxu0 0.0
        %1913 = vmatpush1.msra.mxu0 %v1677
        %1914 = vmatprep.subr.mxu0 0.0
        %1915 = vmatpush1.msra.mxu0 %v1678
        %1916 = vmatprep.subr.mxu0 0.0
        %1917 = vmatpush1.msra.mxu0 %v1679
        %1918 = vmatprep.subr.mxu0 0.0
        %1919 = vmatpush1.msra.mxu0 %v1680
        %1920 = vmatprep.subr.mxu0 0.0
        %1921 = vmatpush1.msra.mxu0 %v1681
        %1922 = vmatprep.subr.mxu0 0.0
        %1923 = vmatpush1.msra.mxu0 %v1682
        %1924 = vmatprep.subr.mxu0 0.0
        %1925 = vmatpush1.msra.mxu0 %v1683
        %1926 = vmatprep.subr.mxu0 0.0
        %1927 = vmatpush1.msra.mxu0 %v1684
        %1928 = vmatprep.subr.mxu0 0.0
        %1929 = vmatpush1.msra.mxu0 %v1685
        %1930 = vmatprep.subr.mxu0 0.0
        %1931 = vmatpush1.msra.mxu0 %v1686
        %1932 = vmatprep.subr.mxu0 0.0
        %1933 = vmatpush1.msra.mxu0 %v1687
        %1934 = vmatprep.subr.mxu0 0.0
        %1935 = vmatpush1.msra.mxu0 %v1688
        %1936 = vmatprep.subr.mxu0 0.0
        %1937 = vmatpush1.msra.mxu0 %v1689
        %1938 = vmatprep.subr.mxu0 0.0
        %1939 = vmatpush1.msra.mxu0 %v1690
        %1940 = vmatprep.subr.mxu0 0.0
        %1941 = vmatpush1.msra.mxu0 0.0
        %1942 = vmatprep.subr.mxu0 0.0
        %1943 = vmatpush1.msra.mxu0 0.0
        %1944 = vmatprep.subr.mxu0 0.0
        %1945 = vmatpush1.msra.mxu0 0.0
        %1946 = vmatprep.subr.mxu0 0.0
        %1947 = vmatpush1.msra.mxu0 0.0
        %1948 = vmatprep.subr.mxu0 0.0
        %1949 = vmatpush1.msra.mxu0 0.0
        %1950 = vmatprep.subr.mxu0 0.0
        %1951 = vmatpush1.msra.mxu0 0.0
        %1952 = vmatprep.subr.mxu0 0.0
        %1953 = vmatpush1.msra.mxu0 0.0
        %1954 = vmatprep.subr.mxu0 0.0
        %1955 = vmatpush1.msra.mxu0 0.0
        %1956 = vmatprep.subr.mxu0 0.0
        %1957 = vmatpush1.msra.mxu0 0.0
        %1958 = vmatprep.subr.mxu0 0.0
        %1959 = vmatpush1.msra.mxu0 0.0
        %1960 = vmatprep.subr.mxu0 0.0
        %1961 = vmatpush1.msra.mxu0 0.0
        %1962 = vmatprep.subr.mxu0 0.0
        %1963 = vmatpush1.msra.mxu0 0.0
        %1964 = vmatprep.subr.mxu0 0.0
        %1965 = vmatpush1.msra.mxu0 0.0
        %1966 = vmatprep.subr.mxu0 0.0
        %1967 = vmatpush1.msra.mxu0 0.0
        %1968 = vmatprep.subr.mxu0 0.0
        %1969 = vmatpush1.msra.mxu0 0.0
        %1970 = vmatprep.subr.mxu0 0.0
        %1971 = vmatpush1.msra.mxu0 0.0
        %1972 = vmatprep.mubr.f32.mxu0 0.0
        %1973 = vmatmul.mubr.f32.gmra.mrb[0].mxu0 %v1905
        %v1974 = vpop.f32.mrb[0].mxu0
        %v1975 = vadd.f32 0.0, %v1974
        %v1976 = vpop.f32.mrb[0].mxu0
        %1977 = vdwg.mxu0
        %v1978 = vmul.f32 %v1834, %v1834
        %v1979 = vsub.f32 %v1975, %v1978
        %v1980 = vmax.f32 %v1979, 0.0
        %v1981 = vsub.f32 %v1673, %v1834
        %v1982 = vadd.f32 %v1980, 1e-05
        %v1983 = vrsqrt.pop %v1982
        %v1984 = vmul.f32 %v1981, %v1983
        %v1985 = vlaneseq
        %v1986 = vshrl.u32 %v1985, 7
        %v1987 = vsub.s32 0, %v1986
        %v1988 = vrot.slane %v1691, %v1987
        %v1989 = vmul.f32 %v1984, %v1988
        %v1990 = vlaneseq
        %v1991 = vshrl.u32 %v1990, 7
        %v1992 = vsub.s32 0, %v1991
        %v1993 = vrot.slane %v1692, %v1992
        %v1994 = vadd.f32 %v1989, %v1993
        %v1995 = vmul.f32 %v1994, 0.2
        %v1996 = vmax.f32 %v1994, %v1995
        %v1997 = vpack.c.bf16 %v1996, %v1996
        %v1998 = vld [vmem:[%s4] sm:$0x3]
        %v2000 = vsel %vm1693, %v1998, 0
        %vm2002 = vcmask 1043456
        %v2004 = vsel %vm2002, %v1997, 0
        %2006 = vmatprep.subr.bf16.mxu0 0
        %2007 = vmatpush1.bf16.msra.mxu0 %v2004
        %2008 = vmatprep.subr.bf16.mxu0 0
        %2009 = vmatpush1.bf16.msra.mxu0 0
        %2010 = vmatprep.subr.bf16.mxu0 0
        %2011 = vmatpush1.bf16.msra.mxu0 0
        %2012 = vmatprep.subr.bf16.mxu0 0
        %2013 = vmatpush1.bf16.msra.mxu0 0
        %2014 = vmatprep.subr.bf16.mxu0 0
        %2015 = vmatpush1.bf16.msra.mxu0 0
        %2016 = vmatprep.subr.bf16.mxu0 0
        %2017 = vmatpush1.bf16.msra.mxu0 0
        %2018 = vmatprep.subr.bf16.mxu0 0
        %2019 = vmatpush1.bf16.msra.mxu0 0
        %2020 = vmatprep.subr.bf16.mxu0 0
        %2021 = vmatpush1.bf16.msra.mxu0 0
        %2022 = vmatprep.subr.bf16.mxu0 0
        %2023 = vmatpush1.bf16.msra.mxu0 0
        %2024 = vmatprep.subr.bf16.mxu0 0
        %2025 = vmatpush1.bf16.msra.mxu0 0
        %2026 = vmatprep.subr.bf16.mxu0 0
        %2027 = vmatpush1.bf16.msra.mxu0 0
        %2028 = vmatprep.subr.bf16.mxu0 0
        %2029 = vmatpush1.bf16.msra.mxu0 0
        %2030 = vmatprep.subr.bf16.mxu0 0
        %2031 = vmatpush1.bf16.msra.mxu0 0
        %2032 = vmatprep.subr.bf16.mxu0 0
        %2033 = vmatpush1.bf16.msra.mxu0 0
        %2034 = vmatprep.subr.bf16.mxu0 0
        %2035 = vmatpush1.bf16.msra.mxu0 0
        %2036 = vmatprep.subr.bf16.mxu0 0
        %2037 = vmatpush1.bf16.msra.mxu0 0
        %2038 = vmatprep.mubr.bf16.mxu0 0
        %2039 = vmatmul.mubr.bf16.gmra.mrb[0].mxu0 %v2000
        %v2040 = vpop.f32.mrb[0].mxu0
        %v2041 = vadd.f32 0.0, %v2040
        %v2042 = vpop.f32.mrb[0].mxu0
        %v2043 = vpop.f32.mrb[0].mxu0
        %v2044 = vpop.f32.mrb[0].mxu0
        %2045 = vdwg.mxu0
        %v2046 = vpack.c.bf16 %v2041, %v2041
        %s2047 = scalar_lea.vmem [#allocation2], 512
        %v2048 = vld [vmem:[%s2047] sm:$0xf]
        %v2049 = vld [vmem:[%s2047 + $0x4] sm:$0xf]
        %v2050 = vld [vmem:[%s2047 + $0x8] sm:$0xf]
        %v2051 = vld [vmem:[%s2047 + $0xc] sm:$0xf]
        %v2052 = vld [vmem:[%s2047 + $0x10] sm:$0xf]
        %v2053 = vld [vmem:[%s2047 + $0x14] sm:$0xf]
        %v2054 = vld [vmem:[%s2047 + $0x18] sm:$0xf]
        %v2055 = vld [vmem:[%s2047 + $0x1c] sm:$0xf]
        %v2056 = vld [vmem:[%s2047 + $0x20] sm:$0xf]
        %v2057 = vld [vmem:[%s2047 + $0x24] sm:$0xf]
        %v2058 = vld [vmem:[%s2047 + $0x28] sm:$0xf]
        %v2059 = vld [vmem:[%s2047 + $0x2c] sm:$0xf]
        %v2060 = vld [vmem:[%s2047 + $0x30] sm:$0xf]
        %v2061 = vld [vmem:[%s2047 + $0x34] sm:$0xf]
        %v2062 = vld [vmem:[%s2047 + $0x38] sm:$0xf]
        %v2063 = vld [vmem:[%s2047 + $0x3c] sm:$0xf]
        %s2064 = scalar_lea.vmem %s4, 2
        %v2065 = vld [vmem:[%s2064] sm:$0x3]
        %v2067 = vsel %vm1693, %v2065, 0
        %2069 = vmatprep.subr.bf16.mxu0 0
        %2070 = vmatpush1.bf16.msra.mxu0 %v2004
        %2071 = vmatprep.subr.bf16.mxu0 0
        %2072 = vmatpush1.bf16.msra.mxu0 0
        %2073 = vmatprep.subr.bf16.mxu0 0
        %2074 = vmatpush1.bf16.msra.mxu0 0
        %2075 = vmatprep.subr.bf16.mxu0 0
        %2076 = vmatpush1.bf16.msra.mxu0 0
        %2077 = vmatprep.subr.bf16.mxu0 0
        %2078 = vmatpush1.bf16.msra.mxu0 0
        %2079 = vmatprep.subr.bf16.mxu0 0
        %2080 = vmatpush1.bf16.msra.mxu0 0
        %2081 = vmatprep.subr.bf16.mxu0 0
        %2082 = vmatpush1.bf16.msra.mxu0 0
        %2083 = vmatprep.subr.bf16.mxu0 0
        %2084 = vmatpush1.bf16.msra.mxu0 0
        %2085 = vmatprep.subr.bf16.mxu0 0
        %2086 = vmatpush1.bf16.msra.mxu0 0
        %2087 = vmatprep.subr.bf16.mxu0 0
        %2088 = vmatpush1.bf16.msra.mxu0 0
        %2089 = vmatprep.subr.bf16.mxu0 0
        %2090 = vmatpush1.bf16.msra.mxu0 0
        %2091 = vmatprep.subr.bf16.mxu0 0
        %2092 = vmatpush1.bf16.msra.mxu0 0
        %2093 = vmatprep.subr.bf16.mxu0 0
        %2094 = vmatpush1.bf16.msra.mxu0 0
        %2095 = vmatprep.subr.bf16.mxu0 0
        %2096 = vmatpush1.bf16.msra.mxu0 0
        %2097 = vmatprep.subr.bf16.mxu0 0
        %2098 = vmatpush1.bf16.msra.mxu0 0
        %2099 = vmatprep.subr.bf16.mxu0 0
        %2100 = vmatpush1.bf16.msra.mxu0 0
        %2101 = vmatprep.mubr.bf16.mxu0 0
        %2102 = vmatmul.mubr.bf16.gmra.mrb[0].mxu0 %v2067
        %v2103 = vpop.f32.mrb[0].mxu0
        %v2104 = vadd.f32 0.0, %v2103
        %v2105 = vpop.f32.mrb[0].mxu0
        %v2106 = vpop.f32.mrb[0].mxu0
        %v2107 = vpop.f32.mrb[0].mxu0
        %2108 = vdwg.mxu0
        %v2109 = vpack.c.bf16 %v2104, %v2104
        %s2110 = scalar_lea.vmem [#allocation2], 576
        %v2111 = vld [vmem:[%s2110] sm:$0xf]
        %v2112 = vld [vmem:[%s2110 + $0x4] sm:$0xf]
        %v2113 = vld [vmem:[%s2110 + $0x8] sm:$0xf]
        %v2114 = vld [vmem:[%s2110 + $0xc] sm:$0xf]
        %v2115 = vld [vmem:[%s2110 + $0x10] sm:$0xf]
        %v2116 = vld [vmem:[%s2110 + $0x14] sm:$0xf]
        %v2117 = vld [vmem:[%s2110 + $0x18] sm:$0xf]
        %v2118 = vld [vmem:[%s2110 + $0x1c] sm:$0xf]
        %v2119 = vld [vmem:[%s2110 + $0x20] sm:$0xf]
        %v2120 = vld [vmem:[%s2110 + $0x24] sm:$0xf]
        %v2121 = vld [vmem:[%s2110 + $0x28] sm:$0xf]
        %v2122 = vld [vmem:[%s2110 + $0x2c] sm:$0xf]
        %v2123 = vld [vmem:[%s2110 + $0x30] sm:$0xf]
        %v2124 = vld [vmem:[%s2110 + $0x34] sm:$0xf]
        %v2125 = vld [vmem:[%s2110 + $0x38] sm:$0xf]
        %v2126 = vld [vmem:[%s2110 + $0x3c] sm:$0xf]
        %v2143 = vunpack.c.l.b16 %v2111
        %v2144 = vunpack.c.l.b16 %v2112
        %v2145 = vunpack.c.l.b16 %v2113
        %v2146 = vunpack.c.l.b16 %v2114
        %v2147 = vunpack.c.l.b16 %v2115
        %v2148 = vunpack.c.l.b16 %v2116
        %v2149 = vunpack.c.l.b16 %v2117
        %v2150 = vunpack.c.l.b16 %v2118
        %v2151 = vunpack.c.l.b16 %v2119
        %v2152 = vunpack.c.l.b16 %v2120
        %v2153 = vunpack.c.l.b16 %v2121
        %v2154 = vunpack.c.l.b16 %v2122
        %v2155 = vunpack.c.l.b16 %v2123
        %v2156 = vunpack.c.l.b16 %v2124
        %v2157 = vunpack.c.l.b16 %v2125
        %v2158 = vunpack.c.l.b16 %v2126
        %v2159 = vpack.c.b16 %v2144, %v2143
        %v2160 = vpack.c.b16 %v2146, %v2145
        %v2161 = vpack.c.b16 %v2148, %v2147
        %v2162 = vpack.c.b16 %v2150, %v2149
        %v2163 = vpack.c.b16 %v2152, %v2151
        %v2164 = vpack.c.b16 %v2154, %v2153
        %v2165 = vpack.c.b16 %v2156, %v2155
        %v2166 = vpack.c.b16 %v2158, %v2157
        %2175 = vmatprep.subr.bf16.mxu0 0
        %2176 = vmatpush1.bf16.msra.mxu0 %v2159
        %2177 = vmatprep.subr.bf16.mxu0 0
        %2178 = vmatpush1.bf16.msra.mxu0 %v2160
        %2179 = vmatprep.subr.bf16.mxu0 0
        %2180 = vmatpush1.bf16.msra.mxu0 %v2161
        %2181 = vmatprep.subr.bf16.mxu0 0
        %2182 = vmatpush1.bf16.msra.mxu0 %v2162
        %2183 = vmatprep.subr.bf16.mxu0 0
        %2184 = vmatpush1.bf16.msra.mxu0 %v2163
        %2185 = vmatprep.subr.bf16.mxu0 0
        %2186 = vmatpush1.bf16.msra.mxu0 %v2164
        %2187 = vmatprep.subr.bf16.mxu0 0
        %2188 = vmatpush1.bf16.msra.mxu0 %v2165
        %2189 = vmatprep.subr.bf16.mxu0 0
        %2190 = vmatpush1.bf16.msra.mxu0 %v2166
        %2191 = vmatprep.subr.bf16.mxu0 0
        %2192 = vmatpush1.bf16.msra.mxu0 0
        %2193 = vmatprep.subr.bf16.mxu0 0
        %2194 = vmatpush1.bf16.msra.mxu0 0
        %2195 = vmatprep.subr.bf16.mxu0 0
        %2196 = vmatpush1.bf16.msra.mxu0 0
        %2197 = vmatprep.subr.bf16.mxu0 0
        %2198 = vmatpush1.bf16.msra.mxu0 0
        %2199 = vmatprep.subr.bf16.mxu0 0
        %2200 = vmatpush1.bf16.msra.mxu0 0
        %2201 = vmatprep.subr.bf16.mxu0 0
        %2202 = vmatpush1.bf16.msra.mxu0 0
        %2203 = vmatprep.subr.bf16.mxu0 0
        %2204 = vmatpush1.bf16.msra.mxu0 0
        %2205 = vmatprep.subr.bf16.mxu0 0
        %2206 = vmatpush1.bf16.msra.mxu0 0
        %2207 = vmatprep.mubr.bf16.mxu0 0
        %2208 = vmatmul.mubr.bf16.gmra.mrb[0].mxu0 %v2109
        %v2209 = vpop.f32.mrb[0].mxu0
        %v2210 = vadd.f32 0.0, %v2209
        %v2211 = vpop.f32.mrb[0].mxu0
        %v2212 = vpop.f32.mrb[0].mxu0
        %v2213 = vpop.f32.mrb[0].mxu0
        %2214 = vdwg.mxu0
        %v2231 = vunpack.c.l.b16 %v2048
        %v2232 = vunpack.c.l.b16 %v2049
        %v2233 = vunpack.c.l.b16 %v2050
        %v2234 = vunpack.c.l.b16 %v2051
        %v2235 = vunpack.c.l.b16 %v2052
        %v2236 = vunpack.c.l.b16 %v2053
        %v2237 = vunpack.c.l.b16 %v2054
        %v2238 = vunpack.c.l.b16 %v2055
        %v2239 = vunpack.c.l.b16 %v2056
        %v2240 = vunpack.c.l.b16 %v2057
        %v2241 = vunpack.c.l.b16 %v2058
        %v2242 = vunpack.c.l.b16 %v2059
        %v2243 = vunpack.c.l.b16 %v2060
        %v2244 = vunpack.c.l.b16 %v2061
        %v2245 = vunpack.c.l.b16 %v2062
        %v2246 = vunpack.c.l.b16 %v2063
        %v2247 = vpack.c.b16 %v2232, %v2231
        %v2248 = vpack.c.b16 %v2234, %v2233
        %v2249 = vpack.c.b16 %v2236, %v2235
        %v2250 = vpack.c.b16 %v2238, %v2237
        %v2251 = vpack.c.b16 %v2240, %v2239
        %v2252 = vpack.c.b16 %v2242, %v2241
        %v2253 = vpack.c.b16 %v2244, %v2243
        %v2254 = vpack.c.b16 %v2246, %v2245
        %2263 = vmatprep.subr.bf16.mxu0 0
        %2264 = vmatpush1.bf16.msra.mxu0 %v2247
        %2265 = vmatprep.subr.bf16.mxu0 0
        %2266 = vmatpush1.bf16.msra.mxu0 %v2248
        %2267 = vmatprep.subr.bf16.mxu0 0
        %2268 = vmatpush1.bf16.msra.mxu0 %v2249
        %2269 = vmatprep.subr.bf16.mxu0 0
        %2270 = vmatpush1.bf16.msra.mxu0 %v2250
        %2271 = vmatprep.subr.bf16.mxu0 0
        %2272 = vmatpush1.bf16.msra.mxu0 %v2251
        %2273 = vmatprep.subr.bf16.mxu0 0
        %2274 = vmatpush1.bf16.msra.mxu0 %v2252
        %2275 = vmatprep.subr.bf16.mxu0 0
        %2276 = vmatpush1.bf16.msra.mxu0 %v2253
        %2277 = vmatprep.subr.bf16.mxu0 0
        %2278 = vmatpush1.bf16.msra.mxu0 %v2254
        %2279 = vmatprep.subr.bf16.mxu0 0
        %2280 = vmatpush1.bf16.msra.mxu0 0
        %2281 = vmatprep.subr.bf16.mxu0 0
        %2282 = vmatpush1.bf16.msra.mxu0 0
        %2283 = vmatprep.subr.bf16.mxu0 0
        %2284 = vmatpush1.bf16.msra.mxu0 0
        %2285 = vmatprep.subr.bf16.mxu0 0
        %2286 = vmatpush1.bf16.msra.mxu0 0
        %2287 = vmatprep.subr.bf16.mxu0 0
        %2288 = vmatpush1.bf16.msra.mxu0 0
        %2289 = vmatprep.subr.bf16.mxu0 0
        %2290 = vmatpush1.bf16.msra.mxu0 0
        %2291 = vmatprep.subr.bf16.mxu0 0
        %2292 = vmatpush1.bf16.msra.mxu0 0
        %2293 = vmatprep.subr.bf16.mxu0 0
        %2294 = vmatpush1.bf16.msra.mxu0 0
        %2295 = vmatprep.mubr.bf16.mxu0 0
        %2296 = vmatmul.mubr.bf16.gmra.mrb[0].mxu0 %v2046
        %v2297 = vpop.f32.mrb[0].mxu0
        %v2298 = vadd.f32 %v2210, %v2297
        %v2299 = vpop.f32.mrb[0].mxu0
        %v2300 = vpop.f32.mrb[0].mxu0
        %v2301 = vpop.f32.mrb[0].mxu0
        %2302 = vdwg.mxu0
        %s2303 = scalar_lea.vmem %s4, 4
        %v2304 = vld [vmem:[%s2303] sm:$0x3]
        %v2306 = vsel %vm1693, %v2304, 0
        %2308 = vmatprep.subr.bf16.mxu0 0
        %2309 = vmatpush1.bf16.msra.mxu0 %v2004
        %2310 = vmatprep.subr.bf16.mxu0 0
        %2311 = vmatpush1.bf16.msra.mxu0 0
        %2312 = vmatprep.subr.bf16.mxu0 0
        %2313 = vmatpush1.bf16.msra.mxu0 0
        %2314 = vmatprep.subr.bf16.mxu0 0
        %2315 = vmatpush1.bf16.msra.mxu0 0
        %2316 = vmatprep.subr.bf16.mxu0 0
        %2317 = vmatpush1.bf16.msra.mxu0 0
        %2318 = vmatprep.subr.bf16.mxu0 0
        %2319 = vmatpush1.bf16.msra.mxu0 0
        %2320 = vmatprep.subr.bf16.mxu0 0
        %2321 = vmatpush1.bf16.msra.mxu0 0
        %2322 = vmatprep.subr.bf16.mxu0 0
        %2323 = vmatpush1.bf16.msra.mxu0 0
        %2324 = vmatprep.subr.bf16.mxu0 0
        %2325 = vmatpush1.bf16.msra.mxu0 0
        %2326 = vmatprep.subr.bf16.mxu0 0
        %2327 = vmatpush1.bf16.msra.mxu0 0
        %2328 = vmatprep.subr.bf16.mxu0 0
        %2329 = vmatpush1.bf16.msra.mxu0 0
        %2330 = vmatprep.subr.bf16.mxu0 0
        %2331 = vmatpush1.bf16.msra.mxu0 0
        %2332 = vmatprep.subr.bf16.mxu0 0
        %2333 = vmatpush1.bf16.msra.mxu0 0
        %2334 = vmatprep.subr.bf16.mxu0 0
        %2335 = vmatpush1.bf16.msra.mxu0 0
        %2336 = vmatprep.subr.bf16.mxu0 0
        %2337 = vmatpush1.bf16.msra.mxu0 0
        %2338 = vmatprep.subr.bf16.mxu0 0
        %2339 = vmatpush1.bf16.msra.mxu0 0
        %2340 = vmatprep.mubr.bf16.mxu0 0
        %2341 = vmatmul.mubr.bf16.gmra.mrb[0].mxu0 %v2306
        %v2342 = vpop.f32.mrb[0].mxu0
        %v2343 = vadd.f32 0.0, %v2342
        %v2344 = vpop.f32.mrb[0].mxu0
        %v2345 = vpop.f32.mrb[0].mxu0
        %v2346 = vpop.f32.mrb[0].mxu0
        %2347 = vdwg.mxu0
        %v2348 = vpack.c.bf16 %v2343, %v2343
        %s2349 = scalar_lea.vmem [#allocation2], 640
        %v2350 = vld [vmem:[%s2349] sm:$0xf]
        %v2351 = vld [vmem:[%s2349 + $0x4] sm:$0xf]
        %v2352 = vld [vmem:[%s2349 + $0x8] sm:$0xf]
        %v2353 = vld [vmem:[%s2349 + $0xc] sm:$0xf]
        %v2354 = vld [vmem:[%s2349 + $0x10] sm:$0xf]
        %v2355 = vld [vmem:[%s2349 + $0x14] sm:$0xf]
        %v2356 = vld [vmem:[%s2349 + $0x18] sm:$0xf]
        %v2357 = vld [vmem:[%s2349 + $0x1c] sm:$0xf]
        %v2358 = vld [vmem:[%s2349 + $0x20] sm:$0xf]
        %v2359 = vld [vmem:[%s2349 + $0x24] sm:$0xf]
        %v2360 = vld [vmem:[%s2349 + $0x28] sm:$0xf]
        %v2361 = vld [vmem:[%s2349 + $0x2c] sm:$0xf]
        %v2362 = vld [vmem:[%s2349 + $0x30] sm:$0xf]
        %v2363 = vld [vmem:[%s2349 + $0x34] sm:$0xf]
        %v2364 = vld [vmem:[%s2349 + $0x38] sm:$0xf]
        %v2365 = vld [vmem:[%s2349 + $0x3c] sm:$0xf]
        %v2382 = vunpack.c.l.b16 %v2350
        %v2383 = vunpack.c.l.b16 %v2351
        %v2384 = vunpack.c.l.b16 %v2352
        %v2385 = vunpack.c.l.b16 %v2353
        %v2386 = vunpack.c.l.b16 %v2354
        %v2387 = vunpack.c.l.b16 %v2355
        %v2388 = vunpack.c.l.b16 %v2356
        %v2389 = vunpack.c.l.b16 %v2357
        %v2390 = vunpack.c.l.b16 %v2358
        %v2391 = vunpack.c.l.b16 %v2359
        %v2392 = vunpack.c.l.b16 %v2360
        %v2393 = vunpack.c.l.b16 %v2361
        %v2394 = vunpack.c.l.b16 %v2362
        %v2395 = vunpack.c.l.b16 %v2363
        %v2396 = vunpack.c.l.b16 %v2364
        %v2397 = vunpack.c.l.b16 %v2365
        %v2398 = vpack.c.b16 %v2383, %v2382
        %v2399 = vpack.c.b16 %v2385, %v2384
        %v2400 = vpack.c.b16 %v2387, %v2386
        %v2401 = vpack.c.b16 %v2389, %v2388
        %v2402 = vpack.c.b16 %v2391, %v2390
        %v2403 = vpack.c.b16 %v2393, %v2392
        %v2404 = vpack.c.b16 %v2395, %v2394
        %v2405 = vpack.c.b16 %v2397, %v2396
        %2414 = vmatprep.subr.bf16.mxu0 0
        %2415 = vmatpush1.bf16.msra.mxu0 %v2398
        %2416 = vmatprep.subr.bf16.mxu0 0
        %2417 = vmatpush1.bf16.msra.mxu0 %v2399
        %2418 = vmatprep.subr.bf16.mxu0 0
        %2419 = vmatpush1.bf16.msra.mxu0 %v2400
        %2420 = vmatprep.subr.bf16.mxu0 0
        %2421 = vmatpush1.bf16.msra.mxu0 %v2401
        %2422 = vmatprep.subr.bf16.mxu0 0
        %2423 = vmatpush1.bf16.msra.mxu0 %v2402
        %2424 = vmatprep.subr.bf16.mxu0 0
        %2425 = vmatpush1.bf16.msra.mxu0 %v2403
        %2426 = vmatprep.subr.bf16.mxu0 0
        %2427 = vmatpush1.bf16.msra.mxu0 %v2404
        %2428 = vmatprep.subr.bf16.mxu0 0
        %2429 = vmatpush1.bf16.msra.mxu0 %v2405
        %2430 = vmatprep.subr.bf16.mxu0 0
        %2431 = vmatpush1.bf16.msra.mxu0 0
        %2432 = vmatprep.subr.bf16.mxu0 0
        %2433 = vmatpush1.bf16.msra.mxu0 0
        %2434 = vmatprep.subr.bf16.mxu0 0
        %2435 = vmatpush1.bf16.msra.mxu0 0
        %2436 = vmatprep.subr.bf16.mxu0 0
        %2437 = vmatpush1.bf16.msra.mxu0 0
        %2438 = vmatprep.subr.bf16.mxu0 0
        %2439 = vmatpush1.bf16.msra.mxu0 0
        %2440 = vmatprep.subr.bf16.mxu0 0
        %2441 = vmatpush1.bf16.msra.mxu0 0
        %2442 = vmatprep.subr.bf16.mxu0 0
        %2443 = vmatpush1.bf16.msra.mxu0 0
        %2444 = vmatprep.subr.bf16.mxu0 0
        %2445 = vmatpush1.bf16.msra.mxu0 0
        %2446 = vmatprep.mubr.bf16.mxu0 0
        %2447 = vmatmul.mubr.bf16.gmra.mrb[0].mxu0 %v2348
        %v2448 = vpop.f32.mrb[0].mxu0
        %v2449 = vadd.f32 0.0, %v2448
        %v2450 = vpop.f32.mrb[0].mxu0
        %v2451 = vpop.f32.mrb[0].mxu0
        %v2452 = vpop.f32.mrb[0].mxu0
        %2453 = vdwg.mxu0
        %v2454 = vadd.f32 %v2298, %v2449
        %s2455 = scalar_lea.vmem %s4, 6
        %v2456 = vld [vmem:[%s2455] sm:$0x3]
        %v2458 = vsel %vm1693, %v2456, 0
        %2460 = vmatprep.subr.bf16.mxu0 0
        %2461 = vmatpush1.bf16.msra.mxu0 %v2004
        %2462 = vmatprep.subr.bf16.mxu0 0
        %2463 = vmatpush1.bf16.msra.mxu0 0
        %2464 = vmatprep.subr.bf16.mxu0 0
        %2465 = vmatpush1.bf16.msra.mxu0 0
        %2466 = vmatprep.subr.bf16.mxu0 0
        %2467 = vmatpush1.bf16.msra.mxu0 0
        %2468 = vmatprep.subr.bf16.mxu0 0
        %2469 = vmatpush1.bf16.msra.mxu0 0
        %2470 = vmatprep.subr.bf16.mxu0 0
        %2471 = vmatpush1.bf16.msra.mxu0 0
        %2472 = vmatprep.subr.bf16.mxu0 0
        %2473 = vmatpush1.bf16.msra.mxu0 0
        %2474 = vmatprep.subr.bf16.mxu0 0
        %2475 = vmatpush1.bf16.msra.mxu0 0
        %2476 = vmatprep.subr.bf16.mxu0 0
        %2477 = vmatpush1.bf16.msra.mxu0 0
        %2478 = vmatprep.subr.bf16.mxu0 0
        %2479 = vmatpush1.bf16.msra.mxu0 0
        %2480 = vmatprep.subr.bf16.mxu0 0
        %2481 = vmatpush1.bf16.msra.mxu0 0
        %2482 = vmatprep.subr.bf16.mxu0 0
        %2483 = vmatpush1.bf16.msra.mxu0 0
        %2484 = vmatprep.subr.bf16.mxu0 0
        %2485 = vmatpush1.bf16.msra.mxu0 0
        %2486 = vmatprep.subr.bf16.mxu0 0
        %2487 = vmatpush1.bf16.msra.mxu0 0
        %2488 = vmatprep.subr.bf16.mxu0 0
        %2489 = vmatpush1.bf16.msra.mxu0 0
        %2490 = vmatprep.subr.bf16.mxu0 0
        %2491 = vmatpush1.bf16.msra.mxu0 0
        %2492 = vmatprep.mubr.bf16.mxu0 0
        %2493 = vmatmul.mubr.bf16.gmra.mrb[0].mxu0 %v2458
        %v2494 = vpop.f32.mrb[0].mxu0
        %v2495 = vadd.f32 0.0, %v2494
        %v2496 = vpop.f32.mrb[0].mxu0
        %v2497 = vpop.f32.mrb[0].mxu0
        %v2498 = vpop.f32.mrb[0].mxu0
        %2499 = vdwg.mxu0
        %v2500 = vpack.c.bf16 %v2495, %v2495
        %s2501 = scalar_lea.vmem [#allocation2], 704
        %v2502 = vld [vmem:[%s2501] sm:$0xf]
        %v2503 = vld [vmem:[%s2501 + $0x4] sm:$0xf]
        %v2504 = vld [vmem:[%s2501 + $0x8] sm:$0xf]
        %v2505 = vld [vmem:[%s2501 + $0xc] sm:$0xf]
        %v2506 = vld [vmem:[%s2501 + $0x10] sm:$0xf]
        %v2507 = vld [vmem:[%s2501 + $0x14] sm:$0xf]
        %v2508 = vld [vmem:[%s2501 + $0x18] sm:$0xf]
        %v2509 = vld [vmem:[%s2501 + $0x1c] sm:$0xf]
        %v2510 = vld [vmem:[%s2501 + $0x20] sm:$0xf]
        %v2511 = vld [vmem:[%s2501 + $0x24] sm:$0xf]
        %v2512 = vld [vmem:[%s2501 + $0x28] sm:$0xf]
        %v2513 = vld [vmem:[%s2501 + $0x2c] sm:$0xf]
        %v2514 = vld [vmem:[%s2501 + $0x30] sm:$0xf]
        %v2515 = vld [vmem:[%s2501 + $0x34] sm:$0xf]
        %v2516 = vld [vmem:[%s2501 + $0x38] sm:$0xf]
        %v2517 = vld [vmem:[%s2501 + $0x3c] sm:$0xf]
        %v2534 = vunpack.c.l.b16 %v2502
        %v2535 = vunpack.c.l.b16 %v2503
        %v2536 = vunpack.c.l.b16 %v2504
        %v2537 = vunpack.c.l.b16 %v2505
        %v2538 = vunpack.c.l.b16 %v2506
        %v2539 = vunpack.c.l.b16 %v2507
        %v2540 = vunpack.c.l.b16 %v2508
        %v2541 = vunpack.c.l.b16 %v2509
        %v2542 = vunpack.c.l.b16 %v2510
        %v2543 = vunpack.c.l.b16 %v2511
        %v2544 = vunpack.c.l.b16 %v2512
        %v2545 = vunpack.c.l.b16 %v2513
        %v2546 = vunpack.c.l.b16 %v2514
        %v2547 = vunpack.c.l.b16 %v2515
        %v2548 = vunpack.c.l.b16 %v2516
        %v2549 = vunpack.c.l.b16 %v2517
        %v2550 = vpack.c.b16 %v2535, %v2534
        %v2551 = vpack.c.b16 %v2537, %v2536
        %v2552 = vpack.c.b16 %v2539, %v2538
        %v2553 = vpack.c.b16 %v2541, %v2540
        %v2554 = vpack.c.b16 %v2543, %v2542
        %v2555 = vpack.c.b16 %v2545, %v2544
        %v2556 = vpack.c.b16 %v2547, %v2546
        %v2557 = vpack.c.b16 %v2549, %v2548
        %2566 = vmatprep.subr.bf16.mxu0 0
        %2567 = vmatpush1.bf16.msra.mxu0 %v2550
        %2568 = vmatprep.subr.bf16.mxu0 0
        %2569 = vmatpush1.bf16.msra.mxu0 %v2551
        %2570 = vmatprep.subr.bf16.mxu0 0
        %2571 = vmatpush1.bf16.msra.mxu0 %v2552
        %2572 = vmatprep.subr.bf16.mxu0 0
        %2573 = vmatpush1.bf16.msra.mxu0 %v2553
        %2574 = vmatprep.subr.bf16.mxu0 0
        %2575 = vmatpush1.bf16.msra.mxu0 %v2554
        %2576 = vmatprep.subr.bf16.mxu0 0
        %2577 = vmatpush1.bf16.msra.mxu0 %v2555
        %2578 = vmatprep.subr.bf16.mxu0 0
        %2579 = vmatpush1.bf16.msra.mxu0 %v2556
        %2580 = vmatprep.subr.bf16.mxu0 0
        %2581 = vmatpush1.bf16.msra.mxu0 %v2557
        %2582 = vmatprep.subr.bf16.mxu0 0
        %2583 = vmatpush1.bf16.msra.mxu0 0
        %2584 = vmatprep.subr.bf16.mxu0 0
        %2585 = vmatpush1.bf16.msra.mxu0 0
        %2586 = vmatprep.subr.bf16.mxu0 0
        %2587 = vmatpush1.bf16.msra.mxu0 0
        %2588 = vmatprep.subr.bf16.mxu0 0
        %2589 = vmatpush1.bf16.msra.mxu0 0
        %2590 = vmatprep.subr.bf16.mxu0 0
        %2591 = vmatpush1.bf16.msra.mxu0 0
        %2592 = vmatprep.subr.bf16.mxu0 0
        %2593 = vmatpush1.bf16.msra.mxu0 0
        %2594 = vmatprep.subr.bf16.mxu0 0
        %2595 = vmatpush1.bf16.msra.mxu0 0
        %2596 = vmatprep.subr.bf16.mxu0 0
        %2597 = vmatpush1.bf16.msra.mxu0 0
        %2598 = vmatprep.mubr.bf16.mxu0 0
        %2599 = vmatmul.mubr.bf16.gmra.mrb[0].mxu0 %v2500
        %v2600 = vpop.f32.mrb[0].mxu0
        %v2601 = vadd.f32 0.0, %v2600
        %v2602 = vpop.f32.mrb[0].mxu0
        %v2603 = vpop.f32.mrb[0].mxu0
        %v2604 = vpop.f32.mrb[0].mxu0
        %2605 = vdwg.mxu0
        %v2606 = vadd.f32 %v2454, %v2601
        %v2607 = vld [vmem:[%s7] sm:$0xf]
        %v2608 = vld [vmem:[%s9] sm:$0xff]
        %v2609 = vld [vmem:[%s9 + $0x8] sm:$0xff]
        %v2610 = vld [vmem:[%s9 + $0x10] sm:$0xff]
        %v2611 = vld [vmem:[%s9 + $0x18] sm:$0xff]
        %v2612 = vld [vmem:[%s9 + $0x20] sm:$0xff]
        %v2613 = vld [vmem:[%s9 + $0x28] sm:$0xff]
        %v2614 = vld [vmem:[%s9 + $0x30] sm:$0xff]
        %v2615 = vld [vmem:[%s9 + $0x38] sm:$0xff]
        %v2616 = vld [vmem:[%s9 + $0x40] sm:$0xff]
        %v2617 = vld [vmem:[%s9 + $0x48] sm:$0xff]
        %v2618 = vld [vmem:[%s9 + $0x50] sm:$0xff]
        %v2619 = vld [vmem:[%s9 + $0x58] sm:$0xff]
        %v2620 = vld [vmem:[%s9 + $0x60] sm:$0xff]
        %v2621 = vld [vmem:[%s9 + $0x68] sm:$0xff]
        %v2622 = vld [vmem:[%s9 + $0x70] sm:$0xff]
        %v2623 = vld [vmem:[%s9 + $0x78] sm:$0xff]
        %v2624 = vld [vmem:[%s10 + $0x3] sm:$0x1]
        %v2625 = vld [vmem:[%s10 + $0x4] sm:$0x1]
        %vm2626 = vcmask 31744
        %v2628 = vsel %vm2626, %v2607, 0
        %v2631 = vsel %vm2002, %v2606, 0
        %2633 = vmatprep.subr.mxu0 0.0
        %2634 = vmatpush1.msra.mxu0 %v2631
        %2635 = vmatprep.subr.mxu0 0.0
        %2636 = vmatpush1.msra.mxu0 0.0
        %2637 = vmatprep.subr.mxu0 0.0
        %2638 = vmatpush1.msra.mxu0 0.0
        %2639 = vmatprep.subr.mxu0 0.0
        %2640 = vmatpush1.msra.mxu0 0.0
        %2641 = vmatprep.subr.mxu0 0.0
        %2642 = vmatpush1.msra.mxu0 0.0
        %2643 = vmatprep.subr.mxu0 0.0
        %2644 = vmatpush1.msra.mxu0 0.0
        %2645 = vmatprep.subr.mxu0 0.0
        %2646 = vmatpush1.msra.mxu0 0.0
        %2647 = vmatprep.subr.mxu0 0.0
        %2648 = vmatpush1.msra.mxu0 0.0
        %2649 = vmatprep.subr.mxu0 0.0
        %2650 = vmatpush1.msra.mxu0 0.0
        %2651 = vmatprep.subr.mxu0 0.0
        %2652 = vmatpush1.msra.mxu0 0.0
        %2653 = vmatprep.subr.mxu0 0.0
        %2654 = vmatpush1.msra.mxu0 0.0
        %2655 = vmatprep.subr.mxu0 0.0
        %2656 = vmatpush1.msra.mxu0 0.0
        %2657 = vmatprep.subr.mxu0 0.0
        %2658 = vmatpush1.msra.mxu0 0.0
        %2659 = vmatprep.subr.mxu0 0.0
        %2660 = vmatpush1.msra.mxu0 0.0
        %2661 = vmatprep.subr.mxu0 0.0
        %2662 = vmatpush1.msra.mxu0 0.0
        %2663 = vmatprep.subr.mxu0 0.0
        %2664 = vmatpush1.msra.mxu0 0.0
        %2665 = vmatprep.subr.mxu0 0.0
        %2666 = vmatpush1.msra.mxu0 0.0
        %2667 = vmatprep.subr.mxu0 0.0
        %2668 = vmatpush1.msra.mxu0 0.0
        %2669 = vmatprep.subr.mxu0 0.0
        %2670 = vmatpush1.msra.mxu0 0.0
        %2671 = vmatprep.subr.mxu0 0.0
        %2672 = vmatpush1.msra.mxu0 0.0
        %2673 = vmatprep.subr.mxu0 0.0
        %2674 = vmatpush1.msra.mxu0 0.0
        %2675 = vmatprep.subr.mxu0 0.0
        %2676 = vmatpush1.msra.mxu0 0.0
        %2677 = vmatprep.subr.mxu0 0.0
        %2678 = vmatpush1.msra.mxu0 0.0
        %2679 = vmatprep.subr.mxu0 0.0
        %2680 = vmatpush1.msra.mxu0 0.0
        %2681 = vmatprep.subr.mxu0 0.0
        %2682 = vmatpush1.msra.mxu0 0.0
        %2683 = vmatprep.subr.mxu0 0.0
        %2684 = vmatpush1.msra.mxu0 0.0
        %2685 = vmatprep.subr.mxu0 0.0
        %2686 = vmatpush1.msra.mxu0 0.0
        %2687 = vmatprep.subr.mxu0 0.0
        %2688 = vmatpush1.msra.mxu0 0.0
        %2689 = vmatprep.subr.mxu0 0.0
        %2690 = vmatpush1.msra.mxu0 0.0
        %2691 = vmatprep.subr.mxu0 0.0
        %2692 = vmatpush1.msra.mxu0 0.0
        %2693 = vmatprep.subr.mxu0 0.0
        %2694 = vmatpush1.msra.mxu0 0.0
        %2695 = vmatprep.subr.mxu0 0.0
        %2696 = vmatpush1.msra.mxu0 0.0
        %2697 = vmatprep.mubr.f32.mxu0 0.0
        %2698 = vmatmul.mubr.f32.gmra.mrb[0].mxu0 %v2628
        %v2699 = vpop.f32.mrb[0].mxu0
        %v2700 = vadd.f32 0.0, %v2699
        %v2701 = vpop.f32.mrb[0].mxu0
        %2702 = vdwg.mxu0
        %2703 = vmatprep.subr.mxu0 0.0
        %2704 = vmatpush1.msra.mxu0 %v2608
        %2705 = vmatprep.subr.mxu0 0.0
        %2706 = vmatpush1.msra.mxu0 %v2609
        %2707 = vmatprep.subr.mxu0 0.0
        %2708 = vmatpush1.msra.mxu0 %v2610
        %2709 = vmatprep.subr.mxu0 0.0
        %2710 = vmatpush1.msra.mxu0 %v2611
        %2711 = vmatprep.subr.mxu0 0.0
        %2712 = vmatpush1.msra.mxu0 %v2612
        %2713 = vmatprep.subr.mxu0 0.0
        %2714 = vmatpush1.msra.mxu0 %v2613
        %2715 = vmatprep.subr.mxu0 0.0
        %2716 = vmatpush1.msra.mxu0 %v2614
        %2717 = vmatprep.subr.mxu0 0.0
        %2718 = vmatpush1.msra.mxu0 %v2615
        %2719 = vmatprep.subr.mxu0 0.0
        %2720 = vmatpush1.msra.mxu0 %v2616
        %2721 = vmatprep.subr.mxu0 0.0
        %2722 = vmatpush1.msra.mxu0 %v2617
        %2723 = vmatprep.subr.mxu0 0.0
        %2724 = vmatpush1.msra.mxu0 %v2618
        %2725 = vmatprep.subr.mxu0 0.0
        %2726 = vmatpush1.msra.mxu0 %v2619
        %2727 = vmatprep.subr.mxu0 0.0
        %2728 = vmatpush1.msra.mxu0 %v2620
        %2729 = vmatprep.subr.mxu0 0.0
        %2730 = vmatpush1.msra.mxu0 %v2621
        %2731 = vmatprep.subr.mxu0 0.0
        %2732 = vmatpush1.msra.mxu0 %v2622
        %2733 = vmatprep.subr.mxu0 0.0
        %2734 = vmatpush1.msra.mxu0 %v2623
        %2735 = vmatprep.subr.mxu0 0.0
        %2736 = vmatpush1.msra.mxu0 0.0
        %2737 = vmatprep.subr.mxu0 0.0
        %2738 = vmatpush1.msra.mxu0 0.0
        %2739 = vmatprep.subr.mxu0 0.0
        %2740 = vmatpush1.msra.mxu0 0.0
        %2741 = vmatprep.subr.mxu0 0.0
        %2742 = vmatpush1.msra.mxu0 0.0
        %2743 = vmatprep.subr.mxu0 0.0
        %2744 = vmatpush1.msra.mxu0 0.0
        %2745 = vmatprep.subr.mxu0 0.0
        %2746 = vmatpush1.msra.mxu0 0.0
        %2747 = vmatprep.subr.mxu0 0.0
        %2748 = vmatpush1.msra.mxu0 0.0
        %2749 = vmatprep.subr.mxu0 0.0
        %2750 = vmatpush1.msra.mxu0 0.0
        %2751 = vmatprep.subr.mxu0 0.0
        %2752 = vmatpush1.msra.mxu0 0.0
        %2753 = vmatprep.subr.mxu0 0.0
        %2754 = vmatpush1.msra.mxu0 0.0
        %2755 = vmatprep.subr.mxu0 0.0
        %2756 = vmatpush1.msra.mxu0 0.0
        %2757 = vmatprep.subr.mxu0 0.0
        %2758 = vmatpush1.msra.mxu0 0.0
        %2759 = vmatprep.subr.mxu0 0.0
        %2760 = vmatpush1.msra.mxu0 0.0
        %2761 = vmatprep.subr.mxu0 0.0
        %2762 = vmatpush1.msra.mxu0 0.0
        %2763 = vmatprep.subr.mxu0 0.0
        %2764 = vmatpush1.msra.mxu0 0.0
        %2765 = vmatprep.subr.mxu0 0.0
        %2766 = vmatpush1.msra.mxu0 0.0
        %2767 = vmatprep.mubr.f32.mxu0 0.0
        %2768 = vmatmul.mubr.f32.gmra.mrb[0].mxu0 %v2700
        %v2769 = vpop.f32.mrb[0].mxu0
        %v2770 = vadd.f32 0.0, %v2769
        %v2771 = vpop.f32.mrb[0].mxu0
        %2772 = vdwg.mxu0
        %v2773 = vmul.f32 %v2606, %v2606
        %v2775 = vsel %vm2002, %v2773, 0
        %2777 = vmatprep.subr.mxu0 0.0
        %2778 = vmatpush1.msra.mxu0 %v2775
        %2779 = vmatprep.subr.mxu0 0.0
        %2780 = vmatpush1.msra.mxu0 0.0
        %2781 = vmatprep.subr.mxu0 0.0
        %2782 = vmatpush1.msra.mxu0 0.0
        %2783 = vmatprep.subr.mxu0 0.0
        %2784 = vmatpush1.msra.mxu0 0.0
        %2785 = vmatprep.subr.mxu0 0.0
        %2786 = vmatpush1.msra.mxu0 0.0
        %2787 = vmatprep.subr.mxu0 0.0
        %2788 = vmatpush1.msra.mxu0 0.0
        %2789 = vmatprep.subr.mxu0 0.0
        %2790 = vmatpush1.msra.mxu0 0.0
        %2791 = vmatprep.subr.mxu0 0.0
        %2792 = vmatpush1.msra.mxu0 0.0
        %2793 = vmatprep.subr.mxu0 0.0
        %2794 = vmatpush1.msra.mxu0 0.0
        %2795 = vmatprep.subr.mxu0 0.0
        %2796 = vmatpush1.msra.mxu0 0.0
        %2797 = vmatprep.subr.mxu0 0.0
        %2798 = vmatpush1.msra.mxu0 0.0
        %2799 = vmatprep.subr.mxu0 0.0
        %2800 = vmatpush1.msra.mxu0 0.0
        %2801 = vmatprep.subr.mxu0 0.0
        %2802 = vmatpush1.msra.mxu0 0.0
        %2803 = vmatprep.subr.mxu0 0.0
        %2804 = vmatpush1.msra.mxu0 0.0
        %2805 = vmatprep.subr.mxu0 0.0
        %2806 = vmatpush1.msra.mxu0 0.0
        %2807 = vmatprep.subr.mxu0 0.0
        %2808 = vmatpush1.msra.mxu0 0.0
        %2809 = vmatprep.subr.mxu0 0.0
        %2810 = vmatpush1.msra.mxu0 0.0
        %2811 = vmatprep.subr.mxu0 0.0
        %2812 = vmatpush1.msra.mxu0 0.0
        %2813 = vmatprep.subr.mxu0 0.0
        %2814 = vmatpush1.msra.mxu0 0.0
        %2815 = vmatprep.subr.mxu0 0.0
        %2816 = vmatpush1.msra.mxu0 0.0
        %2817 = vmatprep.subr.mxu0 0.0
        %2818 = vmatpush1.msra.mxu0 0.0
        %2819 = vmatprep.subr.mxu0 0.0
        %2820 = vmatpush1.msra.mxu0 0.0
        %2821 = vmatprep.subr.mxu0 0.0
        %2822 = vmatpush1.msra.mxu0 0.0
        %2823 = vmatprep.subr.mxu0 0.0
        %2824 = vmatpush1.msra.mxu0 0.0
        %2825 = vmatprep.subr.mxu0 0.0
        %2826 = vmatpush1.msra.mxu0 0.0
        %2827 = vmatprep.subr.mxu0 0.0
        %2828 = vmatpush1.msra.mxu0 0.0
        %2829 = vmatprep.subr.mxu0 0.0
        %2830 = vmatpush1.msra.mxu0 0.0
        %2831 = vmatprep.subr.mxu0 0.0
        %2832 = vmatpush1.msra.mxu0 0.0
        %2833 = vmatprep.subr.mxu0 0.0
        %2834 = vmatpush1.msra.mxu0 0.0
        %2835 = vmatprep.subr.mxu0 0.0
        %2836 = vmatpush1.msra.mxu0 0.0
        %2837 = vmatprep.subr.mxu0 0.0
        %2838 = vmatpush1.msra.mxu0 0.0
        %2839 = vmatprep.subr.mxu0 0.0
        %2840 = vmatpush1.msra.mxu0 0.0
        %2841 = vmatprep.mubr.f32.mxu0 0.0
        %2842 = vmatmul.mubr.f32.gmra.mrb[0].mxu0 %v2628
        %v2843 = vpop.f32.mrb[0].mxu0
        %v2844 = vadd.f32 0.0, %v2843
        %v2845 = vpop.f32.mrb[0].mxu0
        %2846 = vdwg.mxu0
        %2847 = vmatprep.subr.mxu0 0.0
        %2848 = vmatpush1.msra.mxu0 %v2608
        %2849 = vmatprep.subr.mxu0 0.0
        %2850 = vmatpush1.msra.mxu0 %v2609
        %2851 = vmatprep.subr.mxu0 0.0
        %2852 = vmatpush1.msra.mxu0 %v2610
        %2853 = vmatprep.subr.mxu0 0.0
        %2854 = vmatpush1.msra.mxu0 %v2611
        %2855 = vmatprep.subr.mxu0 0.0
        %2856 = vmatpush1.msra.mxu0 %v2612
        %2857 = vmatprep.subr.mxu0 0.0
        %2858 = vmatpush1.msra.mxu0 %v2613
        %2859 = vmatprep.subr.mxu0 0.0
        %2860 = vmatpush1.msra.mxu0 %v2614
        %2861 = vmatprep.subr.mxu0 0.0
        %2862 = vmatpush1.msra.mxu0 %v2615
        %2863 = vmatprep.subr.mxu0 0.0
        %2864 = vmatpush1.msra.mxu0 %v2616
        %2865 = vmatprep.subr.mxu0 0.0
        %2866 = vmatpush1.msra.mxu0 %v2617
        %2867 = vmatprep.subr.mxu0 0.0
        %2868 = vmatpush1.msra.mxu0 %v2618
        %2869 = vmatprep.subr.mxu0 0.0
        %2870 = vmatpush1.msra.mxu0 %v2619
        %2871 = vmatprep.subr.mxu0 0.0
        %2872 = vmatpush1.msra.mxu0 %v2620
        %2873 = vmatprep.subr.mxu0 0.0
        %2874 = vmatpush1.msra.mxu0 %v2621
        %2875 = vmatprep.subr.mxu0 0.0
        %2876 = vmatpush1.msra.mxu0 %v2622
        %2877 = vmatprep.subr.mxu0 0.0
        %2878 = vmatpush1.msra.mxu0 %v2623
        %2879 = vmatprep.subr.mxu0 0.0
        %2880 = vmatpush1.msra.mxu0 0.0
        %2881 = vmatprep.subr.mxu0 0.0
        %2882 = vmatpush1.msra.mxu0 0.0
        %2883 = vmatprep.subr.mxu0 0.0
        %2884 = vmatpush1.msra.mxu0 0.0
        %2885 = vmatprep.subr.mxu0 0.0
        %2886 = vmatpush1.msra.mxu0 0.0
        %2887 = vmatprep.subr.mxu0 0.0
        %2888 = vmatpush1.msra.mxu0 0.0
        %2889 = vmatprep.subr.mxu0 0.0
        %2890 = vmatpush1.msra.mxu0 0.0
        %2891 = vmatprep.subr.mxu0 0.0
        %2892 = vmatpush1.msra.mxu0 0.0
        %2893 = vmatprep.subr.mxu0 0.0
        %2894 = vmatpush1.msra.mxu0 0.0
        %2895 = vmatprep.subr.mxu0 0.0
        %2896 = vmatpush1.msra.mxu0 0.0
        %2897 = vmatprep.subr.mxu0 0.0
        %2898 = vmatpush1.msra.mxu0 0.0
        %2899 = vmatprep.subr.mxu0 0.0
        %2900 = vmatpush1.msra.mxu0 0.0
        %2901 = vmatprep.subr.mxu0 0.0
        %2902 = vmatpush1.msra.mxu0 0.0
        %2903 = vmatprep.subr.mxu0 0.0
        %2904 = vmatpush1.msra.mxu0 0.0
        %2905 = vmatprep.subr.mxu0 0.0
        %2906 = vmatpush1.msra.mxu0 0.0
        %2907 = vmatprep.subr.mxu0 0.0
        %2908 = vmatpush1.msra.mxu0 0.0
        %2909 = vmatprep.subr.mxu0 0.0
        %2910 = vmatpush1.msra.mxu0 0.0
        %2911 = vmatprep.mubr.f32.mxu0 0.0
        %2912 = vmatmul.mubr.f32.gmra.mrb[0].mxu0 %v2844
        %v2913 = vpop.f32.mrb[0].mxu0
        %v2914 = vadd.f32 0.0, %v2913
        %v2915 = vpop.f32.mrb[0].mxu0
        %2916 = vdwg.mxu0
        %v2917 = vmul.f32 %v2770, %v2770
        %v2918 = vsub.f32 %v2914, %v2917
        %v2919 = vmax.f32 %v2918, 0.0
        %v2920 = vsub.f32 %v2606, %v2770
        %v2921 = vadd.f32 %v2919, 1e-05
        %v2922 = vrsqrt.pop %v2921
        %v2923 = vmul.f32 %v2920, %v2922
        %v2924 = vlaneseq
        %v2925 = vshrl.u32 %v2924, 7
        %v2926 = vsub.s32 0, %v2925
        %v2927 = vrot.slane %v2624, %v2926
        %v2928 = vmul.f32 %v2923, %v2927
        %v2929 = vlaneseq
        %v2930 = vshrl.u32 %v2929, 7
        %v2931 = vsub.s32 0, %v2930
        %v2932 = vrot.slane %v2625, %v2931
        %v2933 = vadd.f32 %v2928, %v2932
        %v2934 = vmul.f32 %v2933, 0.2
        %v2935 = vmax.f32 %v2933, %v2934
        %v2936 = vpack.c.bf16 %v2935, %v2935
        %v2937 = vld [vmem:[%s5] sm:$0xf]
        %v2939 = vsel %vm2626, %v2937, 0
        %vm2941 = vcmask 1041408
        %v2943 = vsel %vm2941, %v2936, 0
        %2945 = vmatprep.subr.bf16.mxu0 0
        %2946 = vmatpush1.bf16.msra.mxu0 %v2943
        %2947 = vmatprep.subr.bf16.mxu0 0
        %2948 = vmatpush1.bf16.msra.mxu0 0
        %2949 = vmatprep.subr.bf16.mxu0 0
        %2950 = vmatpush1.bf16.msra.mxu0 0
        %2951 = vmatprep.subr.bf16.mxu0 0
        %2952 = vmatpush1.bf16.msra.mxu0 0
        %2953 = vmatprep.subr.bf16.mxu0 0
        %2954 = vmatpush1.bf16.msra.mxu0 0
        %2955 = vmatprep.subr.bf16.mxu0 0
        %2956 = vmatpush1.bf16.msra.mxu0 0
        %2957 = vmatprep.subr.bf16.mxu0 0
        %2958 = vmatpush1.bf16.msra.mxu0 0
        %2959 = vmatprep.subr.bf16.mxu0 0
        %2960 = vmatpush1.bf16.msra.mxu0 0
        %2961 = vmatprep.subr.bf16.mxu0 0
        %2962 = vmatpush1.bf16.msra.mxu0 0
        %2963 = vmatprep.subr.bf16.mxu0 0
        %2964 = vmatpush1.bf16.msra.mxu0 0
        %2965 = vmatprep.subr.bf16.mxu0 0
        %2966 = vmatpush1.bf16.msra.mxu0 0
        %2967 = vmatprep.subr.bf16.mxu0 0
        %2968 = vmatpush1.bf16.msra.mxu0 0
        %2969 = vmatprep.subr.bf16.mxu0 0
        %2970 = vmatpush1.bf16.msra.mxu0 0
        %2971 = vmatprep.subr.bf16.mxu0 0
        %2972 = vmatpush1.bf16.msra.mxu0 0
        %2973 = vmatprep.subr.bf16.mxu0 0
        %2974 = vmatpush1.bf16.msra.mxu0 0
        %2975 = vmatprep.subr.bf16.mxu0 0
        %2976 = vmatpush1.bf16.msra.mxu0 0
        %2977 = vmatprep.mubr.bf16.mxu0 0
        %2978 = vmatmul.mubr.bf16.gmra.mrb[0].mxu0 %v2939
        %v2979 = vpop.f32.mrb[0].mxu0
        %v2980 = vadd.f32 0.0, %v2979
        %v2981 = vpop.f32.mrb[0].mxu0
        %v2982 = vpop.f32.mrb[0].mxu0
        %v2983 = vpop.f32.mrb[0].mxu0
        %2984 = vdwg.mxu0
        %v2985 = vpack.c.bf16 %v2980, %v2980
        %s2986 = scalar_lea.vmem [#allocation2], 768
        %v2987 = vld [vmem:[%s2986] sm:$0xf]
        %v2988 = vld [vmem:[%s2986 + $0x4] sm:$0xf]
        %v2989 = vld [vmem:[%s2986 + $0x8] sm:$0xf]
        %v2990 = vld [vmem:[%s2986 + $0xc] sm:$0xf]
        %v2991 = vld [vmem:[%s2986 + $0x10] sm:$0xf]
        %v2992 = vld [vmem:[%s2986 + $0x14] sm:$0xf]
        %v2993 = vld [vmem:[%s2986 + $0x18] sm:$0xf]
        %v2994 = vld [vmem:[%s2986 + $0x1c] sm:$0xf]
        %v2995 = vld [vmem:[%s2986 + $0x20] sm:$0xf]
        %v2996 = vld [vmem:[%s2986 + $0x24] sm:$0xf]
        %v2997 = vld [vmem:[%s2986 + $0x28] sm:$0xf]
        %v2998 = vld [vmem:[%s2986 + $0x2c] sm:$0xf]
        %v2999 = vld [vmem:[%s2986 + $0x30] sm:$0xf]
        %v3000 = vld [vmem:[%s2986 + $0x34] sm:$0xf]
        %v3001 = vld [vmem:[%s2986 + $0x38] sm:$0xf]
        %v3002 = vld [vmem:[%s2986 + $0x3c] sm:$0xf]
        %s3003 = scalar_lea.vmem %s5, 4
        %v3004 = vld [vmem:[%s3003] sm:$0xf]
        %v3006 = vsel %vm2626, %v3004, 0
        %3008 = vmatprep.subr.bf16.mxu0 0
        %3009 = vmatpush1.bf16.msra.mxu0 %v2943
        %3010 = vmatprep.subr.bf16.mxu0 0
        %3011 = vmatpush1.bf16.msra.mxu0 0
        %3012 = vmatprep.subr.bf16.mxu0 0
        %3013 = vmatpush1.bf16.msra.mxu0 0
        %3014 = vmatprep.subr.bf16.mxu0 0
        %3015 = vmatpush1.bf16.msra.mxu0 0
        %3016 = vmatprep.subr.bf16.mxu0 0
        %3017 = vmatpush1.bf16.msra.mxu0 0
        %3018 = vmatprep.subr.bf16.mxu0 0
        %3019 = vmatpush1.bf16.msra.mxu0 0
        %3020 = vmatprep.subr.bf16.mxu0 0
        %3021 = vmatpush1.bf16.msra.mxu0 0
        %3022 = vmatprep.subr.bf16.mxu0 0
        %3023 = vmatpush1.bf16.msra.mxu0 0
        %3024 = vmatprep.subr.bf16.mxu0 0
        %3025 = vmatpush1.bf16.msra.mxu0 0
        %3026 = vmatprep.subr.bf16.mxu0 0
        %3027 = vmatpush1.bf16.msra.mxu0 0
        %3028 = vmatprep.subr.bf16.mxu0 0
        %3029 = vmatpush1.bf16.msra.mxu0 0
        %3030 = vmatprep.subr.bf16.mxu0 0
        %3031 = vmatpush1.bf16.msra.mxu0 0
        %3032 = vmatprep.subr.bf16.mxu0 0
        %3033 = vmatpush1.bf16.msra.mxu0 0
        %3034 = vmatprep.subr.bf16.mxu0 0
        %3035 = vmatpush1.bf16.msra.mxu0 0
        %3036 = vmatprep.subr.bf16.mxu0 0
        %3037 = vmatpush1.bf16.msra.mxu0 0
        %3038 = vmatprep.subr.bf16.mxu0 0
        %3039 = vmatpush1.bf16.msra.mxu0 0
        %3040 = vmatprep.mubr.bf16.mxu0 0
        %3041 = vmatmul.mubr.bf16.gmra.mrb[0].mxu0 %v3006
        %v3042 = vpop.f32.mrb[0].mxu0
        %v3043 = vadd.f32 0.0, %v3042
        %v3044 = vpop.f32.mrb[0].mxu0
        %v3045 = vpop.f32.mrb[0].mxu0
        %v3046 = vpop.f32.mrb[0].mxu0
        %3047 = vdwg.mxu0
        %v3048 = vpack.c.bf16 %v3043, %v3043
        %s3049 = scalar_lea.vmem [#allocation2], 832
        %v3050 = vld [vmem:[%s3049] sm:$0xf]
        %v3051 = vld [vmem:[%s3049 + $0x4] sm:$0xf]
        %v3052 = vld [vmem:[%s3049 + $0x8] sm:$0xf]
        %v3053 = vld [vmem:[%s3049 + $0xc] sm:$0xf]
        %v3054 = vld [vmem:[%s3049 + $0x10] sm:$0xf]
        %v3055 = vld [vmem:[%s3049 + $0x14] sm:$0xf]
        %v3056 = vld [vmem:[%s3049 + $0x18] sm:$0xf]
        %v3057 = vld [vmem:[%s3049 + $0x1c] sm:$0xf]
        %v3058 = vld [vmem:[%s3049 + $0x20] sm:$0xf]
        %v3059 = vld [vmem:[%s3049 + $0x24] sm:$0xf]
        %v3060 = vld [vmem:[%s3049 + $0x28] sm:$0xf]
        %v3061 = vld [vmem:[%s3049 + $0x2c] sm:$0xf]
        %v3062 = vld [vmem:[%s3049 + $0x30] sm:$0xf]
        %v3063 = vld [vmem:[%s3049 + $0x34] sm:$0xf]
        %v3064 = vld [vmem:[%s3049 + $0x38] sm:$0xf]
        %v3065 = vld [vmem:[%s3049 + $0x3c] sm:$0xf]
        %v3082 = vunpack.c.l.b16 %v3050
        %v3083 = vunpack.c.l.b16 %v3051
        %v3084 = vunpack.c.l.b16 %v3052
        %v3085 = vunpack.c.l.b16 %v3053
        %v3086 = vunpack.c.l.b16 %v3054
        %v3087 = vunpack.c.l.b16 %v3055
        %v3088 = vunpack.c.l.b16 %v3056
        %v3089 = vunpack.c.l.b16 %v3057
        %v3090 = vunpack.c.l.b16 %v3058
        %v3091 = vunpack.c.l.b16 %v3059
        %v3092 = vunpack.c.l.b16 %v3060
        %v3093 = vunpack.c.l.b16 %v3061
        %v3094 = vunpack.c.l.b16 %v3062
        %v3095 = vunpack.c.l.b16 %v3063
        %v3096 = vunpack.c.l.b16 %v3064
        %v3097 = vunpack.c.l.b16 %v3065
        %v3098 = vpack.c.b16 %v3083, %v3082
        %v3099 = vpack.c.b16 %v3085, %v3084
        %v3100 = vpack.c.b16 %v3087, %v3086
        %v3101 = vpack.c.b16 %v3089, %v3088
        %v3102 = vpack.c.b16 %v3091, %v3090
        %v3103 = vpack.c.b16 %v3093, %v3092
        %v3104 = vpack.c.b16 %v3095, %v3094
        %v3105 = vpack.c.b16 %v3097, %v3096
        %3114 = vmatprep.subr.bf16.mxu0 0
        %3115 = vmatpush1.bf16.msra.mxu0 %v3098
        %3116 = vmatprep.subr.bf16.mxu0 0
        %3117 = vmatpush1.bf16.msra.mxu0 %v3099
        %3118 = vmatprep.subr.bf16.mxu0 0
        %3119 = vmatpush1.bf16.msra.mxu0 %v3100
        %3120 = vmatprep.subr.bf16.mxu0 0
        %3121 = vmatpush1.bf16.msra.mxu0 %v3101
        %3122 = vmatprep.subr.bf16.mxu0 0
        %3123 = vmatpush1.bf16.msra.mxu0 %v3102
        %3124 = vmatprep.subr.bf16.mxu0 0
        %3125 = vmatpush1.bf16.msra.mxu0 %v3103
        %3126 = vmatprep.subr.bf16.mxu0 0
        %3127 = vmatpush1.bf16.msra.mxu0 %v3104
        %3128 = vmatprep.subr.bf16.mxu0 0
        %3129 = vmatpush1.bf16.msra.mxu0 %v3105
        %3130 = vmatprep.subr.bf16.mxu0 0
        %3131 = vmatpush1.bf16.msra.mxu0 0
        %3132 = vmatprep.subr.bf16.mxu0 0
        %3133 = vmatpush1.bf16.msra.mxu0 0
        %3134 = vmatprep.subr.bf16.mxu0 0
        %3135 = vmatpush1.bf16.msra.mxu0 0
        %3136 = vmatprep.subr.bf16.mxu0 0
        %3137 = vmatpush1.bf16.msra.mxu0 0
        %3138 = vmatprep.subr.bf16.mxu0 0
        %3139 = vmatpush1.bf16.msra.mxu0 0
        %3140 = vmatprep.subr.bf16.mxu0 0
        %3141 = vmatpush1.bf16.msra.mxu0 0
        %3142 = vmatprep.subr.bf16.mxu0 0
        %3143 = vmatpush1.bf16.msra.mxu0 0
        %3144 = vmatprep.subr.bf16.mxu0 0
        %3145 = vmatpush1.bf16.msra.mxu0 0
        %3146 = vmatprep.mubr.bf16.mxu0 0
        %3147 = vmatmul.mubr.bf16.gmra.mrb[0].mxu0 %v3048
        %v3148 = vpop.f32.mrb[0].mxu0
        %v3149 = vadd.f32 0.0, %v3148
        %v3150 = vpop.f32.mrb[0].mxu0
        %v3151 = vpop.f32.mrb[0].mxu0
        %v3152 = vpop.f32.mrb[0].mxu0
        %3153 = vdwg.mxu0
        %v3170 = vunpack.c.l.b16 %v2987
        %v3171 = vunpack.c.l.b16 %v2988
        %v3172 = vunpack.c.l.b16 %v2989
        %v3173 = vunpack.c.l.b16 %v2990
        %v3174 = vunpack.c.l.b16 %v2991
        %v3175 = vunpack.c.l.b16 %v2992
        %v3176 = vunpack.c.l.b16 %v2993
        %v3177 = vunpack.c.l.b16 %v2994
        %v3178 = vunpack.c.l.b16 %v2995
        %v3179 = vunpack.c.l.b16 %v2996
        %v3180 = vunpack.c.l.b16 %v2997
        %v3181 = vunpack.c.l.b16 %v2998
        %v3182 = vunpack.c.l.b16 %v2999
        %v3183 = vunpack.c.l.b16 %v3000
        %v3184 = vunpack.c.l.b16 %v3001
        %v3185 = vunpack.c.l.b16 %v3002
        %v3186 = vpack.c.b16 %v3171, %v3170
        %v3187 = vpack.c.b16 %v3173, %v3172
        %v3188 = vpack.c.b16 %v3175, %v3174
        %v3189 = vpack.c.b16 %v3177, %v3176
        %v3190 = vpack.c.b16 %v3179, %v3178
        %v3191 = vpack.c.b16 %v3181, %v3180
        %v3192 = vpack.c.b16 %v3183, %v3182
        %v3193 = vpack.c.b16 %v3185, %v3184
        %3202 = vmatprep.subr.bf16.mxu0 0
        %3203 = vmatpush1.bf16.msra.mxu0 %v3186
        %3204 = vmatprep.subr.bf16.mxu0 0
        %3205 = vmatpush1.bf16.msra.mxu0 %v3187
        %3206 = vmatprep.subr.bf16.mxu0 0
        %3207 = vmatpush1.bf16.msra.mxu0 %v3188
        %3208 = vmatprep.subr.bf16.mxu0 0
        %3209 = vmatpush1.bf16.msra.mxu0 %v3189
        %3210 = vmatprep.subr.bf16.mxu0 0
        %3211 = vmatpush1.bf16.msra.mxu0 %v3190
        %3212 = vmatprep.subr.bf16.mxu0 0
        %3213 = vmatpush1.bf16.msra.mxu0 %v3191
        %3214 = vmatprep.subr.bf16.mxu0 0
        %3215 = vmatpush1.bf16.msra.mxu0 %v3192
        %3216 = vmatprep.subr.bf16.mxu0 0
        %3217 = vmatpush1.bf16.msra.mxu0 %v3193
        %3218 = vmatprep.subr.bf16.mxu0 0
        %3219 = vmatpush1.bf16.msra.mxu0 0
        %3220 = vmatprep.subr.bf16.mxu0 0
        %3221 = vmatpush1.bf16.msra.mxu0 0
        %3222 = vmatprep.subr.bf16.mxu0 0
        %3223 = vmatpush1.bf16.msra.mxu0 0
        %3224 = vmatprep.subr.bf16.mxu0 0
        %3225 = vmatpush1.bf16.msra.mxu0 0
        %3226 = vmatprep.subr.bf16.mxu0 0
        %3227 = vmatpush1.bf16.msra.mxu0 0
        %3228 = vmatprep.subr.bf16.mxu0 0
        %3229 = vmatpush1.bf16.msra.mxu0 0
        %3230 = vmatprep.subr.bf16.mxu0 0
        %3231 = vmatpush1.bf16.msra.mxu0 0
        %3232 = vmatprep.subr.bf16.mxu0 0
        %3233 = vmatpush1.bf16.msra.mxu0 0
        %3234 = vmatprep.mubr.bf16.mxu0 0
        %3235 = vmatmul.mubr.bf16.gmra.mrb[0].mxu0 %v2985
        %v3236 = vpop.f32.mrb[0].mxu0
        %v3237 = vadd.f32 %v3149, %v3236
        %v3238 = vpop.f32.mrb[0].mxu0
        %v3239 = vpop.f32.mrb[0].mxu0
        %v3240 = vpop.f32.mrb[0].mxu0
        %3241 = vdwg.mxu0
        %s3242 = scalar_lea.vmem %s5, 8
        %v3243 = vld [vmem:[%s3242] sm:$0xf]
        %v3245 = vsel %vm2626, %v3243, 0
        %3247 = vmatprep.subr.bf16.mxu0 0
        %3248 = vmatpush1.bf16.msra.mxu0 %v2943
        %3249 = vmatprep.subr.bf16.mxu0 0
        %3250 = vmatpush1.bf16.msra.mxu0 0
        %3251 = vmatprep.subr.bf16.mxu0 0
        %3252 = vmatpush1.bf16.msra.mxu0 0
        %3253 = vmatprep.subr.bf16.mxu0 0
        %3254 = vmatpush1.bf16.msra.mxu0 0
        %3255 = vmatprep.subr.bf16.mxu0 0
        %3256 = vmatpush1.bf16.msra.mxu0 0
        %3257 = vmatprep.subr.bf16.mxu0 0
        %3258 = vmatpush1.bf16.msra.mxu0 0
        %3259 = vmatprep.subr.bf16.mxu0 0
        %3260 = vmatpush1.bf16.msra.mxu0 0
        %3261 = vmatprep.subr.bf16.mxu0 0
        %3262 = vmatpush1.bf16.msra.mxu0 0
        %3263 = vmatprep.subr.bf16.mxu0 0
        %3264 = vmatpush1.bf16.msra.mxu0 0
        %3265 = vmatprep.subr.bf16.mxu0 0
        %3266 = vmatpush1.bf16.msra.mxu0 0
        %3267 = vmatprep.subr.bf16.mxu0 0
        %3268 = vmatpush1.bf16.msra.mxu0 0
        %3269 = vmatprep.subr.bf16.mxu0 0
        %3270 = vmatpush1.bf16.msra.mxu0 0
        %3271 = vmatprep.subr.bf16.mxu0 0
        %3272 = vmatpush1.bf16.msra.mxu0 0
        %3273 = vmatprep.subr.bf16.mxu0 0
        %3274 = vmatpush1.bf16.msra.mxu0 0
        %3275 = vmatprep.subr.bf16.mxu0 0
        %3276 = vmatpush1.bf16.msra.mxu0 0
        %3277 = vmatprep.subr.bf16.mxu0 0
        %3278 = vmatpush1.bf16.msra.mxu0 0
        %3279 = vmatprep.mubr.bf16.mxu0 0
        %3280 = vmatmul.mubr.bf16.gmra.mrb[0].mxu0 %v3245
        %v3281 = vpop.f32.mrb[0].mxu0
        %v3282 = vadd.f32 0.0, %v3281
        %v3283 = vpop.f32.mrb[0].mxu0
        %v3284 = vpop.f32.mrb[0].mxu0
        %v3285 = vpop.f32.mrb[0].mxu0
        %3286 = vdwg.mxu0
        %v3287 = vpack.c.bf16 %v3282, %v3282
        %s3288 = scalar_lea.vmem [#allocation2], 896
        %v3289 = vld [vmem:[%s3288] sm:$0xf]
        %v3290 = vld [vmem:[%s3288 + $0x4] sm:$0xf]
        %v3291 = vld [vmem:[%s3288 + $0x8] sm:$0xf]
        %v3292 = vld [vmem:[%s3288 + $0xc] sm:$0xf]
        %v3293 = vld [vmem:[%s3288 + $0x10] sm:$0xf]
        %v3294 = vld [vmem:[%s3288 + $0x14] sm:$0xf]
        %v3295 = vld [vmem:[%s3288 + $0x18] sm:$0xf]
        %v3296 = vld [vmem:[%s3288 + $0x1c] sm:$0xf]
        %v3297 = vld [vmem:[%s3288 + $0x20] sm:$0xf]
        %v3298 = vld [vmem:[%s3288 + $0x24] sm:$0xf]
        %v3299 = vld [vmem:[%s3288 + $0x28] sm:$0xf]
        %v3300 = vld [vmem:[%s3288 + $0x2c] sm:$0xf]
        %v3301 = vld [vmem:[%s3288 + $0x30] sm:$0xf]
        %v3302 = vld [vmem:[%s3288 + $0x34] sm:$0xf]
        %v3303 = vld [vmem:[%s3288 + $0x38] sm:$0xf]
        %v3304 = vld [vmem:[%s3288 + $0x3c] sm:$0xf]
        %v3321 = vunpack.c.l.b16 %v3289
        %v3322 = vunpack.c.l.b16 %v3290
        %v3323 = vunpack.c.l.b16 %v3291
        %v3324 = vunpack.c.l.b16 %v3292
        %v3325 = vunpack.c.l.b16 %v3293
        %v3326 = vunpack.c.l.b16 %v3294
        %v3327 = vunpack.c.l.b16 %v3295
        %v3328 = vunpack.c.l.b16 %v3296
        %v3329 = vunpack.c.l.b16 %v3297
        %v3330 = vunpack.c.l.b16 %v3298
        %v3331 = vunpack.c.l.b16 %v3299
        %v3332 = vunpack.c.l.b16 %v3300
        %v3333 = vunpack.c.l.b16 %v3301
        %v3334 = vunpack.c.l.b16 %v3302
        %v3335 = vunpack.c.l.b16 %v3303
        %v3336 = vunpack.c.l.b16 %v3304
        %v3337 = vpack.c.b16 %v3322, %v3321
        %v3338 = vpack.c.b16 %v3324, %v3323
        %v3339 = vpack.c.b16 %v3326, %v3325
        %v3340 = vpack.c.b16 %v3328, %v3327
        %v3341 = vpack.c.b16 %v3330, %v3329
        %v3342 = vpack.c.b16 %v3332, %v3331
        %v3343 = vpack.c.b16 %v3334, %v3333
        %v3344 = vpack.c.b16 %v3336, %v3335
        %3353 = vmatprep.subr.bf16.mxu0 0
        %3354 = vmatpush1.bf16.msra.mxu0 %v3337
        %3355 = vmatprep.subr.bf16.mxu0 0
        %3356 = vmatpush1.bf16.msra.mxu0 %v3338
        %3357 = vmatprep.subr.bf16.mxu0 0
        %3358 = vmatpush1.bf16.msra.mxu0 %v3339
        %3359 = vmatprep.subr.bf16.mxu0 0
        %3360 = vmatpush1.bf16.msra.mxu0 %v3340
        %3361 = vmatprep.subr.bf16.mxu0 0
        %3362 = vmatpush1.bf16.msra.mxu0 %v3341
        %3363 = vmatprep.subr.bf16.mxu0 0
        %3364 = vmatpush1.bf16.msra.mxu0 %v3342
        %3365 = vmatprep.subr.bf16.mxu0 0
        %3366 = vmatpush1.bf16.msra.mxu0 %v3343
        %3367 = vmatprep.subr.bf16.mxu0 0
        %3368 = vmatpush1.bf16.msra.mxu0 %v3344
        %3369 = vmatprep.subr.bf16.mxu0 0
        %3370 = vmatpush1.bf16.msra.mxu0 0
        %3371 = vmatprep.subr.bf16.mxu0 0
        %3372 = vmatpush1.bf16.msra.mxu0 0
        %3373 = vmatprep.subr.bf16.mxu0 0
        %3374 = vmatpush1.bf16.msra.mxu0 0
        %3375 = vmatprep.subr.bf16.mxu0 0
        %3376 = vmatpush1.bf16.msra.mxu0 0
        %3377 = vmatprep.subr.bf16.mxu0 0
        %3378 = vmatpush1.bf16.msra.mxu0 0
        %3379 = vmatprep.subr.bf16.mxu0 0
        %3380 = vmatpush1.bf16.msra.mxu0 0
        %3381 = vmatprep.subr.bf16.mxu0 0
        %3382 = vmatpush1.bf16.msra.mxu0 0
        %3383 = vmatprep.subr.bf16.mxu0 0
        %3384 = vmatpush1.bf16.msra.mxu0 0
        %3385 = vmatprep.mubr.bf16.mxu0 0
        %3386 = vmatmul.mubr.bf16.gmra.mrb[0].mxu0 %v3287
        %v3387 = vpop.f32.mrb[0].mxu0
        %v3388 = vadd.f32 0.0, %v3387
        %v3389 = vpop.f32.mrb[0].mxu0
        %v3390 = vpop.f32.mrb[0].mxu0
        %v3391 = vpop.f32.mrb[0].mxu0
        %3392 = vdwg.mxu0
        %v3393 = vadd.f32 %v3237, %v3388
        %s3394 = scalar_lea.vmem %s5, 12
        %v3395 = vld [vmem:[%s3394] sm:$0xf]
        %v3397 = vsel %vm2626, %v3395, 0
        %3399 = vmatprep.subr.bf16.mxu0 0
        %3400 = vmatpush1.bf16.msra.mxu0 %v2943
        %3401 = vmatprep.subr.bf16.mxu0 0
        %3402 = vmatpush1.bf16.msra.mxu0 0
        %3403 = vmatprep.subr.bf16.mxu0 0
        %3404 = vmatpush1.bf16.msra.mxu0 0
        %3405 = vmatprep.subr.bf16.mxu0 0
        %3406 = vmatpush1.bf16.msra.mxu0 0
        %3407 = vmatprep.subr.bf16.mxu0 0
        %3408 = vmatpush1.bf16.msra.mxu0 0
        %3409 = vmatprep.subr.bf16.mxu0 0
        %3410 = vmatpush1.bf16.msra.mxu0 0
        %3411 = vmatprep.subr.bf16.mxu0 0
        %3412 = vmatpush1.bf16.msra.mxu0 0
        %3413 = vmatprep.subr.bf16.mxu0 0
        %3414 = vmatpush1.bf16.msra.mxu0 0
        %3415 = vmatprep.subr.bf16.mxu0 0
        %3416 = vmatpush1.bf16.msra.mxu0 0
        %3417 = vmatprep.subr.bf16.mxu0 0
        %3418 = vmatpush1.bf16.msra.mxu0 0
        %3419 = vmatprep.subr.bf16.mxu0 0
        %3420 = vmatpush1.bf16.msra.mxu0 0
        %3421 = vmatprep.subr.bf16.mxu0 0
        %3422 = vmatpush1.bf16.msra.mxu0 0
        %3423 = vmatprep.subr.bf16.mxu0 0
        %3424 = vmatpush1.bf16.msra.mxu0 0
        %3425 = vmatprep.subr.bf16.mxu0 0
        %3426 = vmatpush1.bf16.msra.mxu0 0
        %3427 = vmatprep.subr.bf16.mxu0 0
        %3428 = vmatpush1.bf16.msra.mxu0 0
        %3429 = vmatprep.subr.bf16.mxu0 0
        %3430 = vmatpush1.bf16.msra.mxu0 0
        %3431 = vmatprep.mubr.bf16.mxu0 0
        %3432 = vmatmul.mubr.bf16.gmra.mrb[0].mxu0 %v3397
        %v3433 = vpop.f32.mrb[0].mxu0
        %v3434 = vadd.f32 0.0, %v3433
        %v3435 = vpop.f32.mrb[0].mxu0
        %v3436 = vpop.f32.mrb[0].mxu0
        %v3437 = vpop.f32.mrb[0].mxu0
        %3438 = vdwg.mxu0
        %v3439 = vpack.c.bf16 %v3434, %v3434
        %s3440 = scalar_lea.vmem [#allocation2], 960
        %v3441 = vld [vmem:[%s3440] sm:$0xf]
        %v3442 = vld [vmem:[%s3440 + $0x4] sm:$0xf]
        %v3443 = vld [vmem:[%s3440 + $0x8] sm:$0xf]
        %v3444 = vld [vmem:[%s3440 + $0xc] sm:$0xf]
        %v3445 = vld [vmem:[%s3440 + $0x10] sm:$0xf]
        %v3446 = vld [vmem:[%s3440 + $0x14] sm:$0xf]
        %v3447 = vld [vmem:[%s3440 + $0x18] sm:$0xf]
        %v3448 = vld [vmem:[%s3440 + $0x1c] sm:$0xf]
        %v3449 = vld [vmem:[%s3440 + $0x20] sm:$0xf]
        %v3450 = vld [vmem:[%s3440 + $0x24] sm:$0xf]
        %v3451 = vld [vmem:[%s3440 + $0x28] sm:$0xf]
        %v3452 = vld [vmem:[%s3440 + $0x2c] sm:$0xf]
        %v3453 = vld [vmem:[%s3440 + $0x30] sm:$0xf]
        %v3454 = vld [vmem:[%s3440 + $0x34] sm:$0xf]
        %v3455 = vld [vmem:[%s3440 + $0x38] sm:$0xf]
        %v3456 = vld [vmem:[%s3440 + $0x3c] sm:$0xf]
        %v3473 = vunpack.c.l.b16 %v3441
        %v3474 = vunpack.c.l.b16 %v3442
        %v3475 = vunpack.c.l.b16 %v3443
        %v3476 = vunpack.c.l.b16 %v3444
        %v3477 = vunpack.c.l.b16 %v3445
        %v3478 = vunpack.c.l.b16 %v3446
        %v3479 = vunpack.c.l.b16 %v3447
        %v3480 = vunpack.c.l.b16 %v3448
        %v3481 = vunpack.c.l.b16 %v3449
        %v3482 = vunpack.c.l.b16 %v3450
        %v3483 = vunpack.c.l.b16 %v3451
        %v3484 = vunpack.c.l.b16 %v3452
        %v3485 = vunpack.c.l.b16 %v3453
        %v3486 = vunpack.c.l.b16 %v3454
        %v3487 = vunpack.c.l.b16 %v3455
        %v3488 = vunpack.c.l.b16 %v3456
        %v3489 = vpack.c.b16 %v3474, %v3473
        %v3490 = vpack.c.b16 %v3476, %v3475
        %v3491 = vpack.c.b16 %v3478, %v3477
        %v3492 = vpack.c.b16 %v3480, %v3479
        %v3493 = vpack.c.b16 %v3482, %v3481
        %v3494 = vpack.c.b16 %v3484, %v3483
        %v3495 = vpack.c.b16 %v3486, %v3485
        %v3496 = vpack.c.b16 %v3488, %v3487
        %3505 = vmatprep.subr.bf16.mxu0 0
        %3506 = vmatpush1.bf16.msra.mxu0 %v3489
        %3507 = vmatprep.subr.bf16.mxu0 0
        %3508 = vmatpush1.bf16.msra.mxu0 %v3490
        %3509 = vmatprep.subr.bf16.mxu0 0
        %3510 = vmatpush1.bf16.msra.mxu0 %v3491
        %3511 = vmatprep.subr.bf16.mxu0 0
        %3512 = vmatpush1.bf16.msra.mxu0 %v3492
        %3513 = vmatprep.subr.bf16.mxu0 0
        %3514 = vmatpush1.bf16.msra.mxu0 %v3493
        %3515 = vmatprep.subr.bf16.mxu0 0
        %3516 = vmatpush1.bf16.msra.mxu0 %v3494
        %3517 = vmatprep.subr.bf16.mxu0 0
        %3518 = vmatpush1.bf16.msra.mxu0 %v3495
        %3519 = vmatprep.subr.bf16.mxu0 0
        %3520 = vmatpush1.bf16.msra.mxu0 %v3496
        %3521 = vmatprep.subr.bf16.mxu0 0
        %3522 = vmatpush1.bf16.msra.mxu0 0
        %3523 = vmatprep.subr.bf16.mxu0 0
        %3524 = vmatpush1.bf16.msra.mxu0 0
        %3525 = vmatprep.subr.bf16.mxu0 0
        %3526 = vmatpush1.bf16.msra.mxu0 0
        %3527 = vmatprep.subr.bf16.mxu0 0
        %3528 = vmatpush1.bf16.msra.mxu0 0
        %3529 = vmatprep.subr.bf16.mxu0 0
        %3530 = vmatpush1.bf16.msra.mxu0 0
        %3531 = vmatprep.subr.bf16.mxu0 0
        %3532 = vmatpush1.bf16.msra.mxu0 0
        %3533 = vmatprep.subr.bf16.mxu0 0
        %3534 = vmatpush1.bf16.msra.mxu0 0
        %3535 = vmatprep.subr.bf16.mxu0 0
        %3536 = vmatpush1.bf16.msra.mxu0 0
        %3537 = vmatprep.mubr.bf16.mxu0 0
        %3538 = vmatmul.mubr.bf16.gmra.mrb[0].mxu0 %v3439
        %v3539 = vpop.f32.mrb[0].mxu0
        %v3540 = vadd.f32 0.0, %v3539
        %v3541 = vpop.f32.mrb[0].mxu0
        %v3542 = vpop.f32.mrb[0].mxu0
        %v3543 = vpop.f32.mrb[0].mxu0
        %3544 = vdwg.mxu0
        %v3545 = vadd.f32 %v3393, %v3540
        %v3546 = vld [vmem:[%s10 + $0x5] sm:$0x1]
        %v3547 = vlaneseq
        %v3548 = vshrl.u32 %v3547, 7
        %v3549 = vsub.s32 0, %v3548
        %v3550 = vrot.slane %v3546, %v3549
        %v3551 = vadd.f32 %v3545, %v3550
        %3552 = vst [vmem:[%s399] sm:$0x1] %v3551
        %p3553 = scmp.lt.s32.totalorder %s23, 1
        %s3554 = scalar_select %p3553, %s23, 1
        %s3555 = scalar_lea.vmem %s11, %s3554
        // Predicated region
        $region69: #{discriminator_forward.1} parent=63 // pred_check
          %p3556 = pneg %p277
        $region70: #{discriminator_forward.1} parent=63 // pred_check_branch
          %3558 = sbr.rel (%p3556) target = $region72
        $region71: #{discriminator_forward.1} parent=63 // pred_region
          _
        $region72: #{discriminator_forward.1} parent=63 // pred_fallthru
          _
      $region64: #{discriminator_forward.1} parent=5 // pred_fallthru
        _
      %p3559 = scmp.le.s32.totalorder 2, %s18
      // Predicated region
      $region73: #{discriminator_forward.1} parent=5 // pred_check
        %p3560 = pneg %p3559
      $region74: #{discriminator_forward.1} parent=5 // pred_check_branch
        %3562 = sbr.rel (%p3560) target = $region76
      $region75: #{discriminator_forward.1} parent=5 // pred_region
        %s3563 = ssub.s32 %s18, 2
        // Predicated region
        $region77: #{discriminator_forward.1} parent=75 // pred_check
          %p3564 = pneg %p283
        $region78: #{discriminator_forward.1} parent=75 // pred_check_branch
          %3566 = sbr.rel (%p3564) target = $region80
        $region79: #{discriminator_forward.1} parent=75 // pred_region
          %p3567 = scmp.lt.s32.totalorder %s24, 1
          %s3568 = scalar_select %p3567, %s24, 1
          %s3569 = scalar_lea.vmem %s11, %s3568
        $region80: #{discriminator_forward.1} parent=75 // pred_fallthru
          _
      $region76: #{discriminator_forward.1} parent=5 // pred_fallthru
        _
    $region6: #{discriminator_forward.1} parent=1 // loop_footer
      %s22 = sadd.s32 1, %s18
    $region7: #{discriminator_forward.1} parent=1 // loop_footer_branch
      %17 = sbr.rel target = $region3
    $region8: #{discriminator_forward.1} parent=1 // loop_exit
      _
    %3570 = vsyncpa [#allocation3], 1
    %s3571 = scalar_lea.sflag [#allocation3], 1
    %3572 = vsyncpa %s3571, 1

</llo_original>
